<compile_context>
chip_gen: v7x
topology: tpu7x:2x2x1
jax: 0.10.0
libtpu: 0.0.40
codegen_flags: <defaults>
</compile_context>

<pallas_src>
import functools
import math

import jax
import jax.numpy as jnp
import numpy as np
from jax.experimental import pallas as pl
from jax.experimental.pallas import tpu as pltpu

LANE = 128


def _vmem_limit_bytes():
    """3/4 of this generation's VMEM (96 MiB on v5e/v6e, 48 MiB on v7x)."""
    try:
        cap = getattr(pltpu.get_tpu_info(), "vmem_capacity_bytes", None)
        if cap:
            return int(cap) * 3 // 4
    except Exception:
        pass
    return 48 * 1024 * 1024


_VMEM_LIMIT = _vmem_limit_bytes()
_VMEM = pl.BlockSpec(memory_space=pltpu.MemorySpace.VMEM)


def _tap_groups(cin, target_k=256):
    """Group consecutive 3x3 taps so each MXU push has contraction K ~= target_k."""
    tpd = max(1, min(9, target_k // max(cin, 1)))
    return [list(range(s, min(s + tpd, 9))) for s in range(0, 9, tpd)]


# ----------------------------- Pallas kernels ------------------------------ #

def _conv3x3_taps(xpad, w_ref, *, ho, wo, stride, groups):
    """Tap-accumulated 3x3 conv.  xpad: (Hp, Wp, Ci), zero-padded by 1 spatially.
    w_ref: (9*Ci, Co) im2col weights (tap-major).  Returns (Ho*Wo, Co) float32."""
    ci = xpad.shape[-1]
    acc = None
    for g in groups:
        parts = []
        for t in g:
            ky, kx = divmod(t, 3)
            p = jax.lax.slice(
                xpad, (ky, kx, 0),
                (ky + stride * (ho - 1) + 1, kx + stride * (wo - 1) + 1, ci),
                (stride, stride, 1))
            parts.append(p.reshape(ho * wo, ci))
        patch = parts[0] if len(parts) == 1 else jnp.concatenate(parts, axis=1)
        wg = w_ref[g[0] * ci:(g[-1] + 1) * ci, :]
        d = jnp.dot(patch, wg, preferred_element_type=jnp.float32)
        acc = d if acc is None else acc + d
    return acc


def _fused_block_kernel(*refs, stride, has_proj, groups1, groups2):
    """Per image: conv1+BN1+ReLU -> conv2+BN2 -> shortcut -> +, ReLU, channel sums.
    feat1 never leaves VMEM (halo zero-padded into scratch)."""
    if has_proj:
        (x_ref, w1_ref, s1_ref, b1_ref, w2_ref, s2_ref, b2_ref,
         wsc_ref, ssc_ref, bsc_ref, o_ref, sum_ref, f1_scr) = refs
    else:
        (x_ref, w1_ref, s1_ref, b1_ref, w2_ref, s2_ref, b2_ref,
         o_ref, sum_ref, f1_scr) = refs

    _, ho, wo, co = o_ref.shape
    hp, wp, ci = x_ref.shape[1], x_ref.shape[2], x_ref.shape[3]
    x = x_ref[...].reshape(hp, wp, ci)

    # --- conv1 + BN1 + ReLU (f32 accumulation) ---
    a1 = _conv3x3_taps(x, w1_ref, ho=ho, wo=wo, stride=stride, groups=groups1)
    f1 = jnp.maximum(a1 * s1_ref[...] + b1_ref[...], 0.0)

    # feat1 (+1-px halo) stays in VMEM scratch; borders zeroed in-kernel.
    f1_scr[...] = jnp.zeros_like(f1_scr)
    f1_scr[1:ho + 1, 1:wo + 1, :] = f1.reshape(ho, wo, co).astype(f1_scr.dtype)

    # --- conv2 + BN2 ---
    a2 = _conv3x3_taps(f1_scr[...], w2_ref, ho=ho, wo=wo, stride=1, groups=groups2)
    out = a2 * s2_ref[...] + b2_ref[...]

    # --- shortcut: 1x1 conv + BN (projection) or the strided input (identity) ---
    xs = jax.lax.slice(
        x, (1, 1, 0),
        (1 + stride * (ho - 1) + 1, 1 + stride * (wo - 1) + 1, ci),
        (stride, stride, 1)).reshape(ho * wo, ci)
    if has_proj:
        sc = jnp.dot(xs, wsc_ref[...], preferred_element_type=jnp.float32)
        sc = sc * ssc_ref[...] + bsc_ref[...]
    else:
        sc = xs.astype(jnp.float32)                  # identity: ci == co
    out = jnp.maximum(out + sc, 0.0)

    o_ref[...] = out.reshape(1, ho, wo, co).astype(o_ref.dtype)
    # per-image channel sums (f32, from the f32 accumulator) for the CSAFR average
    sum_ref[...] = jnp.sum(out, axis=0).reshape(1, 1, co)


def _csafr_mask_kernel(sum_ref, w_ref, wT_ref, b_ref, logits_ref, mask_ref, *,
                       inv_hw):
    """Probe logits + analytic-gradient softmax mask from pre-reduced channel sums.
    Eval-mode CSAFR: selected class = argmax(logits); everything stays f32."""
    avg = sum_ref[...] * inv_hw                                 # (N, C)
    w = w_ref[...]                                              # (ncls, C)
    logits = (jnp.dot(avg, wT_ref[...], preferred_element_type=jnp.float32)
              + b_ref[...])
    logits_ref[...] = logits.astype(logits_ref.dtype)

    n, ncls = logits.shape
    c = w.shape[1]
    cls_iota = jax.lax.broadcasted_iota(jnp.int32, (n, ncls), 1)
    mx = jnp.max(logits, axis=-1, keepdims=True)
    pred = jnp.min(jnp.where(logits == mx, cls_iota, ncls), axis=-1, keepdims=True)
    oh = (cls_iota == pred).astype(jnp.float32)                 # one-hot (N, ncls)
    w_sel = jnp.dot(oh, w, preferred_element_type=jnp.float32)  # (N, C) = W[pred]

    # d(sum_n logits[n, pred_n]) / d(scores[n, k]) = avg[n, k] * W[pred_n, k]
    g = avg * w_sel
    norm = jnp.sqrt(jnp.sum(g * g, axis=1, keepdims=True) + 1e-12)  # NaN guard
    g = g * (math.sqrt(c) / 2.0) / norm
    m = 1.0 + g
    m = m - jnp.max(m, axis=1, keepdims=True)
    e = jnp.exp(m)
    mask_ref[...] = (e / jnp.sum(e, axis=1, keepdims=True)).astype(mask_ref.dtype)


def _apply_mask_kernel(f_ref, m_ref, o_ref):
    """Tiled elementwise: masked_feat = feat * mask (mask broadcast over H*W)."""
    o_ref[...] = (f_ref[...].astype(jnp.float32) * m_ref[...]).astype(o_ref.dtype)


# ------------------------------ pallas_call wrappers ------------------------ #

def _fused_block(xp, w1, s1, b1, w2, s2, b2, proj, *, stride, out_hw, compute_dtype):
    n, hp, wp, ci = xp.shape
    co = w1.shape[1]
    ho, wo = out_hw
    has_proj = proj is not None
    kern = functools.partial(_fused_block_kernel, stride=stride, has_proj=has_proj,
                             groups1=_tap_groups(ci), groups2=_tap_groups(co))
    in_arrays = [xp, w1, s1, b1, w2, s2, b2]
    in_specs = [
        pl.BlockSpec((1, hp, wp, ci), lambda i: (i, 0, 0, 0)),
        pl.BlockSpec(w1.shape, lambda i: (0, 0)),
        pl.BlockSpec((1, co), lambda i: (0, 0)),
        pl.BlockSpec((1, co), lambda i: (0, 0)),
        pl.BlockSpec(w2.shape, lambda i: (0, 0)),
        pl.BlockSpec((1, co), lambda i: (0, 0)),
        pl.BlockSpec((1, co), lambda i: (0, 0)),
    ]
    if has_proj:
        wsc, ssc, bsc = proj
        in_arrays += [wsc, ssc, bsc]
        in_specs += [
            pl.BlockSpec(wsc.shape, lambda i: (0, 0)),
            pl.BlockSpec((1, co), lambda i: (0, 0)),
            pl.BlockSpec((1, co), lambda i: (0, 0)),
        ]
    return pl.pallas_call(
        kern,
        grid=(n,),
        in_specs=in_specs,
        out_specs=(
            pl.BlockSpec((1, ho, wo, co), lambda i: (i, 0, 0, 0)),
            pl.BlockSpec((1, 1, co), lambda i: (i, 0, 0)),
        ),
        out_shape=(
            jax.ShapeDtypeStruct((n, ho, wo, co), compute_dtype),
            jax.ShapeDtypeStruct((n, 1, co), jnp.float32),
        ),
        scratch_shapes=[pltpu.VMEM((ho + 2, wo + 2, co), compute_dtype)],
        compiler_params=pltpu.CompilerParams(
            dimension_semantics=("parallel",),
            vmem_limit_bytes=_VMEM_LIMIT),
    )(*in_arrays)


def _csafr_mask(chansum, probe_w, probe_wT, probe_b, *, hw):
    n, c = chansum.shape
    ncls = probe_w.shape[0]
    kern = functools.partial(_csafr_mask_kernel, inv_hw=1.0 / float(hw))
    return pl.pallas_call(
        kern,
        in_specs=[_VMEM] * 4,
        out_specs=(_VMEM, _VMEM),
        out_shape=(jax.ShapeDtypeStruct((n, ncls), jnp.float32),
                   jax.ShapeDtypeStruct((n, c), jnp.float32)),
    )(chansum, probe_w, probe_wT, probe_b)


def _row_tile(hw, c, itemsize, target_bytes=4 << 20):
    """Largest row-tile (multiple of 8 dividing hw) with block size <= ~4 MiB."""
    if hw * c * itemsize <= target_bytes:
        return hw
    t = (target_bytes // (c * itemsize)) // 8 * 8
    while t >= 8:
        if hw % t == 0:
            return t
        t -= 8
    return hw


def _apply_mask(feat_flat, mask3):
    n, hw, c = feat_flat.shape
    t = _row_tile(hw, c, feat_flat.dtype.itemsize)
    return pl.pallas_call(
        _apply_mask_kernel,
        grid=(n, hw // t),
        in_specs=[
            pl.BlockSpec((1, t, c), lambda i, r: (i, r, 0)),
            pl.BlockSpec((1, 1, c), lambda i, r: (i, 0, 0)),
        ],
        out_specs=pl.BlockSpec((1, t, c), lambda i, r: (i, r, 0)),
        out_shape=jax.ShapeDtypeStruct((n, hw, c), feat_flat.dtype),
        compiler_params=pltpu.CompilerParams(
            dimension_semantics=("parallel", "parallel"),
            vmem_limit_bytes=_VMEM_LIMIT),
    )(feat_flat, mask3)


# ------------------------------ JAX glue ------------------------------------ #

def _fold_bn(bn, c):
    gamma, beta, mean, var = bn
    scale = gamma / jnp.sqrt(var + 1e-5)
    shift = beta - mean * scale
    return (scale.reshape(1, c).astype(jnp.float32),
            shift.reshape(1, c).astype(jnp.float32))


def csafr_block_forward(x_nchw, params, *, stride=1, compute_dtype=jnp.bfloat16):
    """Returns (masked_feat, pred_cas, feat) matching the PyTorch module
    (masked_feat / feat in NCHW and compute_dtype, pred_cas (N, 10) f32).
    Eval-mode BN / CSAFR."""
    n, cin, h, w = x_nchw.shape
    planes = params["conv1_w"].shape[-1]
    ncls = params["probe_w"].shape[0]
    ho = (h - 1) // stride + 1
    wo = (w - 1) // stride + 1

    # NCHW -> NHWC + 1-px halo pad; channels kept at their real width.
    x = jnp.transpose(x_nchw, (0, 2, 3, 1)).astype(compute_dtype)
    xp = jnp.pad(x, ((0, 0), (1, 1), (1, 1), (0, 0)))

    w1 = params["conv1_w"].reshape(9 * cin, planes).astype(compute_dtype)
    w2 = params["conv2_w"].reshape(9 * planes, planes).astype(compute_dtype)
    s1, b1 = _fold_bn(params["bn1"], planes)
    s2, b2 = _fold_bn(params["bn2"], planes)

    if "sc_w" in params:
        proj = (params["sc_w"].astype(compute_dtype),) + _fold_bn(params["bn_sc"], planes)
    else:
        proj = None     # identity shortcut: plain add in the fused kernel

    feat, chansum = _fused_block(xp, w1, s1, b1, w2, s2, b2, proj,
                                 stride=stride, out_hw=(ho, wo),
                                 compute_dtype=compute_dtype)

    probe_w = params["probe_w"].astype(jnp.float32)
    probe_b = params["probe_b"].reshape(1, ncls).astype(jnp.float32)
    logits, mask = _csafr_mask(chansum.reshape(n, planes), probe_w, probe_w.T,
                               probe_b, hw=ho * wo)

    masked = _apply_mask(feat.reshape(n, ho * wo, planes),
                         mask.reshape(n, 1, planes))

    feat_out = jnp.transpose(feat, (0, 3, 1, 2))
    masked_out = jnp.transpose(masked.reshape(n, ho, wo, planes), (0, 3, 1, 2))
    return masked_out, logits, feat_out


# ------------------------------ pure-JAX reference --------------------------- #

def ref_forward(x_nchw, params, *, stride=1):
    dn = ('NHWC', 'HWIO', 'NHWC')
    x = jnp.transpose(x_nchw, (0, 2, 3, 1)).astype(jnp.float32)

    def bn(z, p):
        gamma, beta, mean, var = p
        return gamma * (z - mean) / jnp.sqrt(var + 1e-5) + beta

    c1 = jax.lax.conv_general_dilated(x, params["conv1_w"], (stride, stride),
                                      ((1, 1), (1, 1)), dimension_numbers=dn)
    f1 = jax.nn.relu(bn(c1, params["bn1"]))
    c2 = jax.lax.conv_general_dilated(f1, params["conv2_w"], (1, 1),
                                      ((1, 1), (1, 1)), dimension_numbers=dn)
    f2 = bn(c2, params["bn2"])
    if "sc_w" in params:
        sc = jax.lax.conv_general_dilated(x, params["sc_w"][None, None],
                                          (stride, stride), ((0, 0), (0, 0)),
                                          dimension_numbers=dn)
        sc = bn(sc, params["bn_sc"])
    else:
        sc = x
    feat = jax.nn.relu(f2 + sc)
    c = feat.shape[-1]
    avg = jnp.mean(feat, axis=(1, 2))
    logits = avg @ params["probe_w"].T + params["probe_b"]
    pred = jnp.argmax(logits, axis=-1)
    g = avg * params["probe_w"][pred]
    g = g / jnp.linalg.norm(g, axis=1, keepdims=True) * (math.sqrt(c) / 2.0)
    mask = jax.nn.softmax(1.0 + g, axis=1)
    masked = feat * mask[:, None, None, :]
    return (jnp.transpose(masked, (0, 3, 1, 2)), logits,
            jnp.transpose(feat, (0, 3, 1, 2)))


# ----------------------------------- main ------------------------------------ #

if __name__ == "__main__":
    key = jax.random.PRNGKey(0)
    ks = jax.random.split(key, 40)

    def bn_params(i, c):
        return (1.0 + 0.1 * jax.random.normal(ks[i], (c,), jnp.float32),
                0.1 * jax.random.normal(ks[i + 1], (c,), jnp.float32),
                0.1 * jax.random.normal(ks[i + 2], (c,), jnp.float32),
                0.5 + jax.random.uniform(ks[i + 3], (c,), jnp.float32))

    def round_bf16(tree):
        # Pre-round to bf16-representable values so the bf16-storage kernel and the
        # f32 reference see identical data (remaining diff: bf16 f1/feat stores).
        return jax.tree_util.tree_map(
            lambda a: a.astype(jnp.bfloat16).astype(jnp.float32), tree)

    def to_np_f32(a):
        return np.asarray(jnp.asarray(a, jnp.float32))

    def check(x, params, stride, compute_dtype, rtol, atol):
        masked, logits, feat = csafr_block_forward(
            x, params, stride=stride, compute_dtype=compute_dtype)
        jax.block_until_ready((masked, logits, feat))
        r_masked, r_logits, r_feat = ref_forward(x, params, stride=stride)
        np.testing.assert_allclose(to_np_f32(feat), to_np_f32(r_feat), rtol=rtol, atol=atol)
        np.testing.assert_allclose(to_np_f32(logits), to_np_f32(r_logits), rtol=rtol, atol=atol)
        np.testing.assert_allclose(to_np_f32(masked), to_np_f32(r_masked), rtol=rtol, atol=atol)

    N, H, W, n_cls, planes = 2, 16, 16, 10, 8

    # --- case 1: projection shortcut (in_planes != planes), stride 1, bf16 ---
    Cin = 4
    params = {
        "conv1_w": 0.3 * jax.random.normal(ks[0], (3, 3, Cin, planes), jnp.float32),
        "bn1": bn_params(1, planes),
        "conv2_w": 0.3 * jax.random.normal(ks[5], (3, 3, planes, planes), jnp.float32),
        "bn2": bn_params(6, planes),
        "sc_w": 0.3 * jax.random.normal(ks[10], (Cin, planes), jnp.float32),
        "bn_sc": bn_params(11, planes),
        "probe_w": 0.3 * jax.random.normal(ks[15], (n_cls, planes), jnp.float32),
        "probe_b": 0.1 * jax.random.normal(ks[16], (n_cls,), jnp.float32),
    }
    x = jax.random.normal(ks[17], (N, Cin, H, W), jnp.float32)
    params_r, x_r = round_bf16(params), round_bf16(x)
    check(x_r, params_r, 1, jnp.bfloat16, 2e-2, 4e-2)   # atol covers bf16 f1/feat stores

    # --- case 2: identity shortcut (in_planes == planes), stride 1, f32 ---
    Cin2 = planes
    params_id = {
        "conv1_w": 0.3 * jax.random.normal(ks[18], (3, 3, Cin2, planes), jnp.float32),
        "bn1": bn_params(19, planes),
        "conv2_w": 0.3 * jax.random.normal(ks[23], (3, 3, planes, planes), jnp.float32),
        "bn2": bn_params(24, planes),
        "probe_w": 0.3 * jax.random.normal(ks[28], (n_cls, planes), jnp.float32),
        "probe_b": 0.1 * jax.random.normal(ks[29], (n_cls,), jnp.float32),
    }
    x2 = jax.random.normal(ks[30], (N, Cin2, H, W), jnp.float32)
    check(x2, params_id, 1, jnp.float32, 2e-2, 2e-2)

    # --- case 3: projection shortcut, stride 2 (downsampling block), bf16 ---
    check(x_r, params_r, 2, jnp.bfloat16, 2e-2, 4e-2)

    print("KERNEL_OK")
</pallas_src>

<mosaic_0001>
module attributes {stable_mosaic.version = 11 : i64} {
  func.func @_fused_block_kernel(%arg0: i32, %arg1: memref<1x18x18x4xbf16, #tpu.memory_space<vmem>>, %arg2: memref<36x8xbf16, #tpu.memory_space<vmem>>, %arg3: memref<1x8xf32, #tpu.memory_space<vmem>>, %arg4: memref<1x8xf32, #tpu.memory_space<vmem>>, %arg5: memref<72x8xbf16, #tpu.memory_space<vmem>>, %arg6: memref<1x8xf32, #tpu.memory_space<vmem>>, %arg7: memref<1x8xf32, #tpu.memory_space<vmem>>, %arg8: memref<4x8xbf16, #tpu.memory_space<vmem>>, %arg9: memref<1x8xf32, #tpu.memory_space<vmem>>, %arg10: memref<1x8xf32, #tpu.memory_space<vmem>>, %arg11: memref<1x16x16x8xbf16, #tpu.memory_space<vmem>>, %arg12: memref<1x1x8xf32, #tpu.memory_space<vmem>>, %arg13: memref<18x18x8xbf16, #tpu.memory_space<vmem>>) attributes {dimension_semantics = [#tpu.dimension_semantics<parallel>], iteration_bounds = array<i64: 2>, scalar_prefetch = 0 : i64, scratch_operands = 1 : i64, tpu.core_type = #tpu.core_type<tc>, window_params = [{transform_indices = @transform_0, window_bounds = array<i64: 1, 18, 18, 4>}, {pipeline_mode = #tpu.pipeline_mode<synchronous>, transform_indices = @transform_1, window_bounds = array<i64: 36, 8>}, {pipeline_mode = #tpu.pipeline_mode<synchronous>, transform_indices = @transform_2, window_bounds = array<i64: 1, 8>}, {pipeline_mode = #tpu.pipeline_mode<synchronous>, transform_indices = @transform_3, window_bounds = array<i64: 1, 8>}, {pipeline_mode = #tpu.pipeline_mode<synchronous>, transform_indices = @transform_4, window_bounds = array<i64: 72, 8>}, {pipeline_mode = #tpu.pipeline_mode<synchronous>, transform_indices = @transform_5, window_bounds = array<i64: 1, 8>}, {pipeline_mode = #tpu.pipeline_mode<synchronous>, transform_indices = @transform_6, window_bounds = array<i64: 1, 8>}, {pipeline_mode = #tpu.pipeline_mode<synchronous>, transform_indices = @transform_7, window_bounds = array<i64: 4, 8>}, {pipeline_mode = #tpu.pipeline_mode<synchronous>, transform_indices = @transform_8, window_bounds = array<i64: 1, 8>}, {pipeline_mode = #tpu.pipeline_mode<synchronous>, transform_indices = @transform_9, window_bounds = array<i64: 1, 8>}, {transform_indices = @transform_10, window_bounds = array<i64: 1, 16, 16, 8>}, {transform_indices = @transform_11, window_bounds = array<i64: 1, 1, 8>}]} {
    %c0 = arith.constant 0 : index
    %c0_0 = arith.constant 0 : index
    %c0_1 = arith.constant 0 : index
    %c0_2 = arith.constant 0 : index
    %0 = vector.load %arg1[%c0, %c0_0, %c0_1, %c0_2] : memref<1x18x18x4xbf16, #tpu.memory_space<vmem>>, vector<1x18x18x4xbf16>
    %1 = vector.shape_cast %0 : vector<1x18x18x4xbf16> to vector<18x18x4xbf16>
    %2 = vector.extract_strided_slice %1 {offsets = [0, 0, 0], sizes = [16, 16, 4], strides = [1, 1, 1]} : vector<18x18x4xbf16> to vector<16x16x4xbf16>
    %3 = vector.shape_cast %2 : vector<16x16x4xbf16> to vector<256x4xbf16>
    %4 = vector.extract_strided_slice %1 {offsets = [0, 1, 0], sizes = [16, 16, 4], strides = [1, 1, 1]} : vector<18x18x4xbf16> to vector<16x16x4xbf16>
    %5 = vector.shape_cast %4 : vector<16x16x4xbf16> to vector<256x4xbf16>
    %6 = vector.extract_strided_slice %1 {offsets = [0, 2, 0], sizes = [16, 16, 4], strides = [1, 1, 1]} : vector<18x18x4xbf16> to vector<16x16x4xbf16>
    %7 = vector.shape_cast %6 : vector<16x16x4xbf16> to vector<256x4xbf16>
    %8 = vector.extract_strided_slice %1 {offsets = [1, 0, 0], sizes = [16, 16, 4], strides = [1, 1, 1]} : vector<18x18x4xbf16> to vector<16x16x4xbf16>
    %9 = vector.shape_cast %8 : vector<16x16x4xbf16> to vector<256x4xbf16>
    %10 = vector.extract_strided_slice %1 {offsets = [1, 1, 0], sizes = [16, 16, 4], strides = [1, 1, 1]} : vector<18x18x4xbf16> to vector<16x16x4xbf16>
    %11 = vector.shape_cast %10 : vector<16x16x4xbf16> to vector<256x4xbf16>
    %12 = vector.extract_strided_slice %1 {offsets = [1, 2, 0], sizes = [16, 16, 4], strides = [1, 1, 1]} : vector<18x18x4xbf16> to vector<16x16x4xbf16>
    %13 = vector.shape_cast %12 : vector<16x16x4xbf16> to vector<256x4xbf16>
    %14 = vector.extract_strided_slice %1 {offsets = [2, 0, 0], sizes = [16, 16, 4], strides = [1, 1, 1]} : vector<18x18x4xbf16> to vector<16x16x4xbf16>
    %15 = vector.shape_cast %14 : vector<16x16x4xbf16> to vector<256x4xbf16>
    %16 = vector.extract_strided_slice %1 {offsets = [2, 1, 0], sizes = [16, 16, 4], strides = [1, 1, 1]} : vector<18x18x4xbf16> to vector<16x16x4xbf16>
    %17 = vector.shape_cast %16 : vector<16x16x4xbf16> to vector<256x4xbf16>
    %18 = vector.extract_strided_slice %1 {offsets = [2, 2, 0], sizes = [16, 16, 4], strides = [1, 1, 1]} : vector<18x18x4xbf16> to vector<16x16x4xbf16>
    %19 = vector.shape_cast %18 : vector<16x16x4xbf16> to vector<256x4xbf16>
    %20 = tpu.concatenate %3, %5, %7, %9, %11, %13, %15, %17, %19 in 1 : vector<256x4xbf16>, vector<256x4xbf16>, vector<256x4xbf16>, vector<256x4xbf16>, vector<256x4xbf16>, vector<256x4xbf16>, vector<256x4xbf16>, vector<256x4xbf16>, vector<256x4xbf16> -> vector<256x36xbf16>
    %c0_3 = arith.constant 0 : index
    %c0_4 = arith.constant 0 : index
    %21 = vector.load %arg2[%c0_3, %c0_4] : memref<36x8xbf16, #tpu.memory_space<vmem>>, vector<36x8xbf16>
    %cst = arith.constant dense<0.000000e+00> : vector<256x8xf32>
    %22 = tpu.matmul %20, %21, %cst {dimension_numbers = #tpu.dot_dimension_numbers<[1], [0], [0], [1], [0, 0, 1, 1], [], []>} : vector<256x36xbf16>, vector<36x8xbf16>, vector<256x8xf32> -> vector<256x8xf32>
    %c0_5 = arith.constant 0 : index
    %c0_6 = arith.constant 0 : index
    %23 = vector.load %arg3[%c0_5, %c0_6] : memref<1x8xf32, #tpu.memory_space<vmem>>, vector<1x8xf32>
    %24 = vector.broadcast %23 : vector<1x8xf32> to vector<256x8xf32>
    %25 = arith.mulf %22, %24 : vector<256x8xf32>
    %c0_7 = arith.constant 0 : index
    %c0_8 = arith.constant 0 : index
    %26 = vector.load %arg4[%c0_7, %c0_8] : memref<1x8xf32, #tpu.memory_space<vmem>>, vector<1x8xf32>
    %27 = vector.broadcast %26 : vector<1x8xf32> to vector<256x8xf32>
    %28 = arith.addf %25, %27 : vector<256x8xf32>
    %cst_9 = arith.constant 0.000000e+00 : f32
    %29 = vector.broadcast %cst_9 : f32 to vector<256x8xf32>
    %30 = arith.maximumf %28, %29 : vector<256x8xf32>
    %cst_10 = arith.constant 0.000000e+00 : bf16
    %31 = vector.broadcast %cst_10 : bf16 to vector<18x18x8xbf16>
    %c0_11 = arith.constant 0 : index
    %c0_12 = arith.constant 0 : index
    %c0_13 = arith.constant 0 : index
    %32 = vector.load %arg13[%c0_11, %c0_12, %c0_13] : memref<18x18x8xbf16, #tpu.memory_space<vmem>>, vector<18x18x8xbf16>
    tpu.vector_store %arg13[%c0_11, %c0_12, %c0_13], %31 {strides = array<i32>} : memref<18x18x8xbf16, #tpu.memory_space<vmem>>, vector<18x18x8xbf16>,
    %33 = vector.shape_cast %30 : vector<256x8xf32> to vector<16x16x8xf32>
    %34 = arith.truncf %33 : vector<16x16x8xf32> to vector<16x16x8xbf16>
    %c1 = arith.constant 1 : index
    %c1_14 = arith.constant 1 : index
    %c0_15 = arith.constant 0 : index
    %35 = vector.load %arg13[%c1, %c1_14, %c0_15] : memref<18x18x8xbf16, #tpu.memory_space<vmem>>, vector<16x16x8xbf16>
    tpu.vector_store %arg13[%c1, %c1_14, %c0_15], %34 {strides = array<i32>} : memref<18x18x8xbf16, #tpu.memory_space<vmem>>, vector<16x16x8xbf16>,
    %c0_16 = arith.constant 0 : index
    %c0_17 = arith.constant 0 : index
    %c0_18 = arith.constant 0 : index
    %36 = vector.load %arg13[%c0_16, %c0_17, %c0_18] : memref<18x18x8xbf16, #tpu.memory_space<vmem>>, vector<18x18x8xbf16>
    %37 = vector.extract_strided_slice %36 {offsets = [0, 0, 0], sizes = [16, 16, 8], strides = [1, 1, 1]} : vector<18x18x8xbf16> to vector<16x16x8xbf16>
    %38 = vector.shape_cast %37 : vector<16x16x8xbf16> to vector<256x8xbf16>
    %39 = vector.extract_strided_slice %36 {offsets = [0, 1, 0], sizes = [16, 16, 8], strides = [1, 1, 1]} : vector<18x18x8xbf16> to vector<16x16x8xbf16>
    %40 = vector.shape_cast %39 : vector<16x16x8xbf16> to vector<256x8xbf16>
    %41 = vector.extract_strided_slice %36 {offsets = [0, 2, 0], sizes = [16, 16, 8], strides = [1, 1, 1]} : vector<18x18x8xbf16> to vector<16x16x8xbf16>
    %42 = vector.shape_cast %41 : vector<16x16x8xbf16> to vector<256x8xbf16>
    %43 = vector.extract_strided_slice %36 {offsets = [1, 0, 0], sizes = [16, 16, 8], strides = [1, 1, 1]} : vector<18x18x8xbf16> to vector<16x16x8xbf16>
    %44 = vector.shape_cast %43 : vector<16x16x8xbf16> to vector<256x8xbf16>
    %45 = vector.extract_strided_slice %36 {offsets = [1, 1, 0], sizes = [16, 16, 8], strides = [1, 1, 1]} : vector<18x18x8xbf16> to vector<16x16x8xbf16>
    %46 = vector.shape_cast %45 : vector<16x16x8xbf16> to vector<256x8xbf16>
    %47 = vector.extract_strided_slice %36 {offsets = [1, 2, 0], sizes = [16, 16, 8], strides = [1, 1, 1]} : vector<18x18x8xbf16> to vector<16x16x8xbf16>
    %48 = vector.shape_cast %47 : vector<16x16x8xbf16> to vector<256x8xbf16>
    %49 = vector.extract_strided_slice %36 {offsets = [2, 0, 0], sizes = [16, 16, 8], strides = [1, 1, 1]} : vector<18x18x8xbf16> to vector<16x16x8xbf16>
    %50 = vector.shape_cast %49 : vector<16x16x8xbf16> to vector<256x8xbf16>
    %51 = vector.extract_strided_slice %36 {offsets = [2, 1, 0], sizes = [16, 16, 8], strides = [1, 1, 1]} : vector<18x18x8xbf16> to vector<16x16x8xbf16>
    %52 = vector.shape_cast %51 : vector<16x16x8xbf16> to vector<256x8xbf16>
    %53 = vector.extract_strided_slice %36 {offsets = [2, 2, 0], sizes = [16, 16, 8], strides = [1, 1, 1]} : vector<18x18x8xbf16> to vector<16x16x8xbf16>
    %54 = vector.shape_cast %53 : vector<16x16x8xbf16> to vector<256x8xbf16>
    %55 = tpu.concatenate %38, %40, %42, %44, %46, %48, %50, %52, %54 in 1 : vector<256x8xbf16>, vector<256x8xbf16>, vector<256x8xbf16>, vector<256x8xbf16>, vector<256x8xbf16>, vector<256x8xbf16>, vector<256x8xbf16>, vector<256x8xbf16>, vector<256x8xbf16> -> vector<256x72xbf16>
    %c0_19 = arith.constant 0 : index
    %c0_20 = arith.constant 0 : index
    %56 = vector.load %arg5[%c0_19, %c0_20] : memref<72x8xbf16, #tpu.memory_space<vmem>>, vector<72x8xbf16>
    %cst_21 = arith.constant dense<0.000000e+00> : vector<256x8xf32>
    %57 = tpu.matmul %55, %56, %cst_21 {dimension_numbers = #tpu.dot_dimension_numbers<[1], [0], [0], [1], [0, 0, 1, 1], [], []>} : vector<256x72xbf16>, vector<72x8xbf16>, vector<256x8xf32> -> vector<256x8xf32>
    %c0_22 = arith.constant 0 : index
    %c0_23 = arith.constant 0 : index
    %58 = vector.load %arg6[%c0_22, %c0_23] : memref<1x8xf32, #tpu.memory_space<vmem>>, vector<1x8xf32>
    %59 = vector.broadcast %58 : vector<1x8xf32> to vector<256x8xf32>
    %60 = arith.mulf %57, %59 : vector<256x8xf32>
    %c0_24 = arith.constant 0 : index
    %c0_25 = arith.constant 0 : index
    %61 = vector.load %arg7[%c0_24, %c0_25] : memref<1x8xf32, #tpu.memory_space<vmem>>, vector<1x8xf32>
    %62 = vector.broadcast %61 : vector<1x8xf32> to vector<256x8xf32>
    %63 = arith.addf %60, %62 : vector<256x8xf32>
    %64 = vector.extract_strided_slice %1 {offsets = [1, 1, 0], sizes = [16, 16, 4], strides = [1, 1, 1]} : vector<18x18x4xbf16> to vector<16x16x4xbf16>
    %65 = vector.shape_cast %64 : vector<16x16x4xbf16> to vector<256x4xbf16>
    %c0_26 = arith.constant 0 : index
    %c0_27 = arith.constant 0 : index
    %66 = vector.load %arg8[%c0_26, %c0_27] : memref<4x8xbf16, #tpu.memory_space<vmem>>, vector<4x8xbf16>
    %cst_28 = arith.constant dense<0.000000e+00> : vector<256x8xf32>
    %67 = tpu.matmul %65, %66, %cst_28 {dimension_numbers = #tpu.dot_dimension_numbers<[1], [0], [0], [1], [0, 0, 1, 1], [], []>} : vector<256x4xbf16>, vector<4x8xbf16>, vector<256x8xf32> -> vector<256x8xf32>
    %c0_29 = arith.constant 0 : index
    %c0_30 = arith.constant 0 : index
    %68 = vector.load %arg9[%c0_29, %c0_30] : memref<1x8xf32, #tpu.memory_space<vmem>>, vector<1x8xf32>
    %69 = vector.broadcast %68 : vector<1x8xf32> to vector<256x8xf32>
    %70 = arith.mulf %67, %69 : vector<256x8xf32>
    %c0_31 = arith.constant 0 : index
    %c0_32 = arith.constant 0 : index
    %71 = vector.load %arg10[%c0_31, %c0_32] : memref<1x8xf32, #tpu.memory_space<vmem>>, vector<1x8xf32>
    %72 = vector.broadcast %71 : vector<1x8xf32> to vector<256x8xf32>
    %73 = arith.addf %70, %72 : vector<256x8xf32>
    %74 = arith.addf %63, %73 : vector<256x8xf32>
    %cst_33 = arith.constant 0.000000e+00 : f32
    %75 = vector.broadcast %cst_33 : f32 to vector<256x8xf32>
    %76 = arith.maximumf %74, %75 : vector<256x8xf32>
    %77 = vector.shape_cast %76 : vector<256x8xf32> to vector<1x16x16x8xf32>
    %78 = arith.truncf %77 : vector<1x16x16x8xf32> to vector<1x16x16x8xbf16>
    %c0_34 = arith.constant 0 : index
    %c0_35 = arith.constant 0 : index
    %c0_36 = arith.constant 0 : index
    %c0_37 = arith.constant 0 : index
    %79 = vector.load %arg11[%c0_34, %c0_35, %c0_36, %c0_37] : memref<1x16x16x8xbf16, #tpu.memory_space<vmem>>, vector<1x16x16x8xbf16>
    tpu.vector_store %arg11[%c0_34, %c0_35, %c0_36, %c0_37], %78 {strides = array<i32>} : memref<1x16x16x8xbf16, #tpu.memory_space<vmem>>, vector<1x16x16x8xbf16>,
    %cst_38 = arith.constant dense<0.000000e+00> : vector<8xf32>
    %80 = vector.multi_reduction <add>, %76, %cst_38 [0] : vector<256x8xf32> to vector<8xf32>
    %81 = vector.shape_cast %80 : vector<8xf32> to vector<1x1x8xf32>
    %c0_39 = arith.constant 0 : index
    %c0_40 = arith.constant 0 : index
    %c0_41 = arith.constant 0 : index
    %82 = vector.load %arg12[%c0_39, %c0_40, %c0_41] : memref<1x1x8xf32, #tpu.memory_space<vmem>>, vector<1x1x8xf32>
    tpu.vector_store %arg12[%c0_39, %c0_40, %c0_41], %81 {strides = array<i32>} : memref<1x1x8xf32, #tpu.memory_space<vmem>>, vector<1x1x8xf32>,
    return
  }
  func.func @transform_0(%arg0: i32) -> (i32, i32, i32, i32) {
    %c0_i32 = arith.constant 0 : i32
    %c0_i32_0 = arith.constant 0 : i32
    %c0_i32_1 = arith.constant 0 : i32
    %c0_i32_2 = arith.constant 0 : i32
    return %arg0, %c0_i32, %c0_i32_0, %c0_i32_1 : i32, i32, i32, i32
  }
  func.func @transform_1(%arg0: i32) -> (i32, i32) {
    %c0_i32 = arith.constant 0 : i32
    %c0_i32_0 = arith.constant 0 : i32
    %c0_i32_1 = arith.constant 0 : i32
    return %c0_i32, %c0_i32_0 : i32, i32
  }
  func.func @transform_2(%arg0: i32) -> (i32, i32) {
    %c0_i32 = arith.constant 0 : i32
    %c0_i32_0 = arith.constant 0 : i32
    %c0_i32_1 = arith.constant 0 : i32
    return %c0_i32, %c0_i32_0 : i32, i32
  }
  func.func @transform_3(%arg0: i32) -> (i32, i32) {
    %c0_i32 = arith.constant 0 : i32
    %c0_i32_0 = arith.constant 0 : i32
    %c0_i32_1 = arith.constant 0 : i32
    return %c0_i32, %c0_i32_0 : i32, i32
  }
  func.func @transform_4(%arg0: i32) -> (i32, i32) {
    %c0_i32 = arith.constant 0 : i32
    %c0_i32_0 = arith.constant 0 : i32
    %c0_i32_1 = arith.constant 0 : i32
    return %c0_i32, %c0_i32_0 : i32, i32
  }
  func.func @transform_5(%arg0: i32) -> (i32, i32) {
    %c0_i32 = arith.constant 0 : i32
    %c0_i32_0 = arith.constant 0 : i32
    %c0_i32_1 = arith.constant 0 : i32
    return %c0_i32, %c0_i32_0 : i32, i32
  }
  func.func @transform_6(%arg0: i32) -> (i32, i32) {
    %c0_i32 = arith.constant 0 : i32
    %c0_i32_0 = arith.constant 0 : i32
    %c0_i32_1 = arith.constant 0 : i32
    return %c0_i32, %c0_i32_0 : i32, i32
  }
  func.func @transform_7(%arg0: i32) -> (i32, i32) {
    %c0_i32 = arith.constant 0 : i32
    %c0_i32_0 = arith.constant 0 : i32
    %c0_i32_1 = arith.constant 0 : i32
    return %c0_i32, %c0_i32_0 : i32, i32
  }
  func.func @transform_8(%arg0: i32) -> (i32, i32) {
    %c0_i32 = arith.constant 0 : i32
    %c0_i32_0 = arith.constant 0 : i32
    %c0_i32_1 = arith.constant 0 : i32
    return %c0_i32, %c0_i32_0 : i32, i32
  }
  func.func @transform_9(%arg0: i32) -> (i32, i32) {
    %c0_i32 = arith.constant 0 : i32
    %c0_i32_0 = arith.constant 0 : i32
    %c0_i32_1 = arith.constant 0 : i32
    return %c0_i32, %c0_i32_0 : i32, i32
  }
  func.func @transform_10(%arg0: i32) -> (i32, i32, i32, i32) {
    %c0_i32 = arith.constant 0 : i32
    %c0_i32_0 = arith.constant 0 : i32
    %c0_i32_1 = arith.constant 0 : i32
    %c0_i32_2 = arith.constant 0 : i32
    return %arg0, %c0_i32, %c0_i32_0, %c0_i32_1 : i32, i32, i32, i32
  }
  func.func @transform_11(%arg0: i32) -> (i32, i32, i32) {
    %c0_i32 = arith.constant 0 : i32
    %c0_i32_0 = arith.constant 0 : i32
    %c0_i32_1 = arith.constant 0 : i32
    return %arg0, %c0_i32, %c0_i32_0 : i32, i32, i32
  }
}

</mosaic_0001>

<llo_original>
// kernel: tpu_custom_call.1
$region0: #{tpu_custom_call.1}
  #allocation0 [shape = 'u32[]', space=smem, size = 0x4, offset = 0x4, fixed_abs, tag = 'smem constant byte address 0x4 - core index']
  #allocation1 [shape = 'u32[144,128]{1,0:T(1,128)}', space=vmem, size = 0x12000, scoped, tag = 'internal scratch']
  #allocation2 [shape = 'bf16[18,18,8]{2,1,0:T(8,128)(2,1)}', space=vmem, size = 0x1b000, scoped, tag = 'scratch operand']
  %s0 = inlined_call_operand.vmem [shape: bf16[2,18,18,4], index: 0, kind: input, shape index: {}]
  %s1 = inlined_call_operand.vmem [shape: bf16[36,8], index: 1, kind: input, shape index: {}]
  %s2 = inlined_call_operand.vmem [shape: f32[1,8], index: 2, kind: input, shape index: {}]
  %s3 = inlined_call_operand.vmem [shape: f32[1,8], index: 3, kind: input, shape index: {}]
  %s4 = inlined_call_operand.vmem [shape: bf16[72,8], index: 4, kind: input, shape index: {}]
  %s5 = inlined_call_operand.vmem [shape: f32[1,8], index: 5, kind: input, shape index: {}]
  %s6 = inlined_call_operand.vmem [shape: f32[1,8], index: 6, kind: input, shape index: {}]
  %s7 = inlined_call_operand.vmem [shape: bf16[4,8], index: 7, kind: input, shape index: {}]
  %s8 = inlined_call_operand.vmem [shape: f32[1,8], index: 8, kind: input, shape index: {}]
  %s9 = inlined_call_operand.vmem [shape: f32[1,8], index: 9, kind: input, shape index: {}]
  %s10 = inlined_call_operand.vmem [shape: bf16[2,16,16,8], index: 10, kind: output, shape index: {0}]
  %s11 = inlined_call_operand.hbm [shape: f32[2,1,8], index: 11, kind: output, shape index: {1}]
  %12 = xla_tuple %s10, %s11
  %s13 = sld [smem:[#allocation0]]
  $region81: #{tpu_custom_call.1} parent=0
    _
  %s15 = ssub.s32 1, %s13
  %s16 = scalar_select 0, %s15, %s13
  $region1: #{tpu_custom_call.1} parent=0
    #allocation3 [shape = 'u8[1024]{0}', space=vmem, size = 0x400, scoped, tag = 'output window, operand 1']
    #allocation4 [shape = 's32[2]{0}', space=sflag, size = 0x8, scoped, tag = 'scoped memory for tpu_custom_call.1']
    %17 = vsyncpa [#allocation4], 0
    %s18 = scalar_lea.sflag [#allocation4], 1
    %19 = vsyncpa %s18, 0
    loop: start=0, step=1, limit=4
    $region2: #{tpu_custom_call.1} parent=1 // loop_pre_header
      _
    $region3: #{tpu_custom_call.1} parent=1 // loop_header
      %s21 = sphi 0, %s25
      %p22 = scmp.ge.s32.totalorder %s21, 4
      %s31 = sphi 0, %s33
      %s34 = sphi 0, %s31
      %s35 = sphi 0, %s34
      %s51 = sphi 0, %s35
      %s55 = sphi 0, %s55
      %s57 = sphi 0, %s55
      %s58 = sphi 0, %s57
      %s72 = sphi 0, %s58
      %s76 = sphi 0, %s76
      %s78 = sphi 0, %s76
      %s79 = sphi 0, %s78
      %s93 = sphi 0, %s79
      %s97 = sphi 0, %s97
      %s99 = sphi 0, %s97
      %s100 = sphi 0, %s99
      %s114 = sphi 0, %s100
      %s118 = sphi 0, %s118
      %s120 = sphi 0, %s118
      %s121 = sphi 0, %s120
      %s135 = sphi 0, %s121
      %s139 = sphi 0, %s139
      %s141 = sphi 0, %s139
      %s142 = sphi 0, %s141
      %s156 = sphi 0, %s142
      %s160 = sphi 0, %s160
      %s162 = sphi 0, %s160
      %s163 = sphi 0, %s162
      %s177 = sphi 0, %s163
      %s181 = sphi 0, %s181
      %s183 = sphi 0, %s181
      %s184 = sphi 0, %s183
      %s198 = sphi 0, %s184
      %s202 = sphi 0, %s202
      %s204 = sphi 0, %s202
      %s205 = sphi 0, %s204
      %s219 = sphi 0, %s205
      %s223 = sphi 0, %s223
      %s225 = sphi 0, %s223
      %s226 = sphi 0, %s225
      %s240 = sphi 0, %s226
      %s246 = sphi 0, %s248
      %s249 = sphi 0, %s246
      %s250 = sphi 0, %s249
      %s266 = sphi 0, %s250
      %s272 = sphi 0, %s274
      %s275 = sphi 0, %s272
      %s276 = sphi 0, %s275
      %s292 = sphi 0, %s276
    $region4: #{tpu_custom_call.1} parent=1 // loop_header_branch
      %24 = sbr.rel (%p22) target = $region8
    $region5: #{tpu_custom_call.1} parent=1 // loop_body
      %s26 = ssub.s32 %s21, 1
      %s27 = ssub.s32 %s21, 2
      %s28 = sadd.s32 %s21, 1
      %s29 = ssub.s32 %s21, %s28
      %p30 = scmp.eq.s32.totalorder %s29, 0
      %s32 = sadd.s32 %s31, 1
      %s33 = scalar_select %p30, %s31, %s32
      %p36 = pneg %p30
      %p37 = scmp.eq.s32.totalorder %s21, 1
      %p38 = por %p36, %p37
      %p39 = scmp.ne.s32.totalorder %s31, %s34
      %p40 = scmp.eq.s32.totalorder %s21, 0
      %p41 = por %p39, %p40
      %p42 = scmp.ne.s32.totalorder %s31, %s34
      %p43 = scmp.eq.s32.totalorder %s26, 1
      %p44 = por %p42, %p43
      %p45 = scmp.ne.s32.totalorder %s34, %s35
      %p46 = scmp.eq.s32.totalorder %s26, 0
      %p47 = por %p45, %p46
      %p48 = scmp.ne.s32.totalorder %s34, %s35
      %p49 = scmp.eq.s32.totalorder %s27, 1
      %p50 = por %p48, %p49
      %p52 = scmp.ne.s32.totalorder %s35, %s51
      %p53 = scmp.eq.s32.totalorder %s27, 0
      %p54 = por %p52, %p53
      %s56 = sadd.s32 %s55, 1
      %p59 = scmp.eq.s32.totalorder %s21, 1
      %p60 = scmp.ne.s32.totalorder %s55, %s57
      %p61 = scmp.eq.s32.totalorder %s21, 0
      %p62 = por %p60, %p61
      %p63 = scmp.ne.s32.totalorder %s55, %s57
      %p64 = scmp.eq.s32.totalorder %s26, 1
      %p65 = por %p63, %p64
      %p66 = scmp.ne.s32.totalorder %s57, %s58
      %p67 = scmp.eq.s32.totalorder %s26, 0
      %p68 = por %p66, %p67
      %p69 = scmp.ne.s32.totalorder %s57, %s58
      %p70 = scmp.eq.s32.totalorder %s27, 1
      %p71 = por %p69, %p70
      %p73 = scmp.ne.s32.totalorder %s58, %s72
      %p74 = scmp.eq.s32.totalorder %s27, 0
      %p75 = por %p73, %p74
      %s77 = sadd.s32 %s76, 1
      %p80 = scmp.eq.s32.totalorder %s21, 1
      %p81 = scmp.ne.s32.totalorder %s76, %s78
      %p82 = scmp.eq.s32.totalorder %s21, 0
      %p83 = por %p81, %p82
      %p84 = scmp.ne.s32.totalorder %s76, %s78
      %p85 = scmp.eq.s32.totalorder %s26, 1
      %p86 = por %p84, %p85
      %p87 = scmp.ne.s32.totalorder %s78, %s79
      %p88 = scmp.eq.s32.totalorder %s26, 0
      %p89 = por %p87, %p88
      %p90 = scmp.ne.s32.totalorder %s78, %s79
      %p91 = scmp.eq.s32.totalorder %s27, 1
      %p92 = por %p90, %p91
      %p94 = scmp.ne.s32.totalorder %s79, %s93
      %p95 = scmp.eq.s32.totalorder %s27, 0
      %p96 = por %p94, %p95
      %s98 = sadd.s32 %s97, 1
      %p101 = scmp.eq.s32.totalorder %s21, 1
      %p102 = scmp.ne.s32.totalorder %s97, %s99
      %p103 = scmp.eq.s32.totalorder %s21, 0
      %p104 = por %p102, %p103
      %p105 = scmp.ne.s32.totalorder %s97, %s99
      %p106 = scmp.eq.s32.totalorder %s26, 1
      %p107 = por %p105, %p106
      %p108 = scmp.ne.s32.totalorder %s99, %s100
      %p109 = scmp.eq.s32.totalorder %s26, 0
      %p110 = por %p108, %p109
      %p111 = scmp.ne.s32.totalorder %s99, %s100
      %p112 = scmp.eq.s32.totalorder %s27, 1
      %p113 = por %p111, %p112
      %p115 = scmp.ne.s32.totalorder %s100, %s114
      %p116 = scmp.eq.s32.totalorder %s27, 0
      %p117 = por %p115, %p116
      %s119 = sadd.s32 %s118, 1
      %p122 = scmp.eq.s32.totalorder %s21, 1
      %p123 = scmp.ne.s32.totalorder %s118, %s120
      %p124 = scmp.eq.s32.totalorder %s21, 0
      %p125 = por %p123, %p124
      %p126 = scmp.ne.s32.totalorder %s118, %s120
      %p127 = scmp.eq.s32.totalorder %s26, 1
      %p128 = por %p126, %p127
      %p129 = scmp.ne.s32.totalorder %s120, %s121
      %p130 = scmp.eq.s32.totalorder %s26, 0
      %p131 = por %p129, %p130
      %p132 = scmp.ne.s32.totalorder %s120, %s121
      %p133 = scmp.eq.s32.totalorder %s27, 1
      %p134 = por %p132, %p133
      %p136 = scmp.ne.s32.totalorder %s121, %s135
      %p137 = scmp.eq.s32.totalorder %s27, 0
      %p138 = por %p136, %p137
      %s140 = sadd.s32 %s139, 1
      %p143 = scmp.eq.s32.totalorder %s21, 1
      %p144 = scmp.ne.s32.totalorder %s139, %s141
      %p145 = scmp.eq.s32.totalorder %s21, 0
      %p146 = por %p144, %p145
      %p147 = scmp.ne.s32.totalorder %s139, %s141
      %p148 = scmp.eq.s32.totalorder %s26, 1
      %p149 = por %p147, %p148
      %p150 = scmp.ne.s32.totalorder %s141, %s142
      %p151 = scmp.eq.s32.totalorder %s26, 0
      %p152 = por %p150, %p151
      %p153 = scmp.ne.s32.totalorder %s141, %s142
      %p154 = scmp.eq.s32.totalorder %s27, 1
      %p155 = por %p153, %p154
      %p157 = scmp.ne.s32.totalorder %s142, %s156
      %p158 = scmp.eq.s32.totalorder %s27, 0
      %p159 = por %p157, %p158
      %s161 = sadd.s32 %s160, 1
      %p164 = scmp.eq.s32.totalorder %s21, 1
      %p165 = scmp.ne.s32.totalorder %s160, %s162
      %p166 = scmp.eq.s32.totalorder %s21, 0
      %p167 = por %p165, %p166
      %p168 = scmp.ne.s32.totalorder %s160, %s162
      %p169 = scmp.eq.s32.totalorder %s26, 1
      %p170 = por %p168, %p169
      %p171 = scmp.ne.s32.totalorder %s162, %s163
      %p172 = scmp.eq.s32.totalorder %s26, 0
      %p173 = por %p171, %p172
      %p174 = scmp.ne.s32.totalorder %s162, %s163
      %p175 = scmp.eq.s32.totalorder %s27, 1
      %p176 = por %p174, %p175
      %p178 = scmp.ne.s32.totalorder %s163, %s177
      %p179 = scmp.eq.s32.totalorder %s27, 0
      %p180 = por %p178, %p179
      %s182 = sadd.s32 %s181, 1
      %p185 = scmp.eq.s32.totalorder %s21, 1
      %p186 = scmp.ne.s32.totalorder %s181, %s183
      %p187 = scmp.eq.s32.totalorder %s21, 0
      %p188 = por %p186, %p187
      %p189 = scmp.ne.s32.totalorder %s181, %s183
      %p190 = scmp.eq.s32.totalorder %s26, 1
      %p191 = por %p189, %p190
      %p192 = scmp.ne.s32.totalorder %s183, %s184
      %p193 = scmp.eq.s32.totalorder %s26, 0
      %p194 = por %p192, %p193
      %p195 = scmp.ne.s32.totalorder %s183, %s184
      %p196 = scmp.eq.s32.totalorder %s27, 1
      %p197 = por %p195, %p196
      %p199 = scmp.ne.s32.totalorder %s184, %s198
      %p200 = scmp.eq.s32.totalorder %s27, 0
      %p201 = por %p199, %p200
      %s203 = sadd.s32 %s202, 1
      %p206 = scmp.eq.s32.totalorder %s21, 1
      %p207 = scmp.ne.s32.totalorder %s202, %s204
      %p208 = scmp.eq.s32.totalorder %s21, 0
      %p209 = por %p207, %p208
      %p210 = scmp.ne.s32.totalorder %s202, %s204
      %p211 = scmp.eq.s32.totalorder %s26, 1
      %p212 = por %p210, %p211
      %p213 = scmp.ne.s32.totalorder %s204, %s205
      %p214 = scmp.eq.s32.totalorder %s26, 0
      %p215 = por %p213, %p214
      %p216 = scmp.ne.s32.totalorder %s204, %s205
      %p217 = scmp.eq.s32.totalorder %s27, 1
      %p218 = por %p216, %p217
      %p220 = scmp.ne.s32.totalorder %s205, %s219
      %p221 = scmp.eq.s32.totalorder %s27, 0
      %p222 = por %p220, %p221
      %s224 = sadd.s32 %s223, 1
      %p227 = scmp.eq.s32.totalorder %s21, 1
      %p228 = scmp.ne.s32.totalorder %s223, %s225
      %p229 = scmp.eq.s32.totalorder %s21, 0
      %p230 = por %p228, %p229
      %p231 = scmp.ne.s32.totalorder %s223, %s225
      %p232 = scmp.eq.s32.totalorder %s26, 1
      %p233 = por %p231, %p232
      %p234 = scmp.ne.s32.totalorder %s225, %s226
      %p235 = scmp.eq.s32.totalorder %s26, 0
      %p236 = por %p234, %p235
      %p237 = scmp.ne.s32.totalorder %s225, %s226
      %p238 = scmp.eq.s32.totalorder %s27, 1
      %p239 = por %p237, %p238
      %p241 = scmp.ne.s32.totalorder %s226, %s240
      %p242 = scmp.eq.s32.totalorder %s27, 0
      %p243 = por %p241, %p242
      %s244 = ssub.s32 %s21, %s28
      %p245 = scmp.eq.s32.totalorder %s244, 0
      %s247 = sadd.s32 %s246, 1
      %s248 = scalar_select %p245, %s246, %s247
      %p251 = pneg %p245
      %p252 = scmp.eq.s32.totalorder %s21, 1
      %p253 = por %p251, %p252
      %p254 = scmp.ne.s32.totalorder %s246, %s249
      %p255 = scmp.eq.s32.totalorder %s21, 0
      %p256 = por %p254, %p255
      %p257 = scmp.ne.s32.totalorder %s246, %s249
      %p258 = scmp.eq.s32.totalorder %s26, 1
      %p259 = por %p257, %p258
      %p260 = scmp.ne.s32.totalorder %s249, %s250
      %p261 = scmp.eq.s32.totalorder %s26, 0
      %p262 = por %p260, %p261
      %p263 = scmp.ne.s32.totalorder %s249, %s250
      %p264 = scmp.eq.s32.totalorder %s27, 1
      %p265 = por %p263, %p264
      %p267 = scmp.ne.s32.totalorder %s250, %s266
      %p268 = scmp.eq.s32.totalorder %s27, 0
      %p269 = por %p267, %p268
      %s270 = ssub.s32 %s21, %s28
      %p271 = scmp.eq.s32.totalorder %s270, 0
      %s273 = sadd.s32 %s272, 1
      %s274 = scalar_select %p271, %s272, %s273
      %p277 = pneg %p271
      %p278 = scmp.eq.s32.totalorder %s21, 1
      %p279 = por %p277, %p278
      %p280 = scmp.ne.s32.totalorder %s272, %s275
      %p281 = scmp.eq.s32.totalorder %s21, 0
      %p282 = por %p280, %p281
      %p283 = scmp.ne.s32.totalorder %s272, %s275
      %p284 = scmp.eq.s32.totalorder %s26, 1
      %p285 = por %p283, %p284
      %p286 = scmp.ne.s32.totalorder %s275, %s276
      %p287 = scmp.eq.s32.totalorder %s26, 0
      %p288 = por %p286, %p287
      %p289 = scmp.ne.s32.totalorder %s275, %s276
      %p290 = scmp.eq.s32.totalorder %s27, 1
      %p291 = por %p289, %p290
      %p293 = scmp.ne.s32.totalorder %s276, %s292
      %p294 = scmp.eq.s32.totalorder %s27, 0
      %p295 = por %p293, %p294
      %p296 = scmp.le.s32.totalorder 1, %s21
      %p297 = scmp.lt.s32.totalorder %s21, 3
      %p298 = pnand %p296, %p297
      %p299 = pneg %p298
      // Predicated region
      $region9: #{tpu_custom_call.1} parent=5 // pred_check
        _
      $region10: #{tpu_custom_call.1} parent=5 // pred_check_branch
        %301 = sbr.rel (%p298) target = $region12
      $region11: #{tpu_custom_call.1} parent=5 // pred_region
        %s302 = ssub.s32 %s21, 1
        // Predicated region
        $region13: #{tpu_custom_call.1} parent=11 // pred_check
          %p303 = pneg %p68
        $region14: #{tpu_custom_call.1} parent=11 // pred_check_branch
          %305 = sbr.rel (%p303) target = $region16
        $region15: #{tpu_custom_call.1} parent=11 // pred_region
          _
        $region16: #{tpu_custom_call.1} parent=11 // pred_fallthru
          _
        // Predicated region
        $region17: #{tpu_custom_call.1} parent=11 // pred_check
          %p306 = pneg %p89
        $region18: #{tpu_custom_call.1} parent=11 // pred_check_branch
          %308 = sbr.rel (%p306) target = $region20
        $region19: #{tpu_custom_call.1} parent=11 // pred_region
          _
        $region20: #{tpu_custom_call.1} parent=11 // pred_fallthru
          _
        // Predicated region
        $region21: #{tpu_custom_call.1} parent=11 // pred_check
          %p309 = pneg %p110
        $region22: #{tpu_custom_call.1} parent=11 // pred_check_branch
          %311 = sbr.rel (%p309) target = $region24
        $region23: #{tpu_custom_call.1} parent=11 // pred_region
          _
        $region24: #{tpu_custom_call.1} parent=11 // pred_fallthru
          _
        // Predicated region
        $region25: #{tpu_custom_call.1} parent=11 // pred_check
          %p312 = pneg %p131
        $region26: #{tpu_custom_call.1} parent=11 // pred_check_branch
          %314 = sbr.rel (%p312) target = $region28
        $region27: #{tpu_custom_call.1} parent=11 // pred_region
          _
        $region28: #{tpu_custom_call.1} parent=11 // pred_fallthru
          _
        // Predicated region
        $region29: #{tpu_custom_call.1} parent=11 // pred_check
          %p315 = pneg %p152
        $region30: #{tpu_custom_call.1} parent=11 // pred_check_branch
          %317 = sbr.rel (%p315) target = $region32
        $region31: #{tpu_custom_call.1} parent=11 // pred_region
          _
        $region32: #{tpu_custom_call.1} parent=11 // pred_fallthru
          _
        // Predicated region
        $region33: #{tpu_custom_call.1} parent=11 // pred_check
          %p318 = pneg %p173
        $region34: #{tpu_custom_call.1} parent=11 // pred_check_branch
          %320 = sbr.rel (%p318) target = $region36
        $region35: #{tpu_custom_call.1} parent=11 // pred_region
          _
        $region36: #{tpu_custom_call.1} parent=11 // pred_fallthru
          _
        // Predicated region
        $region37: #{tpu_custom_call.1} parent=11 // pred_check
          %p321 = pneg %p194
        $region38: #{tpu_custom_call.1} parent=11 // pred_check_branch
          %323 = sbr.rel (%p321) target = $region40
        $region39: #{tpu_custom_call.1} parent=11 // pred_region
          _
        $region40: #{tpu_custom_call.1} parent=11 // pred_fallthru
          _
        // Predicated region
        $region41: #{tpu_custom_call.1} parent=11 // pred_check
          %p324 = pneg %p215
        $region42: #{tpu_custom_call.1} parent=11 // pred_check_branch
          %326 = sbr.rel (%p324) target = $region44
        $region43: #{tpu_custom_call.1} parent=11 // pred_region
          _
        $region44: #{tpu_custom_call.1} parent=11 // pred_fallthru
          _
        // Predicated region
        $region45: #{tpu_custom_call.1} parent=11 // pred_check
          %p327 = pneg %p236
        $region46: #{tpu_custom_call.1} parent=11 // pred_check_branch
          %329 = sbr.rel (%p327) target = $region48
        $region47: #{tpu_custom_call.1} parent=11 // pred_region
          _
        $region48: #{tpu_custom_call.1} parent=11 // pred_fallthru
          _
      $region12: #{tpu_custom_call.1} parent=5 // pred_fallthru
        _
      %p330 = scmp.lt.s32.totalorder %s21, 2
      // Predicated region
      $region49: #{tpu_custom_call.1} parent=5 // pred_check
        %p331 = pneg %p330
      $region50: #{tpu_custom_call.1} parent=5 // pred_check_branch
        %333 = sbr.rel (%p331) target = $region52
      $region51: #{tpu_custom_call.1} parent=5 // pred_region
        // Predicated region
        $region53: #{tpu_custom_call.1} parent=51 // pred_check
          %p334 = pneg %p41
        $region54: #{tpu_custom_call.1} parent=51 // pred_check_branch
          %336 = sbr.rel (%p334) target = $region56
        $region55: #{tpu_custom_call.1} parent=51 // pred_region
          %p337 = scmp.lt.s32.totalorder %s21, 1
          %s338 = scalar_select %p337, %s21, 1
          %s339 = smul.addr %s338, 54
          %s340 = smul.addr %s339, 4
          %s341 = scalar_lea.vmem %s0, %s340
        $region56: #{tpu_custom_call.1} parent=51 // pred_fallthru
          _
      $region52: #{tpu_custom_call.1} parent=5 // pred_fallthru
        _
      %p342 = scmp.le.s32.totalorder 1, %s21
      %p343 = scmp.lt.s32.totalorder %s21, 3
      %p344 = pnand %p342, %p343
      %p345 = pneg %p344
      // Predicated region
      $region57: #{tpu_custom_call.1} parent=5 // pred_check
        _
      $region58: #{tpu_custom_call.1} parent=5 // pred_check_branch
        %347 = sbr.rel (%p344) target = $region60
      $region59: #{tpu_custom_call.1} parent=5 // pred_region
        %s348 = ssub.s32 %s21, 1
        %p349 = scmp.lt.s32.totalorder %s26, 1
        %s350 = scalar_select %p349, %s26, 1
        %s351 = smul.addr %s350, 54
        %s352 = smul.addr %s351, 4
        %s353 = scalar_lea.vmem %s0, %s352
        %p354 = pneg %p47
        %p355 = pneg %p44
        %p356 = pneg %p68
        %p357 = pneg %p65
        %p358 = pneg %p89
        %p359 = pneg %p86
        %p360 = pneg %p110
        %p361 = pneg %p107
        %p362 = pneg %p131
        %p363 = pneg %p128
        %p364 = pneg %p152
        %p365 = pneg %p149
        %p366 = pneg %p173
        %p367 = pneg %p170
        %p368 = pneg %p194
        %p369 = pneg %p191
        %p370 = pneg %p215
        %p371 = pneg %p212
        %p372 = pneg %p236
        %p373 = pneg %p233
        %p374 = pneg %p262
        %p375 = pneg %p259
        %p376 = scmp.lt.s32.totalorder %s26, 1
        %s377 = scalar_select %p376, %s26, 1
        %s378 = smul.addr %s377, 32
        %s379 = smul.addr %s378, 4
        %s380 = scalar_lea.vmem %s10, %s379
        %p381 = pneg %p288
        %p382 = pneg %p285
        %s383 = sand.u32 %s275, 1
        %s384 = scalar_lea.sflag [#allocation4], %s383
        %s385 = sand.u32 %s275, 1
        %s386 = scalar_lea.vmem [#allocation3], %s385
        %p387 = scmp.lt.s32.totalorder %s26, 1
        %s388 = scalar_select %p387, %s26, 1
        %s389 = smul.addr %s388, 54
        %s390 = smul.addr %s389, 4
        %s391 = scalar_lea.vmem %s0, %s390
        %p392 = scmp.lt.s32.totalorder %s26, 1
        %s393 = scalar_select %p392, %s26, 1
        %s394 = smul.addr %s393, 32
        %s395 = smul.addr %s394, 4
        %s396 = scalar_lea.vmem %s10, %s395
        %v398 = vld [vmem:[%s391] sm:$0xf]
        %v399 = vld [vmem:[%s391 + $0x4] sm:$0xf]
        %v400 = vld [vmem:[%s391 + $0x8] sm:$0x1]
        %v401 = vld [vmem:[%s391 + $0xc] sm:$0xf]
        %v402 = vld [vmem:[%s391 + $0x10] sm:$0xf]
        %v403 = vld [vmem:[%s391 + $0x14] sm:$0x1]
        %v404 = vld [vmem:[%s391 + $0x18] sm:$0xf]
        %v405 = vld [vmem:[%s391 + $0x1c] sm:$0xf]
        %v406 = vld [vmem:[%s391 + $0x20] sm:$0x1]
        %v407 = vld [vmem:[%s391 + $0x24] sm:$0xf]
        %v408 = vld [vmem:[%s391 + $0x28] sm:$0xf]
        %v409 = vld [vmem:[%s391 + $0x2c] sm:$0x1]
        %v410 = vld [vmem:[%s391 + $0x30] sm:$0xf]
        %v411 = vld [vmem:[%s391 + $0x34] sm:$0xf]
        %v412 = vld [vmem:[%s391 + $0x38] sm:$0x1]
        %v413 = vld [vmem:[%s391 + $0x3c] sm:$0xf]
        %v414 = vld [vmem:[%s391 + $0x40] sm:$0xf]
        %v415 = vld [vmem:[%s391 + $0x44] sm:$0x1]
        %v416 = vld [vmem:[%s391 + $0x48] sm:$0xf]
        %v417 = vld [vmem:[%s391 + $0x4c] sm:$0xf]
        %v418 = vld [vmem:[%s391 + $0x50] sm:$0x1]
        %v419 = vld [vmem:[%s391 + $0x54] sm:$0xf]
        %v420 = vld [vmem:[%s391 + $0x58] sm:$0xf]
        %v421 = vld [vmem:[%s391 + $0x5c] sm:$0x1]
        %v422 = vld [vmem:[%s391 + $0x60] sm:$0xf]
        %v423 = vld [vmem:[%s391 + $0x64] sm:$0xf]
        %v424 = vld [vmem:[%s391 + $0x68] sm:$0x1]
        %v425 = vld [vmem:[%s391 + $0x6c] sm:$0xf]
        %v426 = vld [vmem:[%s391 + $0x70] sm:$0xf]
        %v427 = vld [vmem:[%s391 + $0x74] sm:$0x1]
        %v428 = vld [vmem:[%s391 + $0x78] sm:$0xf]
        %v429 = vld [vmem:[%s391 + $0x7c] sm:$0xf]
        %v430 = vld [vmem:[%s391 + $0x80] sm:$0x1]
        %v431 = vld [vmem:[%s391 + $0x84] sm:$0xf]
        %v432 = vld [vmem:[%s391 + $0x88] sm:$0xf]
        %v433 = vld [vmem:[%s391 + $0x8c] sm:$0x1]
        %v434 = vld [vmem:[%s391 + $0x90] sm:$0xf]
        %v435 = vld [vmem:[%s391 + $0x94] sm:$0xf]
        %v436 = vld [vmem:[%s391 + $0x98] sm:$0x1]
        %v437 = vld [vmem:[%s391 + $0x9c] sm:$0xf]
        %v438 = vld [vmem:[%s391 + $0xa0] sm:$0xf]
        %v439 = vld [vmem:[%s391 + $0xa4] sm:$0x1]
        %v440 = vld [vmem:[%s391 + $0xa8] sm:$0xf]
        %v441 = vld [vmem:[%s391 + $0xac] sm:$0xf]
        %v442 = vld [vmem:[%s391 + $0xb0] sm:$0x1]
        %v443 = vld [vmem:[%s391 + $0xb4] sm:$0xf]
        %v444 = vld [vmem:[%s391 + $0xb8] sm:$0xf]
        %v445 = vld [vmem:[%s391 + $0xbc] sm:$0x1]
        %v446 = vld [vmem:[%s391 + $0xc0] sm:$0xf]
        %v447 = vld [vmem:[%s391 + $0xc4] sm:$0xf]
        %v448 = vld [vmem:[%s391 + $0xc8] sm:$0x1]
        %v449 = vld [vmem:[%s391 + $0xcc] sm:$0xf]
        %v450 = vld [vmem:[%s391 + $0xd0] sm:$0xf]
        %v451 = vld [vmem:[%s391 + $0xd4] sm:$0x1]
        %vm452 = vsmask.f32 3328
        %vm453 = vsmask.f32 7440
        %vm454 = vmor %vm452, %vm453
        %v456 = vshrl.u32 %v398, 16
        %v458 = vrot.slane %v456, 4
        %v459 = vshll.u32 %v398, 16
        %v461 = vrot.slane %v459, 5
        %v462 = vor.u32 %v458, %v461
        %v463 = vrot.slane %v462, 4
        %v465 = vshll.u32 %v399, 16
        %v467 = vrot.slane %v465, 5
        %v468 = vsel %vm454, %v463, %v467
        %v469 = vshrl.u32 %v399, 16
        %v471 = vrot.slane %v469, 4
        %v472 = vor.u32 %v471, %v467
        %v473 = vrot.slane %v472, 4
        %v475 = vshll.u32 %v400, 16
        %v477 = vrot.slane %v475, 5
        %v478 = vsel %vm454, %v473, %v477
        %v480 = vshrl.u32 %v401, 16
        %v482 = vrot.slane %v480, 4
        %v483 = vshll.u32 %v401, 16
        %v485 = vrot.slane %v483, 5
        %v486 = vor.u32 %v482, %v485
        %v487 = vrot.slane %v486, 4
        %v489 = vshll.u32 %v402, 16
        %v491 = vrot.slane %v489, 5
        %v492 = vsel %vm454, %v487, %v491
        %v493 = vshrl.u32 %v402, 16
        %v495 = vrot.slane %v493, 4
        %v496 = vor.u32 %v495, %v491
        %v497 = vrot.slane %v496, 4
        %v499 = vshll.u32 %v403, 16
        %v501 = vrot.slane %v499, 5
        %v502 = vsel %vm454, %v497, %v501
        %v504 = vshrl.u32 %v404, 16
        %v506 = vrot.slane %v504, 4
        %v507 = vshll.u32 %v404, 16
        %v509 = vrot.slane %v507, 5
        %v510 = vor.u32 %v506, %v509
        %v511 = vrot.slane %v510, 4
        %v513 = vshll.u32 %v405, 16
        %v515 = vrot.slane %v513, 5
        %v516 = vsel %vm454, %v511, %v515
        %v517 = vshrl.u32 %v405, 16
        %v519 = vrot.slane %v517, 4
        %v520 = vor.u32 %v519, %v515
        %v521 = vrot.slane %v520, 4
        %v523 = vshll.u32 %v406, 16
        %v525 = vrot.slane %v523, 5
        %v526 = vsel %vm454, %v521, %v525
        %v528 = vshrl.u32 %v407, 16
        %v530 = vrot.slane %v528, 4
        %v531 = vshll.u32 %v407, 16
        %v533 = vrot.slane %v531, 5
        %v534 = vor.u32 %v530, %v533
        %v535 = vrot.slane %v534, 4
        %v537 = vshll.u32 %v408, 16
        %v539 = vrot.slane %v537, 5
        %v540 = vsel %vm454, %v535, %v539
        %v541 = vshrl.u32 %v408, 16
        %v543 = vrot.slane %v541, 4
        %v544 = vor.u32 %v543, %v539
        %v545 = vrot.slane %v544, 4
        %v547 = vshll.u32 %v409, 16
        %v549 = vrot.slane %v547, 5
        %v550 = vsel %vm454, %v545, %v549
        %v552 = vshrl.u32 %v410, 16
        %v554 = vrot.slane %v552, 4
        %v555 = vshll.u32 %v410, 16
        %v557 = vrot.slane %v555, 5
        %v558 = vor.u32 %v554, %v557
        %v559 = vrot.slane %v558, 4
        %v561 = vshll.u32 %v411, 16
        %v563 = vrot.slane %v561, 5
        %v564 = vsel %vm454, %v559, %v563
        %v565 = vshrl.u32 %v411, 16
        %v567 = vrot.slane %v565, 4
        %v568 = vor.u32 %v567, %v563
        %v569 = vrot.slane %v568, 4
        %v571 = vshll.u32 %v412, 16
        %v573 = vrot.slane %v571, 5
        %v574 = vsel %vm454, %v569, %v573
        %v576 = vshrl.u32 %v413, 16
        %v578 = vrot.slane %v576, 4
        %v579 = vshll.u32 %v413, 16
        %v581 = vrot.slane %v579, 5
        %v582 = vor.u32 %v578, %v581
        %v583 = vrot.slane %v582, 4
        %v585 = vshll.u32 %v414, 16
        %v587 = vrot.slane %v585, 5
        %v588 = vsel %vm454, %v583, %v587
        %v589 = vshrl.u32 %v414, 16
        %v591 = vrot.slane %v589, 4
        %v592 = vor.u32 %v591, %v587
        %v593 = vrot.slane %v592, 4
        %v595 = vshll.u32 %v415, 16
        %v597 = vrot.slane %v595, 5
        %v598 = vsel %vm454, %v593, %v597
        %v600 = vshrl.u32 %v416, 16
        %v602 = vrot.slane %v600, 4
        %v603 = vshll.u32 %v416, 16
        %v605 = vrot.slane %v603, 5
        %v606 = vor.u32 %v602, %v605
        %v607 = vrot.slane %v606, 4
        %v609 = vshll.u32 %v417, 16
        %v611 = vrot.slane %v609, 5
        %v612 = vsel %vm454, %v607, %v611
        %v613 = vshrl.u32 %v417, 16
        %v615 = vrot.slane %v613, 4
        %v616 = vor.u32 %v615, %v611
        %v617 = vrot.slane %v616, 4
        %v619 = vshll.u32 %v418, 16
        %v621 = vrot.slane %v619, 5
        %v622 = vsel %vm454, %v617, %v621
        %v624 = vshrl.u32 %v419, 16
        %v626 = vrot.slane %v624, 4
        %v627 = vshll.u32 %v419, 16
        %v629 = vrot.slane %v627, 5
        %v630 = vor.u32 %v626, %v629
        %v631 = vrot.slane %v630, 4
        %v633 = vshll.u32 %v420, 16
        %v635 = vrot.slane %v633, 5
        %v636 = vsel %vm454, %v631, %v635
        %v637 = vshrl.u32 %v420, 16
        %v639 = vrot.slane %v637, 4
        %v640 = vor.u32 %v639, %v635
        %v641 = vrot.slane %v640, 4
        %v643 = vshll.u32 %v421, 16
        %v645 = vrot.slane %v643, 5
        %v646 = vsel %vm454, %v641, %v645
        %v648 = vshrl.u32 %v422, 16
        %v650 = vrot.slane %v648, 4
        %v651 = vshll.u32 %v422, 16
        %v653 = vrot.slane %v651, 5
        %v654 = vor.u32 %v650, %v653
        %v655 = vrot.slane %v654, 4
        %v657 = vshll.u32 %v423, 16
        %v659 = vrot.slane %v657, 5
        %v660 = vsel %vm454, %v655, %v659
        %v661 = vshrl.u32 %v423, 16
        %v663 = vrot.slane %v661, 4
        %v664 = vor.u32 %v663, %v659
        %v665 = vrot.slane %v664, 4
        %v667 = vshll.u32 %v424, 16
        %v669 = vrot.slane %v667, 5
        %v670 = vsel %vm454, %v665, %v669
        %v672 = vshrl.u32 %v425, 16
        %v674 = vrot.slane %v672, 4
        %v675 = vshll.u32 %v425, 16
        %v677 = vrot.slane %v675, 5
        %v678 = vor.u32 %v674, %v677
        %v679 = vrot.slane %v678, 4
        %v681 = vshll.u32 %v426, 16
        %v683 = vrot.slane %v681, 5
        %v684 = vsel %vm454, %v679, %v683
        %v685 = vshrl.u32 %v426, 16
        %v687 = vrot.slane %v685, 4
        %v688 = vor.u32 %v687, %v683
        %v689 = vrot.slane %v688, 4
        %v691 = vshll.u32 %v427, 16
        %v693 = vrot.slane %v691, 5
        %v694 = vsel %vm454, %v689, %v693
        %v696 = vshrl.u32 %v428, 16
        %v698 = vrot.slane %v696, 4
        %v699 = vshll.u32 %v428, 16
        %v701 = vrot.slane %v699, 5
        %v702 = vor.u32 %v698, %v701
        %v703 = vrot.slane %v702, 4
        %v705 = vshll.u32 %v429, 16
        %v707 = vrot.slane %v705, 5
        %v708 = vsel %vm454, %v703, %v707
        %v709 = vshrl.u32 %v429, 16
        %v711 = vrot.slane %v709, 4
        %v712 = vor.u32 %v711, %v707
        %v713 = vrot.slane %v712, 4
        %v715 = vshll.u32 %v430, 16
        %v717 = vrot.slane %v715, 5
        %v718 = vsel %vm454, %v713, %v717
        %v720 = vshrl.u32 %v431, 16
        %v722 = vrot.slane %v720, 4
        %v723 = vshll.u32 %v431, 16
        %v725 = vrot.slane %v723, 5
        %v726 = vor.u32 %v722, %v725
        %v727 = vrot.slane %v726, 4
        %v729 = vshll.u32 %v432, 16
        %v731 = vrot.slane %v729, 5
        %v732 = vsel %vm454, %v727, %v731
        %v733 = vshrl.u32 %v432, 16
        %v735 = vrot.slane %v733, 4
        %v736 = vor.u32 %v735, %v731
        %v737 = vrot.slane %v736, 4
        %v739 = vshll.u32 %v433, 16
        %v741 = vrot.slane %v739, 5
        %v742 = vsel %vm454, %v737, %v741
        %v744 = vshrl.u32 %v434, 16
        %v746 = vrot.slane %v744, 4
        %v747 = vshll.u32 %v434, 16
        %v749 = vrot.slane %v747, 5
        %v750 = vor.u32 %v746, %v749
        %v751 = vrot.slane %v750, 4
        %v753 = vshll.u32 %v435, 16
        %v755 = vrot.slane %v753, 5
        %v756 = vsel %vm454, %v751, %v755
        %v757 = vshrl.u32 %v435, 16
        %v759 = vrot.slane %v757, 4
        %v760 = vor.u32 %v759, %v755
        %v761 = vrot.slane %v760, 4
        %v763 = vshll.u32 %v436, 16
        %v765 = vrot.slane %v763, 5
        %v766 = vsel %vm454, %v761, %v765
        %v768 = vshrl.u32 %v437, 16
        %v770 = vrot.slane %v768, 4
        %v771 = vshll.u32 %v437, 16
        %v773 = vrot.slane %v771, 5
        %v774 = vor.u32 %v770, %v773
        %v775 = vrot.slane %v774, 4
        %v777 = vshll.u32 %v438, 16
        %v779 = vrot.slane %v777, 5
        %v780 = vsel %vm454, %v775, %v779
        %v781 = vshrl.u32 %v438, 16
        %v783 = vrot.slane %v781, 4
        %v784 = vor.u32 %v783, %v779
        %v785 = vrot.slane %v784, 4
        %v787 = vshll.u32 %v439, 16
        %v789 = vrot.slane %v787, 5
        %v790 = vsel %vm454, %v785, %v789
        %v792 = vshrl.u32 %v440, 16
        %v794 = vrot.slane %v792, 4
        %v795 = vshll.u32 %v440, 16
        %v797 = vrot.slane %v795, 5
        %v798 = vor.u32 %v794, %v797
        %v799 = vrot.slane %v798, 4
        %v801 = vshll.u32 %v441, 16
        %v803 = vrot.slane %v801, 5
        %v804 = vsel %vm454, %v799, %v803
        %v805 = vshrl.u32 %v441, 16
        %v807 = vrot.slane %v805, 4
        %v808 = vor.u32 %v807, %v803
        %v809 = vrot.slane %v808, 4
        %v811 = vshll.u32 %v442, 16
        %v813 = vrot.slane %v811, 5
        %v814 = vsel %vm454, %v809, %v813
        %v816 = vshrl.u32 %v443, 16
        %v818 = vrot.slane %v816, 4
        %v819 = vshll.u32 %v443, 16
        %v821 = vrot.slane %v819, 5
        %v822 = vor.u32 %v818, %v821
        %v823 = vrot.slane %v822, 4
        %v825 = vshll.u32 %v444, 16
        %v827 = vrot.slane %v825, 5
        %v828 = vsel %vm454, %v823, %v827
        %v829 = vshrl.u32 %v444, 16
        %v831 = vrot.slane %v829, 4
        %v832 = vor.u32 %v831, %v827
        %v833 = vrot.slane %v832, 4
        %v835 = vshll.u32 %v445, 16
        %v837 = vrot.slane %v835, 5
        %v838 = vsel %vm454, %v833, %v837
        %vm887 = vcmask 1042432
        %vm888 = vcmask 1046532
        %vm889 = vmor %vm887, %vm888
        %v890 = vrot.slane %v398, 5
        %v891 = vrot.slane %v890, 4
        %v892 = vrot.slane %v399, 5
        %v893 = vsel %vm889, %v891, %v892
        %v894 = vrot.slane %v892, 4
        %v895 = vrot.slane %v400, 5
        %v896 = vsel %vm889, %v894, %v895
        %v897 = vrot.slane %v401, 5
        %v898 = vrot.slane %v897, 4
        %v899 = vrot.slane %v402, 5
        %v900 = vsel %vm889, %v898, %v899
        %v901 = vrot.slane %v899, 4
        %v902 = vrot.slane %v403, 5
        %v903 = vsel %vm889, %v901, %v902
        %v904 = vrot.slane %v404, 5
        %v905 = vrot.slane %v904, 4
        %v906 = vrot.slane %v405, 5
        %v907 = vsel %vm889, %v905, %v906
        %v908 = vrot.slane %v906, 4
        %v909 = vrot.slane %v406, 5
        %v910 = vsel %vm889, %v908, %v909
        %v911 = vrot.slane %v407, 5
        %v912 = vrot.slane %v911, 4
        %v913 = vrot.slane %v408, 5
        %v914 = vsel %vm889, %v912, %v913
        %v915 = vrot.slane %v913, 4
        %v916 = vrot.slane %v409, 5
        %v917 = vsel %vm889, %v915, %v916
        %v918 = vrot.slane %v410, 5
        %v919 = vrot.slane %v918, 4
        %v920 = vrot.slane %v411, 5
        %v921 = vsel %vm889, %v919, %v920
        %v922 = vrot.slane %v920, 4
        %v923 = vrot.slane %v412, 5
        %v924 = vsel %vm889, %v922, %v923
        %v925 = vrot.slane %v413, 5
        %v926 = vrot.slane %v925, 4
        %v927 = vrot.slane %v414, 5
        %v928 = vsel %vm889, %v926, %v927
        %v929 = vrot.slane %v927, 4
        %v930 = vrot.slane %v415, 5
        %v931 = vsel %vm889, %v929, %v930
        %v932 = vrot.slane %v416, 5
        %v933 = vrot.slane %v932, 4
        %v934 = vrot.slane %v417, 5
        %v935 = vsel %vm889, %v933, %v934
        %v936 = vrot.slane %v934, 4
        %v937 = vrot.slane %v418, 5
        %v938 = vsel %vm889, %v936, %v937
        %v939 = vrot.slane %v419, 5
        %v940 = vrot.slane %v939, 4
        %v941 = vrot.slane %v420, 5
        %v942 = vsel %vm889, %v940, %v941
        %v943 = vrot.slane %v941, 4
        %v944 = vrot.slane %v421, 5
        %v945 = vsel %vm889, %v943, %v944
        %v946 = vrot.slane %v422, 5
        %v947 = vrot.slane %v946, 4
        %v948 = vrot.slane %v423, 5
        %v949 = vsel %vm889, %v947, %v948
        %v950 = vrot.slane %v948, 4
        %v951 = vrot.slane %v424, 5
        %v952 = vsel %vm889, %v950, %v951
        %v953 = vrot.slane %v425, 5
        %v954 = vrot.slane %v953, 4
        %v955 = vrot.slane %v426, 5
        %v956 = vsel %vm889, %v954, %v955
        %v957 = vrot.slane %v955, 4
        %v958 = vrot.slane %v427, 5
        %v959 = vsel %vm889, %v957, %v958
        %v960 = vrot.slane %v428, 5
        %v961 = vrot.slane %v960, 4
        %v962 = vrot.slane %v429, 5
        %v963 = vsel %vm889, %v961, %v962
        %v964 = vrot.slane %v962, 4
        %v965 = vrot.slane %v430, 5
        %v966 = vsel %vm889, %v964, %v965
        %v967 = vrot.slane %v431, 5
        %v968 = vrot.slane %v967, 4
        %v969 = vrot.slane %v432, 5
        %v970 = vsel %vm889, %v968, %v969
        %v971 = vrot.slane %v969, 4
        %v972 = vrot.slane %v433, 5
        %v973 = vsel %vm889, %v971, %v972
        %v974 = vrot.slane %v434, 5
        %v975 = vrot.slane %v974, 4
        %v976 = vrot.slane %v435, 5
        %v977 = vsel %vm889, %v975, %v976
        %v978 = vrot.slane %v976, 4
        %v979 = vrot.slane %v436, 5
        %v980 = vsel %vm889, %v978, %v979
        %v981 = vrot.slane %v437, 5
        %v982 = vrot.slane %v981, 4
        %v983 = vrot.slane %v438, 5
        %v984 = vsel %vm889, %v982, %v983
        %v985 = vrot.slane %v983, 4
        %v986 = vrot.slane %v439, 5
        %v987 = vsel %vm889, %v985, %v986
        %v988 = vrot.slane %v440, 5
        %v989 = vrot.slane %v988, 4
        %v990 = vrot.slane %v441, 5
        %v991 = vsel %vm889, %v989, %v990
        %v992 = vrot.slane %v990, 4
        %v993 = vrot.slane %v442, 5
        %v994 = vsel %vm889, %v992, %v993
        %v995 = vrot.slane %v443, 5
        %v996 = vrot.slane %v995, 4
        %v997 = vrot.slane %v444, 5
        %v998 = vsel %vm889, %v996, %v997
        %v999 = vrot.slane %v997, 4
        %v1000 = vrot.slane %v445, 5
        %v1001 = vsel %vm889, %v999, %v1000
        %v1003 = vshrl.u32 %v446, 16
        %v1005 = vrot.slane %v1003, 4
        %v1006 = vshll.u32 %v446, 16
        %v1008 = vrot.slane %v1006, 5
        %v1009 = vor.u32 %v1005, %v1008
        %v1010 = vrot.slane %v1009, 4
        %v1012 = vshll.u32 %v447, 16
        %v1014 = vrot.slane %v1012, 5
        %v1015 = vsel %vm454, %v1010, %v1014
        %v1016 = vshrl.u32 %v447, 16
        %v1018 = vrot.slane %v1016, 4
        %v1019 = vor.u32 %v1018, %v1014
        %v1020 = vrot.slane %v1019, 4
        %v1022 = vshll.u32 %v448, 16
        %v1024 = vrot.slane %v1022, 5
        %v1025 = vsel %vm454, %v1020, %v1024
        %v1029 = vrot.slane %v446, 5
        %v1030 = vrot.slane %v1029, 4
        %v1031 = vrot.slane %v447, 5
        %v1032 = vsel %vm889, %v1030, %v1031
        %v1033 = vrot.slane %v1031, 4
        %v1034 = vrot.slane %v448, 5
        %v1035 = vsel %vm889, %v1033, %v1034
        %v1037 = vshrl.u32 %v449, 16
        %v1039 = vrot.slane %v1037, 4
        %v1040 = vshll.u32 %v449, 16
        %v1042 = vrot.slane %v1040, 5
        %v1043 = vor.u32 %v1039, %v1042
        %v1044 = vrot.slane %v1043, 4
        %v1046 = vshll.u32 %v450, 16
        %v1048 = vrot.slane %v1046, 5
        %v1049 = vsel %vm454, %v1044, %v1048
        %v1050 = vshrl.u32 %v450, 16
        %v1052 = vrot.slane %v1050, 4
        %v1053 = vor.u32 %v1052, %v1048
        %v1054 = vrot.slane %v1053, 4
        %v1056 = vshll.u32 %v451, 16
        %v1058 = vrot.slane %v1056, 5
        %v1059 = vsel %vm454, %v1054, %v1058
        %v1063 = vrot.slane %v449, 5
        %v1064 = vrot.slane %v1063, 4
        %v1065 = vrot.slane %v450, 5
        %v1066 = vsel %vm889, %v1064, %v1065
        %v1067 = vrot.slane %v1065, 4
        %v1068 = vrot.slane %v451, 5
        %v1069 = vsel %vm889, %v1067, %v1068
        %v1070 = vunpack.c.l.b16 %v398
        %v1071 = vunpack.c.l.b16 %v399
        %v1072 = vunpack.c.l.b16 %v401
        %v1073 = vunpack.c.l.b16 %v402
        %v1074 = vunpack.c.l.b16 %v404
        %v1075 = vunpack.c.l.b16 %v405
        %v1076 = vunpack.c.l.b16 %v407
        %v1077 = vunpack.c.l.b16 %v408
        %v1078 = vunpack.c.l.b16 %v410
        %v1079 = vunpack.c.l.b16 %v411
        %v1080 = vunpack.c.l.b16 %v413
        %v1081 = vunpack.c.l.b16 %v414
        %v1082 = vunpack.c.l.b16 %v416
        %v1083 = vunpack.c.l.b16 %v417
        %v1084 = vunpack.c.l.b16 %v419
        %v1085 = vunpack.c.l.b16 %v420
        %v1086 = vunpack.c.l.b16 %v422
        %v1087 = vunpack.c.l.b16 %v423
        %v1088 = vunpack.c.l.b16 %v425
        %v1089 = vunpack.c.l.b16 %v426
        %v1090 = vunpack.c.l.b16 %v428
        %v1091 = vunpack.c.l.b16 %v429
        %v1092 = vunpack.c.l.b16 %v431
        %v1093 = vunpack.c.l.b16 %v432
        %v1094 = vunpack.c.l.b16 %v434
        %v1095 = vunpack.c.l.b16 %v435
        %v1096 = vunpack.c.l.b16 %v437
        %v1097 = vunpack.c.l.b16 %v438
        %v1098 = vunpack.c.l.b16 %v440
        %v1099 = vunpack.c.l.b16 %v441
        %v1100 = vunpack.c.l.b16 %v443
        %v1101 = vunpack.c.l.b16 %v444
        %v1102 = vpack.c.b16 %v1071, %v1070
        %v1103 = vpack.c.b16 %v1073, %v1072
        %v1104 = vpack.c.b16 %v1075, %v1074
        %v1105 = vpack.c.b16 %v1077, %v1076
        %v1106 = vpack.c.b16 %v1079, %v1078
        %v1107 = vpack.c.b16 %v1081, %v1080
        %v1108 = vpack.c.b16 %v1083, %v1082
        %v1109 = vpack.c.b16 %v1085, %v1084
        %v1110 = vpack.c.b16 %v1087, %v1086
        %v1111 = vpack.c.b16 %v1089, %v1088
        %v1112 = vpack.c.b16 %v1091, %v1090
        %v1113 = vpack.c.b16 %v1093, %v1092
        %v1114 = vpack.c.b16 %v1095, %v1094
        %v1115 = vpack.c.b16 %v1097, %v1096
        %v1116 = vpack.c.b16 %v1099, %v1098
        %v1117 = vpack.c.b16 %v1101, %v1100
        %v1118 = vunpack.c.l.b16 %v468
        %v1119 = vunpack.c.l.b16 %v478
        %v1120 = vunpack.c.l.b16 %v492
        %v1121 = vunpack.c.l.b16 %v502
        %v1122 = vunpack.c.l.b16 %v516
        %v1123 = vunpack.c.l.b16 %v526
        %v1124 = vunpack.c.l.b16 %v540
        %v1125 = vunpack.c.l.b16 %v550
        %v1126 = vunpack.c.l.b16 %v564
        %v1127 = vunpack.c.l.b16 %v574
        %v1128 = vunpack.c.l.b16 %v588
        %v1129 = vunpack.c.l.b16 %v598
        %v1130 = vunpack.c.l.b16 %v612
        %v1131 = vunpack.c.l.b16 %v622
        %v1132 = vunpack.c.l.b16 %v636
        %v1133 = vunpack.c.l.b16 %v646
        %v1134 = vunpack.c.l.b16 %v660
        %v1135 = vunpack.c.l.b16 %v670
        %v1136 = vunpack.c.l.b16 %v684
        %v1137 = vunpack.c.l.b16 %v694
        %v1138 = vunpack.c.l.b16 %v708
        %v1139 = vunpack.c.l.b16 %v718
        %v1140 = vunpack.c.l.b16 %v732
        %v1141 = vunpack.c.l.b16 %v742
        %v1142 = vunpack.c.l.b16 %v756
        %v1143 = vunpack.c.l.b16 %v766
        %v1144 = vunpack.c.l.b16 %v780
        %v1145 = vunpack.c.l.b16 %v790
        %v1146 = vunpack.c.l.b16 %v804
        %v1147 = vunpack.c.l.b16 %v814
        %v1148 = vunpack.c.l.b16 %v828
        %v1149 = vunpack.c.l.b16 %v838
        %v1150 = vpack.c.b16 %v1119, %v1118
        %v1151 = vpack.c.b16 %v1121, %v1120
        %v1152 = vpack.c.b16 %v1123, %v1122
        %v1153 = vpack.c.b16 %v1125, %v1124
        %v1154 = vpack.c.b16 %v1127, %v1126
        %v1155 = vpack.c.b16 %v1129, %v1128
        %v1156 = vpack.c.b16 %v1131, %v1130
        %v1157 = vpack.c.b16 %v1133, %v1132
        %v1158 = vpack.c.b16 %v1135, %v1134
        %v1159 = vpack.c.b16 %v1137, %v1136
        %v1160 = vpack.c.b16 %v1139, %v1138
        %v1161 = vpack.c.b16 %v1141, %v1140
        %v1162 = vpack.c.b16 %v1143, %v1142
        %v1163 = vpack.c.b16 %v1145, %v1144
        %v1164 = vpack.c.b16 %v1147, %v1146
        %v1165 = vpack.c.b16 %v1149, %v1148
        %1166 = vrot.lane.b32.xlu0 %v1150, 4
        %v1167 = vpop.permute.xlu0 %1166
        %1168 = vrot.lane.b32.xlu0 %v1151, 4
        %v1169 = vpop.permute.xlu0 %1168
        %1170 = vrot.lane.b32.xlu0 %v1152, 4
        %v1171 = vpop.permute.xlu0 %1170
        %1172 = vrot.lane.b32.xlu0 %v1153, 4
        %v1173 = vpop.permute.xlu0 %1172
        %1174 = vrot.lane.b32.xlu0 %v1154, 4
        %v1175 = vpop.permute.xlu0 %1174
        %1176 = vrot.lane.b32.xlu0 %v1155, 4
        %v1177 = vpop.permute.xlu0 %1176
        %1178 = vrot.lane.b32.xlu0 %v1156, 4
        %v1179 = vpop.permute.xlu0 %1178
        %1180 = vrot.lane.b32.xlu0 %v1157, 4
        %v1181 = vpop.permute.xlu0 %1180
        %1182 = vrot.lane.b32.xlu0 %v1158, 4
        %v1183 = vpop.permute.xlu0 %1182
        %1184 = vrot.lane.b32.xlu0 %v1159, 4
        %v1185 = vpop.permute.xlu0 %1184
        %1186 = vrot.lane.b32.xlu0 %v1160, 4
        %v1187 = vpop.permute.xlu0 %1186
        %1188 = vrot.lane.b32.xlu0 %v1161, 4
        %v1189 = vpop.permute.xlu0 %1188
        %1190 = vrot.lane.b32.xlu0 %v1162, 4
        %v1191 = vpop.permute.xlu0 %1190
        %1192 = vrot.lane.b32.xlu0 %v1163, 4
        %v1193 = vpop.permute.xlu0 %1192
        %1194 = vrot.lane.b32.xlu0 %v1164, 4
        %v1195 = vpop.permute.xlu0 %1194
        %1196 = vrot.lane.b32.xlu0 %v1165, 4
        %v1197 = vpop.permute.xlu0 %1196
        %v1198 = vunpack.c.l.b16 %v893
        %v1199 = vunpack.c.l.b16 %v896
        %v1200 = vunpack.c.l.b16 %v900
        %v1201 = vunpack.c.l.b16 %v903
        %v1202 = vunpack.c.l.b16 %v907
        %v1203 = vunpack.c.l.b16 %v910
        %v1204 = vunpack.c.l.b16 %v914
        %v1205 = vunpack.c.l.b16 %v917
        %v1206 = vunpack.c.l.b16 %v921
        %v1207 = vunpack.c.l.b16 %v924
        %v1208 = vunpack.c.l.b16 %v928
        %v1209 = vunpack.c.l.b16 %v931
        %v1210 = vunpack.c.l.b16 %v935
        %v1211 = vunpack.c.l.b16 %v938
        %v1212 = vunpack.c.l.b16 %v942
        %v1213 = vunpack.c.l.b16 %v945
        %v1214 = vunpack.c.l.b16 %v949
        %v1215 = vunpack.c.l.b16 %v952
        %v1216 = vunpack.c.l.b16 %v956
        %v1217 = vunpack.c.l.b16 %v959
        %v1218 = vunpack.c.l.b16 %v963
        %v1219 = vunpack.c.l.b16 %v966
        %v1220 = vunpack.c.l.b16 %v970
        %v1221 = vunpack.c.l.b16 %v973
        %v1222 = vunpack.c.l.b16 %v977
        %v1223 = vunpack.c.l.b16 %v980
        %v1224 = vunpack.c.l.b16 %v984
        %v1225 = vunpack.c.l.b16 %v987
        %v1226 = vunpack.c.l.b16 %v991
        %v1227 = vunpack.c.l.b16 %v994
        %v1228 = vunpack.c.l.b16 %v998
        %v1229 = vunpack.c.l.b16 %v1001
        %v1230 = vpack.c.b16 %v1199, %v1198
        %v1231 = vpack.c.b16 %v1201, %v1200
        %v1232 = vpack.c.b16 %v1203, %v1202
        %v1233 = vpack.c.b16 %v1205, %v1204
        %v1234 = vpack.c.b16 %v1207, %v1206
        %v1235 = vpack.c.b16 %v1209, %v1208
        %v1236 = vpack.c.b16 %v1211, %v1210
        %v1237 = vpack.c.b16 %v1213, %v1212
        %v1238 = vpack.c.b16 %v1215, %v1214
        %v1239 = vpack.c.b16 %v1217, %v1216
        %v1240 = vpack.c.b16 %v1219, %v1218
        %v1241 = vpack.c.b16 %v1221, %v1220
        %v1242 = vpack.c.b16 %v1223, %v1222
        %v1243 = vpack.c.b16 %v1225, %v1224
        %v1244 = vpack.c.b16 %v1227, %v1226
        %v1245 = vpack.c.b16 %v1229, %v1228
        %1246 = vrot.lane.b32.xlu0 %v1230, 8
        %v1247 = vpop.permute.xlu0 %1246
        %1248 = vrot.lane.b32.xlu0 %v1231, 8
        %v1249 = vpop.permute.xlu0 %1248
        %1250 = vrot.lane.b32.xlu0 %v1232, 8
        %v1251 = vpop.permute.xlu0 %1250
        %1252 = vrot.lane.b32.xlu0 %v1233, 8
        %v1253 = vpop.permute.xlu0 %1252
        %1254 = vrot.lane.b32.xlu0 %v1234, 8
        %v1255 = vpop.permute.xlu0 %1254
        %1256 = vrot.lane.b32.xlu0 %v1235, 8
        %v1257 = vpop.permute.xlu0 %1256
        %1258 = vrot.lane.b32.xlu0 %v1236, 8
        %v1259 = vpop.permute.xlu0 %1258
        %1260 = vrot.lane.b32.xlu0 %v1237, 8
        %v1261 = vpop.permute.xlu0 %1260
        %1262 = vrot.lane.b32.xlu0 %v1238, 8
        %v1263 = vpop.permute.xlu0 %1262
        %1264 = vrot.lane.b32.xlu0 %v1239, 8
        %v1265 = vpop.permute.xlu0 %1264
        %1266 = vrot.lane.b32.xlu0 %v1240, 8
        %v1267 = vpop.permute.xlu0 %1266
        %1268 = vrot.lane.b32.xlu0 %v1241, 8
        %v1269 = vpop.permute.xlu0 %1268
        %1270 = vrot.lane.b32.xlu0 %v1242, 8
        %v1271 = vpop.permute.xlu0 %1270
        %1272 = vrot.lane.b32.xlu0 %v1243, 8
        %v1273 = vpop.permute.xlu0 %1272
        %1274 = vrot.lane.b32.xlu0 %v1244, 8
        %v1275 = vpop.permute.xlu0 %1274
        %1276 = vrot.lane.b32.xlu0 %v1245, 8
        %v1277 = vpop.permute.xlu0 %1276
        %v1278 = vunpack.c.l.b16 %v446
        %v1279 = vunpack.c.l.b16 %v447
        %v1280 = vpack.c.b16 %v1279, %v1278
        %1281 = vrot.lane.b32.xlu0 %v1103, 12
        %v1282 = vpop.permute.xlu0 %1281
        %1283 = vrot.lane.b32.xlu0 %v1104, 12
        %v1284 = vpop.permute.xlu0 %1283
        %1285 = vrot.lane.b32.xlu0 %v1105, 12
        %v1286 = vpop.permute.xlu0 %1285
        %1287 = vrot.lane.b32.xlu0 %v1106, 12
        %v1288 = vpop.permute.xlu0 %1287
        %1289 = vrot.lane.b32.xlu0 %v1107, 12
        %v1290 = vpop.permute.xlu0 %1289
        %1291 = vrot.lane.b32.xlu0 %v1108, 12
        %v1292 = vpop.permute.xlu0 %1291
        %1293 = vrot.lane.b32.xlu0 %v1109, 12
        %v1294 = vpop.permute.xlu0 %1293
        %1295 = vrot.lane.b32.xlu0 %v1110, 12
        %v1296 = vpop.permute.xlu0 %1295
        %1297 = vrot.lane.b32.xlu0 %v1111, 12
        %v1298 = vpop.permute.xlu0 %1297
        %1299 = vrot.lane.b32.xlu0 %v1112, 12
        %v1300 = vpop.permute.xlu0 %1299
        %1301 = vrot.lane.b32.xlu0 %v1113, 12
        %v1302 = vpop.permute.xlu0 %1301
        %1303 = vrot.lane.b32.xlu0 %v1114, 12
        %v1304 = vpop.permute.xlu0 %1303
        %1305 = vrot.lane.b32.xlu0 %v1115, 12
        %v1306 = vpop.permute.xlu0 %1305
        %1307 = vrot.lane.b32.xlu0 %v1116, 12
        %v1308 = vpop.permute.xlu0 %1307
        %1309 = vrot.lane.b32.xlu0 %v1117, 12
        %v1310 = vpop.permute.xlu0 %1309
        %1311 = vrot.lane.b32.xlu0 %v1280, 12
        %v1312 = vpop.permute.xlu0 %1311
        %v1313 = vunpack.c.l.b16 %v1015
        %v1314 = vunpack.c.l.b16 %v1025
        %v1315 = vpack.c.b16 %v1314, %v1313
        %1316 = vrot.lane.b32.xlu0 %v1151, 16
        %v1317 = vpop.permute.xlu0 %1316
        %1318 = vrot.lane.b32.xlu0 %v1152, 16
        %v1319 = vpop.permute.xlu0 %1318
        %1320 = vrot.lane.b32.xlu0 %v1153, 16
        %v1321 = vpop.permute.xlu0 %1320
        %1322 = vrot.lane.b32.xlu0 %v1154, 16
        %v1323 = vpop.permute.xlu0 %1322
        %1324 = vrot.lane.b32.xlu0 %v1155, 16
        %v1325 = vpop.permute.xlu0 %1324
        %1326 = vrot.lane.b32.xlu0 %v1156, 16
        %v1327 = vpop.permute.xlu0 %1326
        %1328 = vrot.lane.b32.xlu0 %v1157, 16
        %v1329 = vpop.permute.xlu0 %1328
        %1330 = vrot.lane.b32.xlu0 %v1158, 16
        %v1331 = vpop.permute.xlu0 %1330
        %1332 = vrot.lane.b32.xlu0 %v1159, 16
        %v1333 = vpop.permute.xlu0 %1332
        %1334 = vrot.lane.b32.xlu0 %v1160, 16
        %v1335 = vpop.permute.xlu0 %1334
        %1336 = vrot.lane.b32.xlu0 %v1161, 16
        %v1337 = vpop.permute.xlu0 %1336
        %1338 = vrot.lane.b32.xlu0 %v1162, 16
        %v1339 = vpop.permute.xlu0 %1338
        %1340 = vrot.lane.b32.xlu0 %v1163, 16
        %v1341 = vpop.permute.xlu0 %1340
        %1342 = vrot.lane.b32.xlu0 %v1164, 16
        %v1343 = vpop.permute.xlu0 %1342
        %1344 = vrot.lane.b32.xlu0 %v1165, 16
        %v1345 = vpop.permute.xlu0 %1344
        %1346 = vrot.lane.b32.xlu0 %v1315, 16
        %v1347 = vpop.permute.xlu0 %1346
        %v1348 = vunpack.c.l.b16 %v1032
        %v1349 = vunpack.c.l.b16 %v1035
        %v1350 = vpack.c.b16 %v1349, %v1348
        %1351 = vrot.lane.b32.xlu0 %v1231, 20
        %v1352 = vpop.permute.xlu0 %1351
        %1353 = vrot.lane.b32.xlu0 %v1232, 20
        %v1354 = vpop.permute.xlu0 %1353
        %1355 = vrot.lane.b32.xlu0 %v1233, 20
        %v1356 = vpop.permute.xlu0 %1355
        %1357 = vrot.lane.b32.xlu0 %v1234, 20
        %v1358 = vpop.permute.xlu0 %1357
        %1359 = vrot.lane.b32.xlu0 %v1235, 20
        %v1360 = vpop.permute.xlu0 %1359
        %1361 = vrot.lane.b32.xlu0 %v1236, 20
        %v1362 = vpop.permute.xlu0 %1361
        %1363 = vrot.lane.b32.xlu0 %v1237, 20
        %v1364 = vpop.permute.xlu0 %1363
        %1365 = vrot.lane.b32.xlu0 %v1238, 20
        %v1366 = vpop.permute.xlu0 %1365
        %1367 = vrot.lane.b32.xlu0 %v1239, 20
        %v1368 = vpop.permute.xlu0 %1367
        %1369 = vrot.lane.b32.xlu0 %v1240, 20
        %v1370 = vpop.permute.xlu0 %1369
        %1371 = vrot.lane.b32.xlu0 %v1241, 20
        %v1372 = vpop.permute.xlu0 %1371
        %1373 = vrot.lane.b32.xlu0 %v1242, 20
        %v1374 = vpop.permute.xlu0 %1373
        %1375 = vrot.lane.b32.xlu0 %v1243, 20
        %v1376 = vpop.permute.xlu0 %1375
        %1377 = vrot.lane.b32.xlu0 %v1244, 20
        %v1378 = vpop.permute.xlu0 %1377
        %1379 = vrot.lane.b32.xlu0 %v1245, 20
        %v1380 = vpop.permute.xlu0 %1379
        %1381 = vrot.lane.b32.xlu0 %v1350, 20
        %v1382 = vpop.permute.xlu0 %1381
        %v1383 = vunpack.c.l.b16 %v449
        %v1384 = vunpack.c.l.b16 %v450
        %v1385 = vpack.c.b16 %v1384, %v1383
        %1386 = vrot.lane.b32.xlu0 %v1104, 24
        %v1387 = vpop.permute.xlu0 %1386
        %1388 = vrot.lane.b32.xlu0 %v1105, 24
        %v1389 = vpop.permute.xlu0 %1388
        %1390 = vrot.lane.b32.xlu0 %v1106, 24
        %v1391 = vpop.permute.xlu0 %1390
        %1392 = vrot.lane.b32.xlu0 %v1107, 24
        %v1393 = vpop.permute.xlu0 %1392
        %1394 = vrot.lane.b32.xlu0 %v1108, 24
        %v1395 = vpop.permute.xlu0 %1394
        %1396 = vrot.lane.b32.xlu0 %v1109, 24
        %v1397 = vpop.permute.xlu0 %1396
        %1398 = vrot.lane.b32.xlu0 %v1110, 24
        %v1399 = vpop.permute.xlu0 %1398
        %1400 = vrot.lane.b32.xlu0 %v1111, 24
        %v1401 = vpop.permute.xlu0 %1400
        %1402 = vrot.lane.b32.xlu0 %v1112, 24
        %v1403 = vpop.permute.xlu0 %1402
        %1404 = vrot.lane.b32.xlu0 %v1113, 24
        %v1405 = vpop.permute.xlu0 %1404
        %1406 = vrot.lane.b32.xlu0 %v1114, 24
        %v1407 = vpop.permute.xlu0 %1406
        %1408 = vrot.lane.b32.xlu0 %v1115, 24
        %v1409 = vpop.permute.xlu0 %1408
        %1410 = vrot.lane.b32.xlu0 %v1116, 24
        %v1411 = vpop.permute.xlu0 %1410
        %1412 = vrot.lane.b32.xlu0 %v1117, 24
        %v1413 = vpop.permute.xlu0 %1412
        %1414 = vrot.lane.b32.xlu0 %v1280, 24
        %v1415 = vpop.permute.xlu0 %1414
        %1416 = vrot.lane.b32.xlu0 %v1385, 24
        %v1417 = vpop.permute.xlu0 %1416
        %v1418 = vunpack.c.l.b16 %v1049
        %v1419 = vunpack.c.l.b16 %v1059
        %v1420 = vpack.c.b16 %v1419, %v1418
        %1421 = vrot.lane.b32.xlu0 %v1152, 28
        %v1422 = vpop.permute.xlu0 %1421
        %1423 = vrot.lane.b32.xlu0 %v1153, 28
        %v1424 = vpop.permute.xlu0 %1423
        %1425 = vrot.lane.b32.xlu0 %v1154, 28
        %v1426 = vpop.permute.xlu0 %1425
        %1427 = vrot.lane.b32.xlu0 %v1155, 28
        %v1428 = vpop.permute.xlu0 %1427
        %1429 = vrot.lane.b32.xlu0 %v1156, 28
        %v1430 = vpop.permute.xlu0 %1429
        %1431 = vrot.lane.b32.xlu0 %v1157, 28
        %v1432 = vpop.permute.xlu0 %1431
        %1433 = vrot.lane.b32.xlu0 %v1158, 28
        %v1434 = vpop.permute.xlu0 %1433
        %1435 = vrot.lane.b32.xlu0 %v1159, 28
        %v1436 = vpop.permute.xlu0 %1435
        %1437 = vrot.lane.b32.xlu0 %v1160, 28
        %v1438 = vpop.permute.xlu0 %1437
        %1439 = vrot.lane.b32.xlu0 %v1161, 28
        %v1440 = vpop.permute.xlu0 %1439
        %1441 = vrot.lane.b32.xlu0 %v1162, 28
        %v1442 = vpop.permute.xlu0 %1441
        %1443 = vrot.lane.b32.xlu0 %v1163, 28
        %v1444 = vpop.permute.xlu0 %1443
        %1445 = vrot.lane.b32.xlu0 %v1164, 28
        %v1446 = vpop.permute.xlu0 %1445
        %1447 = vrot.lane.b32.xlu0 %v1165, 28
        %v1448 = vpop.permute.xlu0 %1447
        %1449 = vrot.lane.b32.xlu0 %v1315, 28
        %v1450 = vpop.permute.xlu0 %1449
        %1451 = vrot.lane.b32.xlu0 %v1420, 28
        %v1452 = vpop.permute.xlu0 %1451
        %v1453 = vunpack.c.l.b16 %v1066
        %v1454 = vunpack.c.l.b16 %v1069
        %v1455 = vpack.c.b16 %v1454, %v1453
        %1456 = vrot.lane.b32.xlu0 %v1232, 32
        %v1457 = vpop.permute.xlu0 %1456
        %1458 = vrot.lane.b32.xlu0 %v1233, 32
        %v1459 = vpop.permute.xlu0 %1458
        %1460 = vrot.lane.b32.xlu0 %v1234, 32
        %v1461 = vpop.permute.xlu0 %1460
        %1462 = vrot.lane.b32.xlu0 %v1235, 32
        %v1463 = vpop.permute.xlu0 %1462
        %1464 = vrot.lane.b32.xlu0 %v1236, 32
        %v1465 = vpop.permute.xlu0 %1464
        %1466 = vrot.lane.b32.xlu0 %v1237, 32
        %v1467 = vpop.permute.xlu0 %1466
        %1468 = vrot.lane.b32.xlu0 %v1238, 32
        %v1469 = vpop.permute.xlu0 %1468
        %1470 = vrot.lane.b32.xlu0 %v1239, 32
        %v1471 = vpop.permute.xlu0 %1470
        %1472 = vrot.lane.b32.xlu0 %v1240, 32
        %v1473 = vpop.permute.xlu0 %1472
        %1474 = vrot.lane.b32.xlu0 %v1241, 32
        %v1475 = vpop.permute.xlu0 %1474
        %1476 = vrot.lane.b32.xlu0 %v1242, 32
        %v1477 = vpop.permute.xlu0 %1476
        %1478 = vrot.lane.b32.xlu0 %v1243, 32
        %v1479 = vpop.permute.xlu0 %1478
        %1480 = vrot.lane.b32.xlu0 %v1244, 32
        %v1481 = vpop.permute.xlu0 %1480
        %1482 = vrot.lane.b32.xlu0 %v1245, 32
        %v1483 = vpop.permute.xlu0 %1482
        %1484 = vrot.lane.b32.xlu0 %v1350, 32
        %v1485 = vpop.permute.xlu0 %1484
        %1486 = vrot.lane.b32.xlu0 %v1455, 32
        %v1487 = vpop.permute.xlu0 %1486
        %vm1488 = vcmask 31744
        %v1491 = vsel %vm1488, %v1102, %v1167
        %v1494 = vsel %vm1488, %v1103, %v1169
        %v1497 = vsel %vm1488, %v1104, %v1171
        %v1500 = vsel %vm1488, %v1105, %v1173
        %v1503 = vsel %vm1488, %v1106, %v1175
        %v1506 = vsel %vm1488, %v1107, %v1177
        %v1509 = vsel %vm1488, %v1108, %v1179
        %v1512 = vsel %vm1488, %v1109, %v1181
        %v1515 = vsel %vm1488, %v1110, %v1183
        %v1518 = vsel %vm1488, %v1111, %v1185
        %v1521 = vsel %vm1488, %v1112, %v1187
        %v1524 = vsel %vm1488, %v1113, %v1189
        %v1527 = vsel %vm1488, %v1114, %v1191
        %v1530 = vsel %vm1488, %v1115, %v1193
        %v1533 = vsel %vm1488, %v1116, %v1195
        %v1536 = vsel %vm1488, %v1117, %v1197
        %vm1537 = vcmask 64512
        %v1539 = vsel %vm1537, %v1491, %v1247
        %v1541 = vsel %vm1537, %v1494, %v1249
        %v1543 = vsel %vm1537, %v1497, %v1251
        %v1545 = vsel %vm1537, %v1500, %v1253
        %v1547 = vsel %vm1537, %v1503, %v1255
        %v1549 = vsel %vm1537, %v1506, %v1257
        %v1551 = vsel %vm1537, %v1509, %v1259
        %v1553 = vsel %vm1537, %v1512, %v1261
        %v1555 = vsel %vm1537, %v1515, %v1263
        %v1557 = vsel %vm1537, %v1518, %v1265
        %v1559 = vsel %vm1537, %v1521, %v1267
        %v1561 = vsel %vm1537, %v1524, %v1269
        %v1563 = vsel %vm1537, %v1527, %v1271
        %v1565 = vsel %vm1537, %v1530, %v1273
        %v1567 = vsel %vm1537, %v1533, %v1275
        %v1569 = vsel %vm1537, %v1536, %v1277
        %vm1570 = vcmask 97280
        %v1572 = vsel %vm1570, %v1539, %v1282
        %v1574 = vsel %vm1570, %v1541, %v1284
        %v1576 = vsel %vm1570, %v1543, %v1286
        %v1578 = vsel %vm1570, %v1545, %v1288
        %v1580 = vsel %vm1570, %v1547, %v1290
        %v1582 = vsel %vm1570, %v1549, %v1292
        %v1584 = vsel %vm1570, %v1551, %v1294
        %v1586 = vsel %vm1570, %v1553, %v1296
        %v1588 = vsel %vm1570, %v1555, %v1298
        %v1590 = vsel %vm1570, %v1557, %v1300
        %v1592 = vsel %vm1570, %v1559, %v1302
        %v1594 = vsel %vm1570, %v1561, %v1304
        %v1596 = vsel %vm1570, %v1563, %v1306
        %v1598 = vsel %vm1570, %v1565, %v1308
        %v1600 = vsel %vm1570, %v1567, %v1310
        %v1602 = vsel %vm1570, %v1569, %v1312
        %vm1603 = vcmask 130048
        %v1605 = vsel %vm1603, %v1572, %v1317
        %v1607 = vsel %vm1603, %v1574, %v1319
        %v1609 = vsel %vm1603, %v1576, %v1321
        %v1611 = vsel %vm1603, %v1578, %v1323
        %v1613 = vsel %vm1603, %v1580, %v1325
        %v1615 = vsel %vm1603, %v1582, %v1327
        %v1617 = vsel %vm1603, %v1584, %v1329
        %v1619 = vsel %vm1603, %v1586, %v1331
        %v1621 = vsel %vm1603, %v1588, %v1333
        %v1623 = vsel %vm1603, %v1590, %v1335
        %v1625 = vsel %vm1603, %v1592, %v1337
        %v1627 = vsel %vm1603, %v1594, %v1339
        %v1629 = vsel %vm1603, %v1596, %v1341
        %v1631 = vsel %vm1603, %v1598, %v1343
        %v1633 = vsel %vm1603, %v1600, %v1345
        %v1635 = vsel %vm1603, %v1602, %v1347
        %vm1636 = vcmask 162816
        %v1638 = vsel %vm1636, %v1605, %v1352
        %v1640 = vsel %vm1636, %v1607, %v1354
        %v1642 = vsel %vm1636, %v1609, %v1356
        %v1644 = vsel %vm1636, %v1611, %v1358
        %v1646 = vsel %vm1636, %v1613, %v1360
        %v1648 = vsel %vm1636, %v1615, %v1362
        %v1650 = vsel %vm1636, %v1617, %v1364
        %v1652 = vsel %vm1636, %v1619, %v1366
        %v1654 = vsel %vm1636, %v1621, %v1368
        %v1656 = vsel %vm1636, %v1623, %v1370
        %v1658 = vsel %vm1636, %v1625, %v1372
        %v1660 = vsel %vm1636, %v1627, %v1374
        %v1662 = vsel %vm1636, %v1629, %v1376
        %v1664 = vsel %vm1636, %v1631, %v1378
        %v1666 = vsel %vm1636, %v1633, %v1380
        %v1668 = vsel %vm1636, %v1635, %v1382
        %vm1669 = vcmask 195584
        %v1671 = vsel %vm1669, %v1638, %v1387
        %v1673 = vsel %vm1669, %v1640, %v1389
        %v1675 = vsel %vm1669, %v1642, %v1391
        %v1677 = vsel %vm1669, %v1644, %v1393
        %v1679 = vsel %vm1669, %v1646, %v1395
        %v1681 = vsel %vm1669, %v1648, %v1397
        %v1683 = vsel %vm1669, %v1650, %v1399
        %v1685 = vsel %vm1669, %v1652, %v1401
        %v1687 = vsel %vm1669, %v1654, %v1403
        %v1689 = vsel %vm1669, %v1656, %v1405
        %v1691 = vsel %vm1669, %v1658, %v1407
        %v1693 = vsel %vm1669, %v1660, %v1409
        %v1695 = vsel %vm1669, %v1662, %v1411
        %v1697 = vsel %vm1669, %v1664, %v1413
        %v1699 = vsel %vm1669, %v1666, %v1415
        %v1701 = vsel %vm1669, %v1668, %v1417
        %vm1702 = vcmask 228352
        %v1704 = vsel %vm1702, %v1671, %v1422
        %v1706 = vsel %vm1702, %v1673, %v1424
        %v1708 = vsel %vm1702, %v1675, %v1426
        %v1710 = vsel %vm1702, %v1677, %v1428
        %v1712 = vsel %vm1702, %v1679, %v1430
        %v1714 = vsel %vm1702, %v1681, %v1432
        %v1716 = vsel %vm1702, %v1683, %v1434
        %v1718 = vsel %vm1702, %v1685, %v1436
        %v1720 = vsel %vm1702, %v1687, %v1438
        %v1722 = vsel %vm1702, %v1689, %v1440
        %v1724 = vsel %vm1702, %v1691, %v1442
        %v1726 = vsel %vm1702, %v1693, %v1444
        %v1728 = vsel %vm1702, %v1695, %v1446
        %v1730 = vsel %vm1702, %v1697, %v1448
        %v1732 = vsel %vm1702, %v1699, %v1450
        %v1734 = vsel %vm1702, %v1701, %v1452
        %vm1735 = vcmask 261120
        %v1737 = vsel %vm1735, %v1704, %v1457
        %v1739 = vsel %vm1735, %v1706, %v1459
        %v1741 = vsel %vm1735, %v1708, %v1461
        %v1743 = vsel %vm1735, %v1710, %v1463
        %v1745 = vsel %vm1735, %v1712, %v1465
        %v1747 = vsel %vm1735, %v1714, %v1467
        %v1749 = vsel %vm1735, %v1716, %v1469
        %v1751 = vsel %vm1735, %v1718, %v1471
        %v1753 = vsel %vm1735, %v1720, %v1473
        %v1755 = vsel %vm1735, %v1722, %v1475
        %v1757 = vsel %vm1735, %v1724, %v1477
        %v1759 = vsel %vm1735, %v1726, %v1479
        %v1761 = vsel %vm1735, %v1728, %v1481
        %v1763 = vsel %vm1735, %v1730, %v1483
        %v1765 = vsel %vm1735, %v1732, %v1485
        %v1767 = vsel %vm1735, %v1734, %v1487
        %v1768 = vld [vmem:[%s1] sm:$0xf]
        %v1769 = vld [vmem:[%s1 + $0x4] sm:$0xf]
        %v1770 = vld [vmem:[%s1 + $0x8] sm:$0xf]
        %v1771 = vld [vmem:[%s1 + $0xc] sm:$0xf]
        %v1772 = vld [vmem:[%s1 + $0x10] sm:$0x3]
        %v1778 = vunpack.c.l.b16 %v1768
        %v1779 = vunpack.c.l.b16 %v1769
        %v1780 = vunpack.c.l.b16 %v1770
        %v1781 = vunpack.c.l.b16 %v1771
        %v1782 = vunpack.c.l.b16 %v1772
        %v1783 = vpack.c.b16 %v1779, %v1778
        %v1784 = vpack.c.b16 %v1781, %v1780
        %v1785 = vpack.c.b16 %v1782, %v1782
        %vm1788 = vcmask 293888
        %v1789 = vsel %vm1788, %v1737, 0
        %v1791 = vsel %vm1788, %v1739, 0
        %v1793 = vsel %vm1788, %v1741, 0
        %v1795 = vsel %vm1788, %v1743, 0
        %v1797 = vsel %vm1788, %v1745, 0
        %v1799 = vsel %vm1788, %v1747, 0
        %v1801 = vsel %vm1788, %v1749, 0
        %v1803 = vsel %vm1788, %v1751, 0
        %v1805 = vsel %vm1788, %v1753, 0
        %v1807 = vsel %vm1788, %v1755, 0
        %v1809 = vsel %vm1788, %v1757, 0
        %v1811 = vsel %vm1788, %v1759, 0
        %v1813 = vsel %vm1788, %v1761, 0
        %v1815 = vsel %vm1788, %v1763, 0
        %v1817 = vsel %vm1788, %v1765, 0
        %v1819 = vsel %vm1788, %v1767, 0
        %vm1821 = vcmask 1041408
        %v1823 = vsel %vm1821, %v1785, 0
        %1825 = vmatprep.subr.bf16.mxu0 0
        %1826 = vmatpush1.bf16.msra.mxu0 %v1783
        %1827 = vmatprep.subr.bf16.mxu0 0
        %1828 = vmatpush1.bf16.msra.mxu0 %v1784
        %1829 = vmatprep.subr.bf16.mxu0 0
        %1830 = vmatpush1.bf16.msra.mxu0 %v1823
        %1831 = vmatprep.subr.bf16.mxu0 0
        %1832 = vmatpush1.bf16.msra.mxu0 0
        %1833 = vmatprep.subr.bf16.mxu0 0
        %1834 = vmatpush1.bf16.msra.mxu0 0
        %1835 = vmatprep.subr.bf16.mxu0 0
        %1836 = vmatpush1.bf16.msra.mxu0 0
        %1837 = vmatprep.subr.bf16.mxu0 0
        %1838 = vmatpush1.bf16.msra.mxu0 0
        %1839 = vmatprep.subr.bf16.mxu0 0
        %1840 = vmatpush1.bf16.msra.mxu0 0
        %1841 = vmatprep.subr.bf16.mxu0 0
        %1842 = vmatpush1.bf16.msra.mxu0 0
        %1843 = vmatprep.subr.bf16.mxu0 0
        %1844 = vmatpush1.bf16.msra.mxu0 0
        %1845 = vmatprep.subr.bf16.mxu0 0
        %1846 = vmatpush1.bf16.msra.mxu0 0
        %1847 = vmatprep.subr.bf16.mxu0 0
        %1848 = vmatpush1.bf16.msra.mxu0 0
        %1849 = vmatprep.subr.bf16.mxu0 0
        %1850 = vmatpush1.bf16.msra.mxu0 0
        %1851 = vmatprep.subr.bf16.mxu0 0
        %1852 = vmatpush1.bf16.msra.mxu0 0
        %1853 = vmatprep.subr.bf16.mxu0 0
        %1854 = vmatpush1.bf16.msra.mxu0 0
        %1855 = vmatprep.subr.bf16.mxu0 0
        %1856 = vmatpush1.bf16.msra.mxu0 0
        %1857 = vmatprep.mubr.bf16.mxu0 0
        %1858 = vmatmul.mubr.bf16.gmra.mrb[0].mxu0 %v1789
        %v1859 = vpop.f32.mrb[0].mxu0
        %v1860 = vadd.f32 0.0, %v1859
        %v1861 = vpop.f32.mrb[0].mxu0
        %v1862 = vpop.f32.mrb[0].mxu0
        %v1863 = vadd.f32 0.0, %v1862
        %v1864 = vpop.f32.mrb[0].mxu0
        %1865 = vmatprep.mubr.bf16.mxu0 0
        %1866 = vmatmul.mubr.bf16.gmra.mrb[0].mxu0 %v1791
        %v1867 = vpop.f32.mrb[0].mxu0
        %v1868 = vadd.f32 0.0, %v1867
        %v1869 = vpop.f32.mrb[0].mxu0
        %v1870 = vpop.f32.mrb[0].mxu0
        %v1871 = vadd.f32 0.0, %v1870
        %v1872 = vpop.f32.mrb[0].mxu0
        %1873 = vmatprep.mubr.bf16.mxu0 0
        %1874 = vmatmul.mubr.bf16.gmra.mrb[0].mxu0 %v1793
        %v1875 = vpop.f32.mrb[0].mxu0
        %v1876 = vadd.f32 0.0, %v1875
        %v1877 = vpop.f32.mrb[0].mxu0
        %v1878 = vpop.f32.mrb[0].mxu0
        %v1879 = vadd.f32 0.0, %v1878
        %v1880 = vpop.f32.mrb[0].mxu0
        %1881 = vmatprep.mubr.bf16.mxu0 0
        %1882 = vmatmul.mubr.bf16.gmra.mrb[0].mxu0 %v1795
        %v1883 = vpop.f32.mrb[0].mxu0
        %v1884 = vadd.f32 0.0, %v1883
        %v1885 = vpop.f32.mrb[0].mxu0
        %v1886 = vpop.f32.mrb[0].mxu0
        %v1887 = vadd.f32 0.0, %v1886
        %v1888 = vpop.f32.mrb[0].mxu0
        %1889 = vmatprep.mubr.bf16.mxu0 0
        %1890 = vmatmul.mubr.bf16.gmra.mrb[0].mxu0 %v1797
        %v1891 = vpop.f32.mrb[0].mxu0
        %v1892 = vadd.f32 0.0, %v1891
        %v1893 = vpop.f32.mrb[0].mxu0
        %v1894 = vpop.f32.mrb[0].mxu0
        %v1895 = vadd.f32 0.0, %v1894
        %v1896 = vpop.f32.mrb[0].mxu0
        %1897 = vmatprep.mubr.bf16.mxu0 0
        %1898 = vmatmul.mubr.bf16.gmra.mrb[0].mxu0 %v1799
        %v1899 = vpop.f32.mrb[0].mxu0
        %v1900 = vadd.f32 0.0, %v1899
        %v1901 = vpop.f32.mrb[0].mxu0
        %v1902 = vpop.f32.mrb[0].mxu0
        %v1903 = vadd.f32 0.0, %v1902
        %v1904 = vpop.f32.mrb[0].mxu0
        %1905 = vmatprep.mubr.bf16.mxu0 0
        %1906 = vmatmul.mubr.bf16.gmra.mrb[0].mxu0 %v1801
        %v1907 = vpop.f32.mrb[0].mxu0
        %v1908 = vadd.f32 0.0, %v1907
        %v1909 = vpop.f32.mrb[0].mxu0
        %v1910 = vpop.f32.mrb[0].mxu0
        %v1911 = vadd.f32 0.0, %v1910
        %v1912 = vpop.f32.mrb[0].mxu0
        %1913 = vmatprep.mubr.bf16.mxu0 0
        %1914 = vmatmul.mubr.bf16.gmra.mrb[0].mxu0 %v1803
        %v1915 = vpop.f32.mrb[0].mxu0
        %v1916 = vadd.f32 0.0, %v1915
        %v1917 = vpop.f32.mrb[0].mxu0
        %v1918 = vpop.f32.mrb[0].mxu0
        %v1919 = vadd.f32 0.0, %v1918
        %v1920 = vpop.f32.mrb[0].mxu0
        %1921 = vmatprep.mubr.bf16.mxu0 0
        %1922 = vmatmul.mubr.bf16.gmra.mrb[0].mxu0 %v1805
        %v1923 = vpop.f32.mrb[0].mxu0
        %v1924 = vadd.f32 0.0, %v1923
        %v1925 = vpop.f32.mrb[0].mxu0
        %v1926 = vpop.f32.mrb[0].mxu0
        %v1927 = vadd.f32 0.0, %v1926
        %v1928 = vpop.f32.mrb[0].mxu0
        %1929 = vmatprep.mubr.bf16.mxu0 0
        %1930 = vmatmul.mubr.bf16.gmra.mrb[0].mxu0 %v1807
        %v1931 = vpop.f32.mrb[0].mxu0
        %v1932 = vadd.f32 0.0, %v1931
        %v1933 = vpop.f32.mrb[0].mxu0
        %v1934 = vpop.f32.mrb[0].mxu0
        %v1935 = vadd.f32 0.0, %v1934
        %v1936 = vpop.f32.mrb[0].mxu0
        %1937 = vmatprep.mubr.bf16.mxu0 0
        %1938 = vmatmul.mubr.bf16.gmra.mrb[0].mxu0 %v1809
        %v1939 = vpop.f32.mrb[0].mxu0
        %v1940 = vadd.f32 0.0, %v1939
        %v1941 = vpop.f32.mrb[0].mxu0
        %v1942 = vpop.f32.mrb[0].mxu0
        %v1943 = vadd.f32 0.0, %v1942
        %v1944 = vpop.f32.mrb[0].mxu0
        %1945 = vmatprep.mubr.bf16.mxu0 0
        %1946 = vmatmul.mubr.bf16.gmra.mrb[0].mxu0 %v1811
        %v1947 = vpop.f32.mrb[0].mxu0
        %v1948 = vadd.f32 0.0, %v1947
        %v1949 = vpop.f32.mrb[0].mxu0
        %v1950 = vpop.f32.mrb[0].mxu0
        %v1951 = vadd.f32 0.0, %v1950
        %v1952 = vpop.f32.mrb[0].mxu0
        %1953 = vmatprep.mubr.bf16.mxu0 0
        %1954 = vmatmul.mubr.bf16.gmra.mrb[0].mxu0 %v1813
        %v1955 = vpop.f32.mrb[0].mxu0
        %v1956 = vadd.f32 0.0, %v1955
        %v1957 = vpop.f32.mrb[0].mxu0
        %v1958 = vpop.f32.mrb[0].mxu0
        %v1959 = vadd.f32 0.0, %v1958
        %v1960 = vpop.f32.mrb[0].mxu0
        %1961 = vmatprep.mubr.bf16.mxu0 0
        %1962 = vmatmul.mubr.bf16.gmra.mrb[0].mxu0 %v1815
        %v1963 = vpop.f32.mrb[0].mxu0
        %v1964 = vadd.f32 0.0, %v1963
        %v1965 = vpop.f32.mrb[0].mxu0
        %v1966 = vpop.f32.mrb[0].mxu0
        %v1967 = vadd.f32 0.0, %v1966
        %v1968 = vpop.f32.mrb[0].mxu0
        %1969 = vmatprep.mubr.bf16.mxu0 0
        %1970 = vmatmul.mubr.bf16.gmra.mrb[0].mxu0 %v1817
        %v1971 = vpop.f32.mrb[0].mxu0
        %v1972 = vadd.f32 0.0, %v1971
        %v1973 = vpop.f32.mrb[0].mxu0
        %v1974 = vpop.f32.mrb[0].mxu0
        %v1975 = vadd.f32 0.0, %v1974
        %v1976 = vpop.f32.mrb[0].mxu0
        %1977 = vmatprep.mubr.bf16.mxu0 0
        %1978 = vmatmul.mubr.bf16.gmra.mrb[0].mxu0 %v1819
        %v1979 = vpop.f32.mrb[0].mxu0
        %v1980 = vadd.f32 0.0, %v1979
        %v1981 = vpop.f32.mrb[0].mxu0
        %v1982 = vpop.f32.mrb[0].mxu0
        %v1983 = vadd.f32 0.0, %v1982
        %v1984 = vpop.f32.mrb[0].mxu0
        %1985 = vdwg.mxu0
        %v1986 = vld [vmem:[%s2] sm:$0x1]
        %v1988 = vlaneseq
        %v1989 = vshrl.u32 %v1988, 7
        %v1990 = vsub.s32 0, %v1989
        %v1991 = vrot.slane %v1986, %v1990
        %v1993 = vmul.f32 %v1860, %v1991
        %v1994 = vmul.f32 %v1863, %v1991
        %v1995 = vmul.f32 %v1868, %v1991
        %v1996 = vmul.f32 %v1871, %v1991
        %v1997 = vmul.f32 %v1876, %v1991
        %v1998 = vmul.f32 %v1879, %v1991
        %v1999 = vmul.f32 %v1884, %v1991
        %v2000 = vmul.f32 %v1887, %v1991
        %v2001 = vmul.f32 %v1892, %v1991
        %v2002 = vmul.f32 %v1895, %v1991
        %v2003 = vmul.f32 %v1900, %v1991
        %v2004 = vmul.f32 %v1903, %v1991
        %v2005 = vmul.f32 %v1908, %v1991
        %v2006 = vmul.f32 %v1911, %v1991
        %v2007 = vmul.f32 %v1916, %v1991
        %v2008 = vmul.f32 %v1919, %v1991
        %v2009 = vmul.f32 %v1924, %v1991
        %v2010 = vmul.f32 %v1927, %v1991
        %v2011 = vmul.f32 %v1932, %v1991
        %v2012 = vmul.f32 %v1935, %v1991
        %v2013 = vmul.f32 %v1940, %v1991
        %v2014 = vmul.f32 %v1943, %v1991
        %v2015 = vmul.f32 %v1948, %v1991
        %v2016 = vmul.f32 %v1951, %v1991
        %v2017 = vmul.f32 %v1956, %v1991
        %v2018 = vmul.f32 %v1959, %v1991
        %v2019 = vmul.f32 %v1964, %v1991
        %v2020 = vmul.f32 %v1967, %v1991
        %v2021 = vmul.f32 %v1972, %v1991
        %v2022 = vmul.f32 %v1975, %v1991
        %v2023 = vmul.f32 %v1980, %v1991
        %v2024 = vmul.f32 %v1983, %v1991
        %v2025 = vld [vmem:[%s3] sm:$0x1]
        %v2027 = vlaneseq
        %v2028 = vshrl.u32 %v2027, 7
        %v2029 = vsub.s32 0, %v2028
        %v2030 = vrot.slane %v2025, %v2029
        %v2032 = vadd.f32 %v1993, %v2030
        %v2033 = vadd.f32 %v1994, %v2030
        %v2034 = vadd.f32 %v1995, %v2030
        %v2035 = vadd.f32 %v1996, %v2030
        %v2036 = vadd.f32 %v1997, %v2030
        %v2037 = vadd.f32 %v1998, %v2030
        %v2038 = vadd.f32 %v1999, %v2030
        %v2039 = vadd.f32 %v2000, %v2030
        %v2040 = vadd.f32 %v2001, %v2030
        %v2041 = vadd.f32 %v2002, %v2030
        %v2042 = vadd.f32 %v2003, %v2030
        %v2043 = vadd.f32 %v2004, %v2030
        %v2044 = vadd.f32 %v2005, %v2030
        %v2045 = vadd.f32 %v2006, %v2030
        %v2046 = vadd.f32 %v2007, %v2030
        %v2047 = vadd.f32 %v2008, %v2030
        %v2048 = vadd.f32 %v2009, %v2030
        %v2049 = vadd.f32 %v2010, %v2030
        %v2050 = vadd.f32 %v2011, %v2030
        %v2051 = vadd.f32 %v2012, %v2030
        %v2052 = vadd.f32 %v2013, %v2030
        %v2053 = vadd.f32 %v2014, %v2030
        %v2054 = vadd.f32 %v2015, %v2030
        %v2055 = vadd.f32 %v2016, %v2030
        %v2056 = vadd.f32 %v2017, %v2030
        %v2057 = vadd.f32 %v2018, %v2030
        %v2058 = vadd.f32 %v2019, %v2030
        %v2059 = vadd.f32 %v2020, %v2030
        %v2060 = vadd.f32 %v2021, %v2030
        %v2061 = vadd.f32 %v2022, %v2030
        %v2062 = vadd.f32 %v2023, %v2030
        %v2063 = vadd.f32 %v2024, %v2030
        %v2064 = vmax.f32 %v2032, 0.0
        %v2065 = vmax.f32 %v2033, 0.0
        %v2066 = vmax.f32 %v2034, 0.0
        %v2067 = vmax.f32 %v2035, 0.0
        %v2068 = vmax.f32 %v2036, 0.0
        %v2069 = vmax.f32 %v2037, 0.0
        %v2070 = vmax.f32 %v2038, 0.0
        %v2071 = vmax.f32 %v2039, 0.0
        %v2072 = vmax.f32 %v2040, 0.0
        %v2073 = vmax.f32 %v2041, 0.0
        %v2074 = vmax.f32 %v2042, 0.0
        %v2075 = vmax.f32 %v2043, 0.0
        %v2076 = vmax.f32 %v2044, 0.0
        %v2077 = vmax.f32 %v2045, 0.0
        %v2078 = vmax.f32 %v2046, 0.0
        %v2079 = vmax.f32 %v2047, 0.0
        %v2080 = vmax.f32 %v2048, 0.0
        %v2081 = vmax.f32 %v2049, 0.0
        %v2082 = vmax.f32 %v2050, 0.0
        %v2083 = vmax.f32 %v2051, 0.0
        %v2084 = vmax.f32 %v2052, 0.0
        %v2085 = vmax.f32 %v2053, 0.0
        %v2086 = vmax.f32 %v2054, 0.0
        %v2087 = vmax.f32 %v2055, 0.0
        %v2088 = vmax.f32 %v2056, 0.0
        %v2089 = vmax.f32 %v2057, 0.0
        %v2090 = vmax.f32 %v2058, 0.0
        %v2091 = vmax.f32 %v2059, 0.0
        %v2092 = vmax.f32 %v2060, 0.0
        %v2093 = vmax.f32 %v2061, 0.0
        %v2094 = vmax.f32 %v2062, 0.0
        %v2095 = vmax.f32 %v2063, 0.0
        %vm2096 = vcmask 60416
        %2097 = vst.msk [vmem:[#allocation2] sm:$0xf] %vm2096, 0
        %2098 = vst.msk [vmem:[#allocation2 + $0x4] sm:$0xf] %vm2096, 0
        %vm2099 = vcmask 57344
        %2100 = vst.msk [vmem:[#allocation2 + $0x8] sm:$0x1] %vm2099, 0
        %2101 = vst.msk [vmem:[#allocation2 + $0xc] sm:$0xf] %vm2096, 0
        %2102 = vst.msk [vmem:[#allocation2 + $0x10] sm:$0xf] %vm2096, 0
        %2103 = vst.msk [vmem:[#allocation2 + $0x14] sm:$0x1] %vm2099, 0
        %2104 = vst.msk [vmem:[#allocation2 + $0x18] sm:$0xf] %vm2096, 0
        %2105 = vst.msk [vmem:[#allocation2 + $0x1c] sm:$0xf] %vm2096, 0
        %2106 = vst.msk [vmem:[#allocation2 + $0x20] sm:$0x1] %vm2099, 0
        %2107 = vst.msk [vmem:[#allocation2 + $0x24] sm:$0xf] %vm2096, 0
        %2108 = vst.msk [vmem:[#allocation2 + $0x28] sm:$0xf] %vm2096, 0
        %2109 = vst.msk [vmem:[#allocation2 + $0x2c] sm:$0x1] %vm2099, 0
        %2110 = vst.msk [vmem:[#allocation2 + $0x30] sm:$0xf] %vm2096, 0
        %2111 = vst.msk [vmem:[#allocation2 + $0x34] sm:$0xf] %vm2096, 0
        %2112 = vst.msk [vmem:[#allocation2 + $0x38] sm:$0x1] %vm2099, 0
        %2113 = vst.msk [vmem:[#allocation2 + $0x3c] sm:$0xf] %vm2096, 0
        %2114 = vst.msk [vmem:[#allocation2 + $0x40] sm:$0xf] %vm2096, 0
        %2115 = vst.msk [vmem:[#allocation2 + $0x44] sm:$0x1] %vm2099, 0
        %2116 = vst.msk [vmem:[#allocation2 + $0x48] sm:$0xf] %vm2096, 0
        %2117 = vst.msk [vmem:[#allocation2 + $0x4c] sm:$0xf] %vm2096, 0
        %2118 = vst.msk [vmem:[#allocation2 + $0x50] sm:$0x1] %vm2099, 0
        %2119 = vst.msk [vmem:[#allocation2 + $0x54] sm:$0xf] %vm2096, 0
        %2120 = vst.msk [vmem:[#allocation2 + $0x58] sm:$0xf] %vm2096, 0
        %2121 = vst.msk [vmem:[#allocation2 + $0x5c] sm:$0x1] %vm2099, 0
        %2122 = vst.msk [vmem:[#allocation2 + $0x60] sm:$0xf] %vm2096, 0
        %2123 = vst.msk [vmem:[#allocation2 + $0x64] sm:$0xf] %vm2096, 0
        %2124 = vst.msk [vmem:[#allocation2 + $0x68] sm:$0x1] %vm2099, 0
        %2125 = vst.msk [vmem:[#allocation2 + $0x6c] sm:$0xf] %vm2096, 0
        %2126 = vst.msk [vmem:[#allocation2 + $0x70] sm:$0xf] %vm2096, 0
        %2127 = vst.msk [vmem:[#allocation2 + $0x74] sm:$0x1] %vm2099, 0
        %2128 = vst.msk [vmem:[#allocation2 + $0x78] sm:$0xf] %vm2096, 0
        %2129 = vst.msk [vmem:[#allocation2 + $0x7c] sm:$0xf] %vm2096, 0
        %2130 = vst.msk [vmem:[#allocation2 + $0x80] sm:$0x1] %vm2099, 0
        %2131 = vst.msk [vmem:[#allocation2 + $0x84] sm:$0xf] %vm2096, 0
        %2132 = vst.msk [vmem:[#allocation2 + $0x88] sm:$0xf] %vm2096, 0
        %2133 = vst.msk [vmem:[#allocation2 + $0x8c] sm:$0x1] %vm2099, 0
        %2134 = vst.msk [vmem:[#allocation2 + $0x90] sm:$0xf] %vm2096, 0
        %2135 = vst.msk [vmem:[#allocation2 + $0x94] sm:$0xf] %vm2096, 0
        %2136 = vst.msk [vmem:[#allocation2 + $0x98] sm:$0x1] %vm2099, 0
        %2137 = vst.msk [vmem:[#allocation2 + $0x9c] sm:$0xf] %vm2096, 0
        %2138 = vst.msk [vmem:[#allocation2 + $0xa0] sm:$0xf] %vm2096, 0
        %2139 = vst.msk [vmem:[#allocation2 + $0xa4] sm:$0x1] %vm2099, 0
        %2140 = vst.msk [vmem:[#allocation2 + $0xa8] sm:$0xf] %vm2096, 0
        %2141 = vst.msk [vmem:[#allocation2 + $0xac] sm:$0xf] %vm2096, 0
        %2142 = vst.msk [vmem:[#allocation2 + $0xb0] sm:$0x1] %vm2099, 0
        %2143 = vst.msk [vmem:[#allocation2 + $0xb4] sm:$0xf] %vm2096, 0
        %2144 = vst.msk [vmem:[#allocation2 + $0xb8] sm:$0xf] %vm2096, 0
        %2145 = vst.msk [vmem:[#allocation2 + $0xbc] sm:$0x1] %vm2099, 0
        %2146 = vst.msk [vmem:[#allocation2 + $0xc0] sm:$0xf] %vm2096, 0
        %2147 = vst.msk [vmem:[#allocation2 + $0xc4] sm:$0xf] %vm2096, 0
        %2148 = vst.msk [vmem:[#allocation2 + $0xc8] sm:$0x1] %vm2099, 0
        %2149 = vst.msk [vmem:[#allocation2 + $0xcc] sm:$0xf] %vm2096, 0
        %2150 = vst.msk [vmem:[#allocation2 + $0xd0] sm:$0xf] %vm2096, 0
        %2151 = vst.msk [vmem:[#allocation2 + $0xd4] sm:$0x1] %vm2099, 0
        %v2152 = vpack.c.bf16 %v2065, %v2064
        %v2153 = vpack.c.bf16 %v2067, %v2066
        %v2154 = vpack.c.bf16 %v2069, %v2068
        %v2155 = vpack.c.bf16 %v2071, %v2070
        %v2156 = vpack.c.bf16 %v2073, %v2072
        %v2157 = vpack.c.bf16 %v2075, %v2074
        %v2158 = vpack.c.bf16 %v2077, %v2076
        %v2159 = vpack.c.bf16 %v2079, %v2078
        %v2160 = vpack.c.bf16 %v2081, %v2080
        %v2161 = vpack.c.bf16 %v2083, %v2082
        %v2162 = vpack.c.bf16 %v2085, %v2084
        %v2163 = vpack.c.bf16 %v2087, %v2086
        %v2164 = vpack.c.bf16 %v2089, %v2088
        %v2165 = vpack.c.bf16 %v2091, %v2090
        %v2166 = vpack.c.bf16 %v2093, %v2092
        %v2167 = vpack.c.bf16 %v2095, %v2094
        %v2184 = vunpack.c.l.b16 %v2152
        %v2185 = vunpack.c.h.b16 %v2152
        %v2186 = vunpack.c.l.b16 %v2153
        %v2187 = vunpack.c.h.b16 %v2153
        %v2188 = vunpack.c.l.b16 %v2154
        %v2189 = vunpack.c.h.b16 %v2154
        %v2190 = vunpack.c.l.b16 %v2155
        %v2191 = vunpack.c.h.b16 %v2155
        %v2192 = vunpack.c.l.b16 %v2156
        %v2193 = vunpack.c.h.b16 %v2156
        %v2194 = vunpack.c.l.b16 %v2157
        %v2195 = vunpack.c.h.b16 %v2157
        %v2196 = vunpack.c.l.b16 %v2158
        %v2197 = vunpack.c.h.b16 %v2158
        %v2198 = vunpack.c.l.b16 %v2159
        %v2199 = vunpack.c.h.b16 %v2159
        %v2200 = vunpack.c.l.b16 %v2160
        %v2201 = vunpack.c.h.b16 %v2160
        %v2202 = vunpack.c.l.b16 %v2161
        %v2203 = vunpack.c.h.b16 %v2161
        %v2204 = vunpack.c.l.b16 %v2162
        %v2205 = vunpack.c.h.b16 %v2162
        %v2206 = vunpack.c.l.b16 %v2163
        %v2207 = vunpack.c.h.b16 %v2163
        %v2208 = vunpack.c.l.b16 %v2164
        %v2209 = vunpack.c.h.b16 %v2164
        %v2210 = vunpack.c.l.b16 %v2165
        %v2211 = vunpack.c.h.b16 %v2165
        %v2212 = vunpack.c.l.b16 %v2166
        %v2213 = vunpack.c.h.b16 %v2166
        %v2214 = vunpack.c.l.b16 %v2167
        %v2215 = vunpack.c.h.b16 %v2167
        %v2216 = vpack.c.b16 %v2184, %v2184
        %v2217 = vpack.c.b16 %v2185, %v2185
        %v2218 = vpack.c.b16 %v2186, %v2186
        %v2219 = vpack.c.b16 %v2187, %v2187
        %v2220 = vpack.c.b16 %v2188, %v2188
        %v2221 = vpack.c.b16 %v2189, %v2189
        %v2222 = vpack.c.b16 %v2190, %v2190
        %v2223 = vpack.c.b16 %v2191, %v2191
        %v2224 = vpack.c.b16 %v2192, %v2192
        %v2225 = vpack.c.b16 %v2193, %v2193
        %v2226 = vpack.c.b16 %v2194, %v2194
        %v2227 = vpack.c.b16 %v2195, %v2195
        %v2228 = vpack.c.b16 %v2196, %v2196
        %v2229 = vpack.c.b16 %v2197, %v2197
        %v2230 = vpack.c.b16 %v2198, %v2198
        %v2231 = vpack.c.b16 %v2199, %v2199
        %v2232 = vpack.c.b16 %v2200, %v2200
        %v2233 = vpack.c.b16 %v2201, %v2201
        %v2234 = vpack.c.b16 %v2202, %v2202
        %v2235 = vpack.c.b16 %v2203, %v2203
        %v2236 = vpack.c.b16 %v2204, %v2204
        %v2237 = vpack.c.b16 %v2205, %v2205
        %v2238 = vpack.c.b16 %v2206, %v2206
        %v2239 = vpack.c.b16 %v2207, %v2207
        %v2240 = vpack.c.b16 %v2208, %v2208
        %v2241 = vpack.c.b16 %v2209, %v2209
        %v2242 = vpack.c.b16 %v2210, %v2210
        %v2243 = vpack.c.b16 %v2211, %v2211
        %v2244 = vpack.c.b16 %v2212, %v2212
        %v2245 = vpack.c.b16 %v2213, %v2213
        %v2246 = vpack.c.b16 %v2214, %v2214
        %v2247 = vpack.c.b16 %v2215, %v2215
        %vm2248 = vsmask.f32 256
        %vm2249 = vsmask.f32 4368
        %vm2250 = vmor %vm2248, %vm2249
        %v2252 = vshrl.u32 %v2216, 16
        %v2254 = vrot.slane %v2252, 7
        %v2255 = vshll.u32 %v2216, 16
        %v2257 = vor.u32 %v2254, %v2255
        %v2258 = vrot.slane %v2254, 4
        %v2260 = vshrl.u32 %v2217, 16
        %v2262 = vrot.slane %v2260, 7
        %v2263 = vshll.u32 %v2217, 16
        %v2265 = vor.u32 %v2262, %v2263
        %v2266 = vsel %vm2250, %v2258, %v2265
        %v2267 = vrot.slane %v2262, 4
        %v2269 = vshrl.u32 %v2218, 16
        %v2271 = vrot.slane %v2269, 7
        %v2272 = vshll.u32 %v2218, 16
        %v2274 = vor.u32 %v2271, %v2272
        %v2275 = vrot.slane %v2271, 4
        %v2277 = vshrl.u32 %v2219, 16
        %v2279 = vrot.slane %v2277, 7
        %v2280 = vshll.u32 %v2219, 16
        %v2282 = vor.u32 %v2279, %v2280
        %v2283 = vsel %vm2250, %v2275, %v2282
        %v2284 = vrot.slane %v2279, 4
        %v2286 = vshrl.u32 %v2220, 16
        %v2288 = vrot.slane %v2286, 7
        %v2289 = vshll.u32 %v2220, 16
        %v2291 = vor.u32 %v2288, %v2289
        %v2292 = vrot.slane %v2288, 4
        %v2294 = vshrl.u32 %v2221, 16
        %v2296 = vrot.slane %v2294, 7
        %v2297 = vshll.u32 %v2221, 16
        %v2299 = vor.u32 %v2296, %v2297
        %v2300 = vsel %vm2250, %v2292, %v2299
        %v2301 = vrot.slane %v2296, 4
        %v2303 = vshrl.u32 %v2222, 16
        %v2305 = vrot.slane %v2303, 7
        %v2306 = vshll.u32 %v2222, 16
        %v2308 = vor.u32 %v2305, %v2306
        %v2309 = vrot.slane %v2305, 4
        %v2311 = vshrl.u32 %v2223, 16
        %v2313 = vrot.slane %v2311, 7
        %v2314 = vshll.u32 %v2223, 16
        %v2316 = vor.u32 %v2313, %v2314
        %v2317 = vsel %vm2250, %v2309, %v2316
        %v2318 = vrot.slane %v2313, 4
        %v2320 = vshrl.u32 %v2224, 16
        %v2322 = vrot.slane %v2320, 7
        %v2323 = vshll.u32 %v2224, 16
        %v2325 = vor.u32 %v2322, %v2323
        %v2326 = vrot.slane %v2322, 4
        %v2328 = vshrl.u32 %v2225, 16
        %v2330 = vrot.slane %v2328, 7
        %v2331 = vshll.u32 %v2225, 16
        %v2333 = vor.u32 %v2330, %v2331
        %v2334 = vsel %vm2250, %v2326, %v2333
        %v2335 = vrot.slane %v2330, 4
        %v2337 = vshrl.u32 %v2226, 16
        %v2339 = vrot.slane %v2337, 7
        %v2340 = vshll.u32 %v2226, 16
        %v2342 = vor.u32 %v2339, %v2340
        %v2343 = vrot.slane %v2339, 4
        %v2345 = vshrl.u32 %v2227, 16
        %v2347 = vrot.slane %v2345, 7
        %v2348 = vshll.u32 %v2227, 16
        %v2350 = vor.u32 %v2347, %v2348
        %v2351 = vsel %vm2250, %v2343, %v2350
        %v2352 = vrot.slane %v2347, 4
        %v2354 = vshrl.u32 %v2228, 16
        %v2356 = vrot.slane %v2354, 7
        %v2357 = vshll.u32 %v2228, 16
        %v2359 = vor.u32 %v2356, %v2357
        %v2360 = vrot.slane %v2356, 4
        %v2362 = vshrl.u32 %v2229, 16
        %v2364 = vrot.slane %v2362, 7
        %v2365 = vshll.u32 %v2229, 16
        %v2367 = vor.u32 %v2364, %v2365
        %v2368 = vsel %vm2250, %v2360, %v2367
        %v2369 = vrot.slane %v2364, 4
        %v2371 = vshrl.u32 %v2230, 16
        %v2373 = vrot.slane %v2371, 7
        %v2374 = vshll.u32 %v2230, 16
        %v2376 = vor.u32 %v2373, %v2374
        %v2377 = vrot.slane %v2373, 4
        %v2379 = vshrl.u32 %v2231, 16
        %v2381 = vrot.slane %v2379, 7
        %v2382 = vshll.u32 %v2231, 16
        %v2384 = vor.u32 %v2381, %v2382
        %v2385 = vsel %vm2250, %v2377, %v2384
        %v2386 = vrot.slane %v2381, 4
        %v2388 = vshrl.u32 %v2232, 16
        %v2390 = vrot.slane %v2388, 7
        %v2391 = vshll.u32 %v2232, 16
        %v2393 = vor.u32 %v2390, %v2391
        %v2394 = vrot.slane %v2390, 4
        %v2396 = vshrl.u32 %v2233, 16
        %v2398 = vrot.slane %v2396, 7
        %v2399 = vshll.u32 %v2233, 16
        %v2401 = vor.u32 %v2398, %v2399
        %v2402 = vsel %vm2250, %v2394, %v2401
        %v2403 = vrot.slane %v2398, 4
        %v2405 = vshrl.u32 %v2234, 16
        %v2407 = vrot.slane %v2405, 7
        %v2408 = vshll.u32 %v2234, 16
        %v2410 = vor.u32 %v2407, %v2408
        %v2411 = vrot.slane %v2407, 4
        %v2413 = vshrl.u32 %v2235, 16
        %v2415 = vrot.slane %v2413, 7
        %v2416 = vshll.u32 %v2235, 16
        %v2418 = vor.u32 %v2415, %v2416
        %v2419 = vsel %vm2250, %v2411, %v2418
        %v2420 = vrot.slane %v2415, 4
        %v2422 = vshrl.u32 %v2236, 16
        %v2424 = vrot.slane %v2422, 7
        %v2425 = vshll.u32 %v2236, 16
        %v2427 = vor.u32 %v2424, %v2425
        %v2428 = vrot.slane %v2424, 4
        %v2430 = vshrl.u32 %v2237, 16
        %v2432 = vrot.slane %v2430, 7
        %v2433 = vshll.u32 %v2237, 16
        %v2435 = vor.u32 %v2432, %v2433
        %v2436 = vsel %vm2250, %v2428, %v2435
        %v2437 = vrot.slane %v2432, 4
        %v2439 = vshrl.u32 %v2238, 16
        %v2441 = vrot.slane %v2439, 7
        %v2442 = vshll.u32 %v2238, 16
        %v2444 = vor.u32 %v2441, %v2442
        %v2445 = vrot.slane %v2441, 4
        %v2447 = vshrl.u32 %v2239, 16
        %v2449 = vrot.slane %v2447, 7
        %v2450 = vshll.u32 %v2239, 16
        %v2452 = vor.u32 %v2449, %v2450
        %v2453 = vsel %vm2250, %v2445, %v2452
        %v2454 = vrot.slane %v2449, 4
        %v2456 = vshrl.u32 %v2240, 16
        %v2458 = vrot.slane %v2456, 7
        %v2459 = vshll.u32 %v2240, 16
        %v2461 = vor.u32 %v2458, %v2459
        %v2462 = vrot.slane %v2458, 4
        %v2464 = vshrl.u32 %v2241, 16
        %v2466 = vrot.slane %v2464, 7
        %v2467 = vshll.u32 %v2241, 16
        %v2469 = vor.u32 %v2466, %v2467
        %v2470 = vsel %vm2250, %v2462, %v2469
        %v2471 = vrot.slane %v2466, 4
        %v2473 = vshrl.u32 %v2242, 16
        %v2475 = vrot.slane %v2473, 7
        %v2476 = vshll.u32 %v2242, 16
        %v2478 = vor.u32 %v2475, %v2476
        %v2479 = vrot.slane %v2475, 4
        %v2481 = vshrl.u32 %v2243, 16
        %v2483 = vrot.slane %v2481, 7
        %v2484 = vshll.u32 %v2243, 16
        %v2486 = vor.u32 %v2483, %v2484
        %v2487 = vsel %vm2250, %v2479, %v2486
        %v2488 = vrot.slane %v2483, 4
        %v2490 = vshrl.u32 %v2244, 16
        %v2492 = vrot.slane %v2490, 7
        %v2493 = vshll.u32 %v2244, 16
        %v2495 = vor.u32 %v2492, %v2493
        %v2496 = vrot.slane %v2492, 4
        %v2498 = vshrl.u32 %v2245, 16
        %v2500 = vrot.slane %v2498, 7
        %v2501 = vshll.u32 %v2245, 16
        %v2503 = vor.u32 %v2500, %v2501
        %v2504 = vsel %vm2250, %v2496, %v2503
        %v2505 = vrot.slane %v2500, 4
        %v2507 = vshrl.u32 %v2246, 16
        %v2509 = vrot.slane %v2507, 7
        %v2510 = vshll.u32 %v2246, 16
        %v2512 = vor.u32 %v2509, %v2510
        %v2513 = vrot.slane %v2509, 4
        %v2515 = vshrl.u32 %v2247, 16
        %v2517 = vrot.slane %v2515, 7
        %v2518 = vshll.u32 %v2247, 16
        %v2520 = vor.u32 %v2517, %v2518
        %v2521 = vsel %vm2250, %v2513, %v2520
        %v2522 = vrot.slane %v2517, 4
        %s2571 = scalar_lea.vmem [#allocation2], 12
        %vm2572 = vcmask 60416
        %vm2573 = vsmask.f32 7938
        %vm2574 = vmand %vm2572, %vm2573
        %v2575 = vld [vmem:[%s2571] sm:$0xf]
        %v2576 = vsel %vm2574, %v2257, %v2575
        %2577 = vst [vmem:[%s2571] sm:$0xf] %v2576
        %2578 = vst.msk [vmem:[%s2571 + $0x4] sm:$0xf] %vm2096, %v2266
        %vm2579 = vcmask 57344
        %vm2580 = vmand %vm2579, %vm2248
        %v2581 = vld [vmem:[%s2571 + $0x8] sm:$0x1]
        %v2582 = vsel %vm2580, %v2267, %v2581
        %2583 = vst [vmem:[%s2571 + $0x8] sm:$0x1] %v2582
        %v2584 = vld [vmem:[%s2571 + $0xc] sm:$0xf]
        %v2585 = vsel %vm2574, %v2274, %v2584
        %2586 = vst [vmem:[%s2571 + $0xc] sm:$0xf] %v2585
        %2587 = vst.msk [vmem:[%s2571 + $0x10] sm:$0xf] %vm2096, %v2283
        %v2588 = vld [vmem:[%s2571 + $0x14] sm:$0x1]
        %v2589 = vsel %vm2580, %v2284, %v2588
        %2590 = vst [vmem:[%s2571 + $0x14] sm:$0x1] %v2589
        %v2591 = vld [vmem:[%s2571 + $0x18] sm:$0xf]
        %v2592 = vsel %vm2574, %v2291, %v2591
        %2593 = vst [vmem:[%s2571 + $0x18] sm:$0xf] %v2592
        %2594 = vst.msk [vmem:[%s2571 + $0x1c] sm:$0xf] %vm2096, %v2300
        %v2595 = vld [vmem:[%s2571 + $0x20] sm:$0x1]
        %v2596 = vsel %vm2580, %v2301, %v2595
        %2597 = vst [vmem:[%s2571 + $0x20] sm:$0x1] %v2596
        %v2598 = vld [vmem:[%s2571 + $0x24] sm:$0xf]
        %v2599 = vsel %vm2574, %v2308, %v2598
        %2600 = vst [vmem:[%s2571 + $0x24] sm:$0xf] %v2599
        %2601 = vst.msk [vmem:[%s2571 + $0x28] sm:$0xf] %vm2096, %v2317
        %v2602 = vld [vmem:[%s2571 + $0x2c] sm:$0x1]
        %v2603 = vsel %vm2580, %v2318, %v2602
        %2604 = vst [vmem:[%s2571 + $0x2c] sm:$0x1] %v2603
        %v2605 = vld [vmem:[%s2571 + $0x30] sm:$0xf]
        %v2606 = vsel %vm2574, %v2325, %v2605
        %2607 = vst [vmem:[%s2571 + $0x30] sm:$0xf] %v2606
        %2608 = vst.msk [vmem:[%s2571 + $0x34] sm:$0xf] %vm2096, %v2334
        %v2609 = vld [vmem:[%s2571 + $0x38] sm:$0x1]
        %v2610 = vsel %vm2580, %v2335, %v2609
        %2611 = vst [vmem:[%s2571 + $0x38] sm:$0x1] %v2610
        %v2612 = vld [vmem:[%s2571 + $0x3c] sm:$0xf]
        %v2613 = vsel %vm2574, %v2342, %v2612
        %2614 = vst [vmem:[%s2571 + $0x3c] sm:$0xf] %v2613
        %2615 = vst.msk [vmem:[%s2571 + $0x40] sm:$0xf] %vm2096, %v2351
        %v2616 = vld [vmem:[%s2571 + $0x44] sm:$0x1]
        %v2617 = vsel %vm2580, %v2352, %v2616
        %2618 = vst [vmem:[%s2571 + $0x44] sm:$0x1] %v2617
        %v2619 = vld [vmem:[%s2571 + $0x48] sm:$0xf]
        %v2620 = vsel %vm2574, %v2359, %v2619
        %2621 = vst [vmem:[%s2571 + $0x48] sm:$0xf] %v2620
        %2622 = vst.msk [vmem:[%s2571 + $0x4c] sm:$0xf] %vm2096, %v2368
        %v2623 = vld [vmem:[%s2571 + $0x50] sm:$0x1]
        %v2624 = vsel %vm2580, %v2369, %v2623
        %2625 = vst [vmem:[%s2571 + $0x50] sm:$0x1] %v2624
        %v2626 = vld [vmem:[%s2571 + $0x54] sm:$0xf]
        %v2627 = vsel %vm2574, %v2376, %v2626
        %2628 = vst [vmem:[%s2571 + $0x54] sm:$0xf] %v2627
        %2629 = vst.msk [vmem:[%s2571 + $0x58] sm:$0xf] %vm2096, %v2385
        %v2630 = vld [vmem:[%s2571 + $0x5c] sm:$0x1]
        %v2631 = vsel %vm2580, %v2386, %v2630
        %2632 = vst [vmem:[%s2571 + $0x5c] sm:$0x1] %v2631
        %v2633 = vld [vmem:[%s2571 + $0x60] sm:$0xf]
        %v2634 = vsel %vm2574, %v2393, %v2633
        %2635 = vst [vmem:[%s2571 + $0x60] sm:$0xf] %v2634
        %2636 = vst.msk [vmem:[%s2571 + $0x64] sm:$0xf] %vm2096, %v2402
        %v2637 = vld [vmem:[%s2571 + $0x68] sm:$0x1]
        %v2638 = vsel %vm2580, %v2403, %v2637
        %2639 = vst [vmem:[%s2571 + $0x68] sm:$0x1] %v2638
        %v2640 = vld [vmem:[%s2571 + $0x6c] sm:$0xf]
        %v2641 = vsel %vm2574, %v2410, %v2640
        %2642 = vst [vmem:[%s2571 + $0x6c] sm:$0xf] %v2641
        %2643 = vst.msk [vmem:[%s2571 + $0x70] sm:$0xf] %vm2096, %v2419
        %v2644 = vld [vmem:[%s2571 + $0x74] sm:$0x1]
        %v2645 = vsel %vm2580, %v2420, %v2644
        %2646 = vst [vmem:[%s2571 + $0x74] sm:$0x1] %v2645
        %v2647 = vld [vmem:[%s2571 + $0x78] sm:$0xf]
        %v2648 = vsel %vm2574, %v2427, %v2647
        %2649 = vst [vmem:[%s2571 + $0x78] sm:$0xf] %v2648
        %2650 = vst.msk [vmem:[%s2571 + $0x7c] sm:$0xf] %vm2096, %v2436
        %v2651 = vld [vmem:[%s2571 + $0x80] sm:$0x1]
        %v2652 = vsel %vm2580, %v2437, %v2651
        %2653 = vst [vmem:[%s2571 + $0x80] sm:$0x1] %v2652
        %v2654 = vld [vmem:[%s2571 + $0x84] sm:$0xf]
        %v2655 = vsel %vm2574, %v2444, %v2654
        %2656 = vst [vmem:[%s2571 + $0x84] sm:$0xf] %v2655
        %2657 = vst.msk [vmem:[%s2571 + $0x88] sm:$0xf] %vm2096, %v2453
        %v2658 = vld [vmem:[%s2571 + $0x8c] sm:$0x1]
        %v2659 = vsel %vm2580, %v2454, %v2658
        %2660 = vst [vmem:[%s2571 + $0x8c] sm:$0x1] %v2659
        %v2661 = vld [vmem:[%s2571 + $0x90] sm:$0xf]
        %v2662 = vsel %vm2574, %v2461, %v2661
        %2663 = vst [vmem:[%s2571 + $0x90] sm:$0xf] %v2662
        %2664 = vst.msk [vmem:[%s2571 + $0x94] sm:$0xf] %vm2096, %v2470
        %v2665 = vld [vmem:[%s2571 + $0x98] sm:$0x1]
        %v2666 = vsel %vm2580, %v2471, %v2665
        %2667 = vst [vmem:[%s2571 + $0x98] sm:$0x1] %v2666
        %v2668 = vld [vmem:[%s2571 + $0x9c] sm:$0xf]
        %v2669 = vsel %vm2574, %v2478, %v2668
        %2670 = vst [vmem:[%s2571 + $0x9c] sm:$0xf] %v2669
        %2671 = vst.msk [vmem:[%s2571 + $0xa0] sm:$0xf] %vm2096, %v2487
        %v2672 = vld [vmem:[%s2571 + $0xa4] sm:$0x1]
        %v2673 = vsel %vm2580, %v2488, %v2672
        %2674 = vst [vmem:[%s2571 + $0xa4] sm:$0x1] %v2673
        %v2675 = vld [vmem:[%s2571 + $0xa8] sm:$0xf]
        %v2676 = vsel %vm2574, %v2495, %v2675
        %2677 = vst [vmem:[%s2571 + $0xa8] sm:$0xf] %v2676
        %2678 = vst.msk [vmem:[%s2571 + $0xac] sm:$0xf] %vm2096, %v2504
        %v2679 = vld [vmem:[%s2571 + $0xb0] sm:$0x1]
        %v2680 = vsel %vm2580, %v2505, %v2679
        %2681 = vst [vmem:[%s2571 + $0xb0] sm:$0x1] %v2680
        %v2682 = vld [vmem:[%s2571 + $0xb4] sm:$0xf]
        %v2683 = vsel %vm2574, %v2512, %v2682
        %2684 = vst [vmem:[%s2571 + $0xb4] sm:$0xf] %v2683
        %2685 = vst.msk [vmem:[%s2571 + $0xb8] sm:$0xf] %vm2096, %v2521
        %v2686 = vld [vmem:[%s2571 + $0xbc] sm:$0x1]
        %v2687 = vsel %vm2580, %v2522, %v2686
        %2688 = vst [vmem:[%s2571 + $0xbc] sm:$0x1] %v2687
        %v2689 = vld [vmem:[#allocation2] sm:$0xf]
        %v2690 = vld [vmem:[#allocation2 + $0x4] sm:$0xf]
        %v2691 = vld [vmem:[#allocation2 + $0x8] sm:$0x1]
        %v2692 = vld [vmem:[#allocation2 + $0xc] sm:$0xf]
        %v2693 = vld [vmem:[#allocation2 + $0x10] sm:$0xf]
        %v2694 = vld [vmem:[#allocation2 + $0x14] sm:$0x1]
        %v2695 = vld [vmem:[#allocation2 + $0x18] sm:$0xf]
        %v2696 = vld [vmem:[#allocation2 + $0x1c] sm:$0xf]
        %v2697 = vld [vmem:[#allocation2 + $0x20] sm:$0x1]
        %v2698 = vld [vmem:[#allocation2 + $0x24] sm:$0xf]
        %v2699 = vld [vmem:[#allocation2 + $0x28] sm:$0xf]
        %v2700 = vld [vmem:[#allocation2 + $0x2c] sm:$0x1]
        %v2701 = vld [vmem:[#allocation2 + $0x30] sm:$0xf]
        %v2702 = vld [vmem:[#allocation2 + $0x34] sm:$0xf]
        %v2703 = vld [vmem:[#allocation2 + $0x38] sm:$0x1]
        %v2704 = vld [vmem:[#allocation2 + $0x3c] sm:$0xf]
        %v2705 = vld [vmem:[#allocation2 + $0x40] sm:$0xf]
        %v2706 = vld [vmem:[#allocation2 + $0x44] sm:$0x1]
        %v2707 = vld [vmem:[#allocation2 + $0x48] sm:$0xf]
        %v2708 = vld [vmem:[#allocation2 + $0x4c] sm:$0xf]
        %v2709 = vld [vmem:[#allocation2 + $0x50] sm:$0x1]
        %v2710 = vld [vmem:[#allocation2 + $0x54] sm:$0xf]
        %v2711 = vld [vmem:[#allocation2 + $0x58] sm:$0xf]
        %v2712 = vld [vmem:[#allocation2 + $0x5c] sm:$0x1]
        %v2713 = vld [vmem:[#allocation2 + $0x60] sm:$0xf]
        %v2714 = vld [vmem:[#allocation2 + $0x64] sm:$0xf]
        %v2715 = vld [vmem:[#allocation2 + $0x68] sm:$0x1]
        %v2716 = vld [vmem:[#allocation2 + $0x6c] sm:$0xf]
        %v2717 = vld [vmem:[#allocation2 + $0x70] sm:$0xf]
        %v2718 = vld [vmem:[#allocation2 + $0x74] sm:$0x1]
        %v2719 = vld [vmem:[#allocation2 + $0x78] sm:$0xf]
        %v2720 = vld [vmem:[#allocation2 + $0x7c] sm:$0xf]
        %v2721 = vld [vmem:[#allocation2 + $0x80] sm:$0x1]
        %v2722 = vld [vmem:[#allocation2 + $0x84] sm:$0xf]
        %v2723 = vld [vmem:[#allocation2 + $0x88] sm:$0xf]
        %v2724 = vld [vmem:[#allocation2 + $0x8c] sm:$0x1]
        %v2725 = vld [vmem:[#allocation2 + $0x90] sm:$0xf]
        %v2726 = vld [vmem:[#allocation2 + $0x94] sm:$0xf]
        %v2727 = vld [vmem:[#allocation2 + $0x98] sm:$0x1]
        %v2728 = vld [vmem:[#allocation2 + $0x9c] sm:$0xf]
        %v2729 = vld [vmem:[#allocation2 + $0xa0] sm:$0xf]
        %v2730 = vld [vmem:[#allocation2 + $0xa4] sm:$0x1]
        %v2731 = vld [vmem:[#allocation2 + $0xa8] sm:$0xf]
        %v2732 = vld [vmem:[#allocation2 + $0xac] sm:$0xf]
        %v2733 = vld [vmem:[#allocation2 + $0xb0] sm:$0x1]
        %v2734 = vld [vmem:[#allocation2 + $0xb4] sm:$0xf]
        %v2735 = vld [vmem:[#allocation2 + $0xb8] sm:$0xf]
        %v2736 = vld [vmem:[#allocation2 + $0xbc] sm:$0x1]
        %v2737 = vld [vmem:[#allocation2 + $0xc0] sm:$0xf]
        %v2738 = vld [vmem:[#allocation2 + $0xc4] sm:$0xf]
        %v2739 = vld [vmem:[#allocation2 + $0xc8] sm:$0x1]
        %v2740 = vld [vmem:[#allocation2 + $0xcc] sm:$0xf]
        %v2741 = vld [vmem:[#allocation2 + $0xd0] sm:$0xf]
        %v2742 = vld [vmem:[#allocation2 + $0xd4] sm:$0x1]
        %v2744 = vshrl.u32 %v2689, 16
        %v2746 = vrot.slane %v2744, 4
        %v2747 = vshll.u32 %v2689, 16
        %v2749 = vrot.slane %v2747, 5
        %v2750 = vor.u32 %v2746, %v2749
        %v2751 = vrot.slane %v2750, 4
        %v2753 = vshll.u32 %v2690, 16
        %v2755 = vrot.slane %v2753, 5
        %v2756 = vsel %vm454, %v2751, %v2755
        %v2757 = vshrl.u32 %v2690, 16
        %v2759 = vrot.slane %v2757, 4
        %v2760 = vor.u32 %v2759, %v2755
        %v2761 = vrot.slane %v2760, 4
        %v2763 = vshll.u32 %v2691, 16
        %v2765 = vrot.slane %v2763, 5
        %v2766 = vsel %vm454, %v2761, %v2765
        %v2768 = vshrl.u32 %v2692, 16
        %v2770 = vrot.slane %v2768, 4
        %v2771 = vshll.u32 %v2692, 16
        %v2773 = vrot.slane %v2771, 5
        %v2774 = vor.u32 %v2770, %v2773
        %v2775 = vrot.slane %v2774, 4
        %v2777 = vshll.u32 %v2693, 16
        %v2779 = vrot.slane %v2777, 5
        %v2780 = vsel %vm454, %v2775, %v2779
        %v2781 = vshrl.u32 %v2693, 16
        %v2783 = vrot.slane %v2781, 4
        %v2784 = vor.u32 %v2783, %v2779
        %v2785 = vrot.slane %v2784, 4
        %v2787 = vshll.u32 %v2694, 16
        %v2789 = vrot.slane %v2787, 5
        %v2790 = vsel %vm454, %v2785, %v2789
        %v2792 = vshrl.u32 %v2695, 16
        %v2794 = vrot.slane %v2792, 4
        %v2795 = vshll.u32 %v2695, 16
        %v2797 = vrot.slane %v2795, 5
        %v2798 = vor.u32 %v2794, %v2797
        %v2799 = vrot.slane %v2798, 4
        %v2801 = vshll.u32 %v2696, 16
        %v2803 = vrot.slane %v2801, 5
        %v2804 = vsel %vm454, %v2799, %v2803
        %v2805 = vshrl.u32 %v2696, 16
        %v2807 = vrot.slane %v2805, 4
        %v2808 = vor.u32 %v2807, %v2803
        %v2809 = vrot.slane %v2808, 4
        %v2811 = vshll.u32 %v2697, 16
        %v2813 = vrot.slane %v2811, 5
        %v2814 = vsel %vm454, %v2809, %v2813
        %v2816 = vshrl.u32 %v2698, 16
        %v2818 = vrot.slane %v2816, 4
        %v2819 = vshll.u32 %v2698, 16
        %v2821 = vrot.slane %v2819, 5
        %v2822 = vor.u32 %v2818, %v2821
        %v2823 = vrot.slane %v2822, 4
        %v2825 = vshll.u32 %v2699, 16
        %v2827 = vrot.slane %v2825, 5
        %v2828 = vsel %vm454, %v2823, %v2827
        %v2829 = vshrl.u32 %v2699, 16
        %v2831 = vrot.slane %v2829, 4
        %v2832 = vor.u32 %v2831, %v2827
        %v2833 = vrot.slane %v2832, 4
        %v2835 = vshll.u32 %v2700, 16
        %v2837 = vrot.slane %v2835, 5
        %v2838 = vsel %vm454, %v2833, %v2837
        %v2840 = vshrl.u32 %v2701, 16
        %v2842 = vrot.slane %v2840, 4
        %v2843 = vshll.u32 %v2701, 16
        %v2845 = vrot.slane %v2843, 5
        %v2846 = vor.u32 %v2842, %v2845
        %v2847 = vrot.slane %v2846, 4
        %v2849 = vshll.u32 %v2702, 16
        %v2851 = vrot.slane %v2849, 5
        %v2852 = vsel %vm454, %v2847, %v2851
        %v2853 = vshrl.u32 %v2702, 16
        %v2855 = vrot.slane %v2853, 4
        %v2856 = vor.u32 %v2855, %v2851
        %v2857 = vrot.slane %v2856, 4
        %v2859 = vshll.u32 %v2703, 16
        %v2861 = vrot.slane %v2859, 5
        %v2862 = vsel %vm454, %v2857, %v2861
        %v2864 = vshrl.u32 %v2704, 16
        %v2866 = vrot.slane %v2864, 4
        %v2867 = vshll.u32 %v2704, 16
        %v2869 = vrot.slane %v2867, 5
        %v2870 = vor.u32 %v2866, %v2869
        %v2871 = vrot.slane %v2870, 4
        %v2873 = vshll.u32 %v2705, 16
        %v2875 = vrot.slane %v2873, 5
        %v2876 = vsel %vm454, %v2871, %v2875
        %v2877 = vshrl.u32 %v2705, 16
        %v2879 = vrot.slane %v2877, 4
        %v2880 = vor.u32 %v2879, %v2875
        %v2881 = vrot.slane %v2880, 4
        %v2883 = vshll.u32 %v2706, 16
        %v2885 = vrot.slane %v2883, 5
        %v2886 = vsel %vm454, %v2881, %v2885
        %v2888 = vshrl.u32 %v2707, 16
        %v2890 = vrot.slane %v2888, 4
        %v2891 = vshll.u32 %v2707, 16
        %v2893 = vrot.slane %v2891, 5
        %v2894 = vor.u32 %v2890, %v2893
        %v2895 = vrot.slane %v2894, 4
        %v2897 = vshll.u32 %v2708, 16
        %v2899 = vrot.slane %v2897, 5
        %v2900 = vsel %vm454, %v2895, %v2899
        %v2901 = vshrl.u32 %v2708, 16
        %v2903 = vrot.slane %v2901, 4
        %v2904 = vor.u32 %v2903, %v2899
        %v2905 = vrot.slane %v2904, 4
        %v2907 = vshll.u32 %v2709, 16
        %v2909 = vrot.slane %v2907, 5
        %v2910 = vsel %vm454, %v2905, %v2909
        %v2912 = vshrl.u32 %v2710, 16
        %v2914 = vrot.slane %v2912, 4
        %v2915 = vshll.u32 %v2710, 16
        %v2917 = vrot.slane %v2915, 5
        %v2918 = vor.u32 %v2914, %v2917
        %v2919 = vrot.slane %v2918, 4
        %v2921 = vshll.u32 %v2711, 16
        %v2923 = vrot.slane %v2921, 5
        %v2924 = vsel %vm454, %v2919, %v2923
        %v2925 = vshrl.u32 %v2711, 16
        %v2927 = vrot.slane %v2925, 4
        %v2928 = vor.u32 %v2927, %v2923
        %v2929 = vrot.slane %v2928, 4
        %v2931 = vshll.u32 %v2712, 16
        %v2933 = vrot.slane %v2931, 5
        %v2934 = vsel %vm454, %v2929, %v2933
        %v2936 = vshrl.u32 %v2713, 16
        %v2938 = vrot.slane %v2936, 4
        %v2939 = vshll.u32 %v2713, 16
        %v2941 = vrot.slane %v2939, 5
        %v2942 = vor.u32 %v2938, %v2941
        %v2943 = vrot.slane %v2942, 4
        %v2945 = vshll.u32 %v2714, 16
        %v2947 = vrot.slane %v2945, 5
        %v2948 = vsel %vm454, %v2943, %v2947
        %v2949 = vshrl.u32 %v2714, 16
        %v2951 = vrot.slane %v2949, 4
        %v2952 = vor.u32 %v2951, %v2947
        %v2953 = vrot.slane %v2952, 4
        %v2955 = vshll.u32 %v2715, 16
        %v2957 = vrot.slane %v2955, 5
        %v2958 = vsel %vm454, %v2953, %v2957
        %v2960 = vshrl.u32 %v2716, 16
        %v2962 = vrot.slane %v2960, 4
        %v2963 = vshll.u32 %v2716, 16
        %v2965 = vrot.slane %v2963, 5
        %v2966 = vor.u32 %v2962, %v2965
        %v2967 = vrot.slane %v2966, 4
        %v2969 = vshll.u32 %v2717, 16
        %v2971 = vrot.slane %v2969, 5
        %v2972 = vsel %vm454, %v2967, %v2971
        %v2973 = vshrl.u32 %v2717, 16
        %v2975 = vrot.slane %v2973, 4
        %v2976 = vor.u32 %v2975, %v2971
        %v2977 = vrot.slane %v2976, 4
        %v2979 = vshll.u32 %v2718, 16
        %v2981 = vrot.slane %v2979, 5
        %v2982 = vsel %vm454, %v2977, %v2981
        %v2984 = vshrl.u32 %v2719, 16
        %v2986 = vrot.slane %v2984, 4
        %v2987 = vshll.u32 %v2719, 16
        %v2989 = vrot.slane %v2987, 5
        %v2990 = vor.u32 %v2986, %v2989
        %v2991 = vrot.slane %v2990, 4
        %v2993 = vshll.u32 %v2720, 16
        %v2995 = vrot.slane %v2993, 5
        %v2996 = vsel %vm454, %v2991, %v2995
        %v2997 = vshrl.u32 %v2720, 16
        %v2999 = vrot.slane %v2997, 4
        %v3000 = vor.u32 %v2999, %v2995
        %v3001 = vrot.slane %v3000, 4
        %v3003 = vshll.u32 %v2721, 16
        %v3005 = vrot.slane %v3003, 5
        %v3006 = vsel %vm454, %v3001, %v3005
        %v3008 = vshrl.u32 %v2722, 16
        %v3010 = vrot.slane %v3008, 4
        %v3011 = vshll.u32 %v2722, 16
        %v3013 = vrot.slane %v3011, 5
        %v3014 = vor.u32 %v3010, %v3013
        %v3015 = vrot.slane %v3014, 4
        %v3017 = vshll.u32 %v2723, 16
        %v3019 = vrot.slane %v3017, 5
        %v3020 = vsel %vm454, %v3015, %v3019
        %v3021 = vshrl.u32 %v2723, 16
        %v3023 = vrot.slane %v3021, 4
        %v3024 = vor.u32 %v3023, %v3019
        %v3025 = vrot.slane %v3024, 4
        %v3027 = vshll.u32 %v2724, 16
        %v3029 = vrot.slane %v3027, 5
        %v3030 = vsel %vm454, %v3025, %v3029
        %v3032 = vshrl.u32 %v2725, 16
        %v3034 = vrot.slane %v3032, 4
        %v3035 = vshll.u32 %v2725, 16
        %v3037 = vrot.slane %v3035, 5
        %v3038 = vor.u32 %v3034, %v3037
        %v3039 = vrot.slane %v3038, 4
        %v3041 = vshll.u32 %v2726, 16
        %v3043 = vrot.slane %v3041, 5
        %v3044 = vsel %vm454, %v3039, %v3043
        %v3045 = vshrl.u32 %v2726, 16
        %v3047 = vrot.slane %v3045, 4
        %v3048 = vor.u32 %v3047, %v3043
        %v3049 = vrot.slane %v3048, 4
        %v3051 = vshll.u32 %v2727, 16
        %v3053 = vrot.slane %v3051, 5
        %v3054 = vsel %vm454, %v3049, %v3053
        %v3056 = vshrl.u32 %v2728, 16
        %v3058 = vrot.slane %v3056, 4
        %v3059 = vshll.u32 %v2728, 16
        %v3061 = vrot.slane %v3059, 5
        %v3062 = vor.u32 %v3058, %v3061
        %v3063 = vrot.slane %v3062, 4
        %v3065 = vshll.u32 %v2729, 16
        %v3067 = vrot.slane %v3065, 5
        %v3068 = vsel %vm454, %v3063, %v3067
        %v3069 = vshrl.u32 %v2729, 16
        %v3071 = vrot.slane %v3069, 4
        %v3072 = vor.u32 %v3071, %v3067
        %v3073 = vrot.slane %v3072, 4
        %v3075 = vshll.u32 %v2730, 16
        %v3077 = vrot.slane %v3075, 5
        %v3078 = vsel %vm454, %v3073, %v3077
        %v3080 = vshrl.u32 %v2731, 16
        %v3082 = vrot.slane %v3080, 4
        %v3083 = vshll.u32 %v2731, 16
        %v3085 = vrot.slane %v3083, 5
        %v3086 = vor.u32 %v3082, %v3085
        %v3087 = vrot.slane %v3086, 4
        %v3089 = vshll.u32 %v2732, 16
        %v3091 = vrot.slane %v3089, 5
        %v3092 = vsel %vm454, %v3087, %v3091
        %v3093 = vshrl.u32 %v2732, 16
        %v3095 = vrot.slane %v3093, 4
        %v3096 = vor.u32 %v3095, %v3091
        %v3097 = vrot.slane %v3096, 4
        %v3099 = vshll.u32 %v2733, 16
        %v3101 = vrot.slane %v3099, 5
        %v3102 = vsel %vm454, %v3097, %v3101
        %v3104 = vshrl.u32 %v2734, 16
        %v3106 = vrot.slane %v3104, 4
        %v3107 = vshll.u32 %v2734, 16
        %v3109 = vrot.slane %v3107, 5
        %v3110 = vor.u32 %v3106, %v3109
        %v3111 = vrot.slane %v3110, 4
        %v3113 = vshll.u32 %v2735, 16
        %v3115 = vrot.slane %v3113, 5
        %v3116 = vsel %vm454, %v3111, %v3115
        %v3117 = vshrl.u32 %v2735, 16
        %v3119 = vrot.slane %v3117, 4
        %v3120 = vor.u32 %v3119, %v3115
        %v3121 = vrot.slane %v3120, 4
        %v3123 = vshll.u32 %v2736, 16
        %v3125 = vrot.slane %v3123, 5
        %v3126 = vsel %vm454, %v3121, %v3125
        %v3175 = vrot.slane %v2689, 5
        %v3176 = vrot.slane %v3175, 4
        %v3177 = vrot.slane %v2690, 5
        %v3178 = vsel %vm889, %v3176, %v3177
        %v3179 = vrot.slane %v3177, 4
        %v3180 = vrot.slane %v2691, 5
        %v3181 = vsel %vm889, %v3179, %v3180
        %v3182 = vrot.slane %v2692, 5
        %v3183 = vrot.slane %v3182, 4
        %v3184 = vrot.slane %v2693, 5
        %v3185 = vsel %vm889, %v3183, %v3184
        %v3186 = vrot.slane %v3184, 4
        %v3187 = vrot.slane %v2694, 5
        %v3188 = vsel %vm889, %v3186, %v3187
        %v3189 = vrot.slane %v2695, 5
        %v3190 = vrot.slane %v3189, 4
        %v3191 = vrot.slane %v2696, 5
        %v3192 = vsel %vm889, %v3190, %v3191
        %v3193 = vrot.slane %v3191, 4
        %v3194 = vrot.slane %v2697, 5
        %v3195 = vsel %vm889, %v3193, %v3194
        %v3196 = vrot.slane %v2698, 5
        %v3197 = vrot.slane %v3196, 4
        %v3198 = vrot.slane %v2699, 5
        %v3199 = vsel %vm889, %v3197, %v3198
        %v3200 = vrot.slane %v3198, 4
        %v3201 = vrot.slane %v2700, 5
        %v3202 = vsel %vm889, %v3200, %v3201
        %v3203 = vrot.slane %v2701, 5
        %v3204 = vrot.slane %v3203, 4
        %v3205 = vrot.slane %v2702, 5
        %v3206 = vsel %vm889, %v3204, %v3205
        %v3207 = vrot.slane %v3205, 4
        %v3208 = vrot.slane %v2703, 5
        %v3209 = vsel %vm889, %v3207, %v3208
        %v3210 = vrot.slane %v2704, 5
        %v3211 = vrot.slane %v3210, 4
        %v3212 = vrot.slane %v2705, 5
        %v3213 = vsel %vm889, %v3211, %v3212
        %v3214 = vrot.slane %v3212, 4
        %v3215 = vrot.slane %v2706, 5
        %v3216 = vsel %vm889, %v3214, %v3215
        %v3217 = vrot.slane %v2707, 5
        %v3218 = vrot.slane %v3217, 4
        %v3219 = vrot.slane %v2708, 5
        %v3220 = vsel %vm889, %v3218, %v3219
        %v3221 = vrot.slane %v3219, 4
        %v3222 = vrot.slane %v2709, 5
        %v3223 = vsel %vm889, %v3221, %v3222
        %v3224 = vrot.slane %v2710, 5
        %v3225 = vrot.slane %v3224, 4
        %v3226 = vrot.slane %v2711, 5
        %v3227 = vsel %vm889, %v3225, %v3226
        %v3228 = vrot.slane %v3226, 4
        %v3229 = vrot.slane %v2712, 5
        %v3230 = vsel %vm889, %v3228, %v3229
        %v3231 = vrot.slane %v2713, 5
        %v3232 = vrot.slane %v3231, 4
        %v3233 = vrot.slane %v2714, 5
        %v3234 = vsel %vm889, %v3232, %v3233
        %v3235 = vrot.slane %v3233, 4
        %v3236 = vrot.slane %v2715, 5
        %v3237 = vsel %vm889, %v3235, %v3236
        %v3238 = vrot.slane %v2716, 5
        %v3239 = vrot.slane %v3238, 4
        %v3240 = vrot.slane %v2717, 5
        %v3241 = vsel %vm889, %v3239, %v3240
        %v3242 = vrot.slane %v3240, 4
        %v3243 = vrot.slane %v2718, 5
        %v3244 = vsel %vm889, %v3242, %v3243
        %v3245 = vrot.slane %v2719, 5
        %v3246 = vrot.slane %v3245, 4
        %v3247 = vrot.slane %v2720, 5
        %v3248 = vsel %vm889, %v3246, %v3247
        %v3249 = vrot.slane %v3247, 4
        %v3250 = vrot.slane %v2721, 5
        %v3251 = vsel %vm889, %v3249, %v3250
        %v3252 = vrot.slane %v2722, 5
        %v3253 = vrot.slane %v3252, 4
        %v3254 = vrot.slane %v2723, 5
        %v3255 = vsel %vm889, %v3253, %v3254
        %v3256 = vrot.slane %v3254, 4
        %v3257 = vrot.slane %v2724, 5
        %v3258 = vsel %vm889, %v3256, %v3257
        %v3259 = vrot.slane %v2725, 5
        %v3260 = vrot.slane %v3259, 4
        %v3261 = vrot.slane %v2726, 5
        %v3262 = vsel %vm889, %v3260, %v3261
        %v3263 = vrot.slane %v3261, 4
        %v3264 = vrot.slane %v2727, 5
        %v3265 = vsel %vm889, %v3263, %v3264
        %v3266 = vrot.slane %v2728, 5
        %v3267 = vrot.slane %v3266, 4
        %v3268 = vrot.slane %v2729, 5
        %v3269 = vsel %vm889, %v3267, %v3268
        %v3270 = vrot.slane %v3268, 4
        %v3271 = vrot.slane %v2730, 5
        %v3272 = vsel %vm889, %v3270, %v3271
        %v3273 = vrot.slane %v2731, 5
        %v3274 = vrot.slane %v3273, 4
        %v3275 = vrot.slane %v2732, 5
        %v3276 = vsel %vm889, %v3274, %v3275
        %v3277 = vrot.slane %v3275, 4
        %v3278 = vrot.slane %v2733, 5
        %v3279 = vsel %vm889, %v3277, %v3278
        %v3280 = vrot.slane %v2734, 5
        %v3281 = vrot.slane %v3280, 4
        %v3282 = vrot.slane %v2735, 5
        %v3283 = vsel %vm889, %v3281, %v3282
        %v3284 = vrot.slane %v3282, 4
        %v3285 = vrot.slane %v2736, 5
        %v3286 = vsel %vm889, %v3284, %v3285
        %v3288 = vshrl.u32 %v2737, 16
        %v3290 = vrot.slane %v3288, 4
        %v3291 = vshll.u32 %v2737, 16
        %v3293 = vrot.slane %v3291, 5
        %v3294 = vor.u32 %v3290, %v3293
        %v3295 = vrot.slane %v3294, 4
        %v3297 = vshll.u32 %v2738, 16
        %v3299 = vrot.slane %v3297, 5
        %v3300 = vsel %vm454, %v3295, %v3299
        %v3301 = vshrl.u32 %v2738, 16
        %v3303 = vrot.slane %v3301, 4
        %v3304 = vor.u32 %v3303, %v3299
        %v3305 = vrot.slane %v3304, 4
        %v3307 = vshll.u32 %v2739, 16
        %v3309 = vrot.slane %v3307, 5
        %v3310 = vsel %vm454, %v3305, %v3309
        %v3314 = vrot.slane %v2737, 5
        %v3315 = vrot.slane %v3314, 4
        %v3316 = vrot.slane %v2738, 5
        %v3317 = vsel %vm889, %v3315, %v3316
        %v3318 = vrot.slane %v3316, 4
        %v3319 = vrot.slane %v2739, 5
        %v3320 = vsel %vm889, %v3318, %v3319
        %v3322 = vshrl.u32 %v2740, 16
        %v3324 = vrot.slane %v3322, 4
        %v3325 = vshll.u32 %v2740, 16
        %v3327 = vrot.slane %v3325, 5
        %v3328 = vor.u32 %v3324, %v3327
        %v3329 = vrot.slane %v3328, 4
        %v3331 = vshll.u32 %v2741, 16
        %v3333 = vrot.slane %v3331, 5
        %v3334 = vsel %vm454, %v3329, %v3333
        %v3335 = vshrl.u32 %v2741, 16
        %v3337 = vrot.slane %v3335, 4
        %v3338 = vor.u32 %v3337, %v3333
        %v3339 = vrot.slane %v3338, 4
        %v3341 = vshll.u32 %v2742, 16
        %v3343 = vrot.slane %v3341, 5
        %v3344 = vsel %vm454, %v3339, %v3343
        %v3348 = vrot.slane %v2740, 5
        %v3349 = vrot.slane %v3348, 4
        %v3350 = vrot.slane %v2741, 5
        %v3351 = vsel %vm889, %v3349, %v3350
        %v3352 = vrot.slane %v3350, 4
        %v3353 = vrot.slane %v2742, 5
        %v3354 = vsel %vm889, %v3352, %v3353
        %v3355 = vunpack.c.l.b16 %v2689
        %v3356 = vunpack.c.l.b16 %v2690
        %v3357 = vunpack.c.l.b16 %v2692
        %v3358 = vunpack.c.l.b16 %v2693
        %v3359 = vunpack.c.l.b16 %v2695
        %v3360 = vunpack.c.l.b16 %v2696
        %v3361 = vunpack.c.l.b16 %v2698
        %v3362 = vunpack.c.l.b16 %v2699
        %v3363 = vunpack.c.l.b16 %v2701
        %v3364 = vunpack.c.l.b16 %v2702
        %v3365 = vunpack.c.l.b16 %v2704
        %v3366 = vunpack.c.l.b16 %v2705
        %v3367 = vunpack.c.l.b16 %v2707
        %v3368 = vunpack.c.l.b16 %v2708
        %v3369 = vunpack.c.l.b16 %v2710
        %v3370 = vunpack.c.l.b16 %v2711
        %v3371 = vunpack.c.l.b16 %v2713
        %v3372 = vunpack.c.l.b16 %v2714
        %v3373 = vunpack.c.l.b16 %v2716
        %v3374 = vunpack.c.l.b16 %v2717
        %v3375 = vunpack.c.l.b16 %v2719
        %v3376 = vunpack.c.l.b16 %v2720
        %v3377 = vunpack.c.l.b16 %v2722
        %v3378 = vunpack.c.l.b16 %v2723
        %v3379 = vunpack.c.l.b16 %v2725
        %v3380 = vunpack.c.l.b16 %v2726
        %v3381 = vunpack.c.l.b16 %v2728
        %v3382 = vunpack.c.l.b16 %v2729
        %v3383 = vunpack.c.l.b16 %v2731
        %v3384 = vunpack.c.l.b16 %v2732
        %v3385 = vunpack.c.l.b16 %v2734
        %v3386 = vunpack.c.l.b16 %v2735
        %v3387 = vpack.c.b16 %v3356, %v3355
        %v3388 = vpack.c.b16 %v3358, %v3357
        %v3389 = vpack.c.b16 %v3360, %v3359
        %v3390 = vpack.c.b16 %v3362, %v3361
        %v3391 = vpack.c.b16 %v3364, %v3363
        %v3392 = vpack.c.b16 %v3366, %v3365
        %v3393 = vpack.c.b16 %v3368, %v3367
        %v3394 = vpack.c.b16 %v3370, %v3369
        %v3395 = vpack.c.b16 %v3372, %v3371
        %v3396 = vpack.c.b16 %v3374, %v3373
        %v3397 = vpack.c.b16 %v3376, %v3375
        %v3398 = vpack.c.b16 %v3378, %v3377
        %v3399 = vpack.c.b16 %v3380, %v3379
        %v3400 = vpack.c.b16 %v3382, %v3381
        %v3401 = vpack.c.b16 %v3384, %v3383
        %v3402 = vpack.c.b16 %v3386, %v3385
        %v3403 = vunpack.c.l.b16 %v2756
        %v3404 = vunpack.c.l.b16 %v2766
        %v3405 = vunpack.c.l.b16 %v2780
        %v3406 = vunpack.c.l.b16 %v2790
        %v3407 = vunpack.c.l.b16 %v2804
        %v3408 = vunpack.c.l.b16 %v2814
        %v3409 = vunpack.c.l.b16 %v2828
        %v3410 = vunpack.c.l.b16 %v2838
        %v3411 = vunpack.c.l.b16 %v2852
        %v3412 = vunpack.c.l.b16 %v2862
        %v3413 = vunpack.c.l.b16 %v2876
        %v3414 = vunpack.c.l.b16 %v2886
        %v3415 = vunpack.c.l.b16 %v2900
        %v3416 = vunpack.c.l.b16 %v2910
        %v3417 = vunpack.c.l.b16 %v2924
        %v3418 = vunpack.c.l.b16 %v2934
        %v3419 = vunpack.c.l.b16 %v2948
        %v3420 = vunpack.c.l.b16 %v2958
        %v3421 = vunpack.c.l.b16 %v2972
        %v3422 = vunpack.c.l.b16 %v2982
        %v3423 = vunpack.c.l.b16 %v2996
        %v3424 = vunpack.c.l.b16 %v3006
        %v3425 = vunpack.c.l.b16 %v3020
        %v3426 = vunpack.c.l.b16 %v3030
        %v3427 = vunpack.c.l.b16 %v3044
        %v3428 = vunpack.c.l.b16 %v3054
        %v3429 = vunpack.c.l.b16 %v3068
        %v3430 = vunpack.c.l.b16 %v3078
        %v3431 = vunpack.c.l.b16 %v3092
        %v3432 = vunpack.c.l.b16 %v3102
        %v3433 = vunpack.c.l.b16 %v3116
        %v3434 = vunpack.c.l.b16 %v3126
        %v3435 = vpack.c.b16 %v3404, %v3403
        %v3436 = vpack.c.b16 %v3406, %v3405
        %v3437 = vpack.c.b16 %v3408, %v3407
        %v3438 = vpack.c.b16 %v3410, %v3409
        %v3439 = vpack.c.b16 %v3412, %v3411
        %v3440 = vpack.c.b16 %v3414, %v3413
        %v3441 = vpack.c.b16 %v3416, %v3415
        %v3442 = vpack.c.b16 %v3418, %v3417
        %v3443 = vpack.c.b16 %v3420, %v3419
        %v3444 = vpack.c.b16 %v3422, %v3421
        %v3445 = vpack.c.b16 %v3424, %v3423
        %v3446 = vpack.c.b16 %v3426, %v3425
        %v3447 = vpack.c.b16 %v3428, %v3427
        %v3448 = vpack.c.b16 %v3430, %v3429
        %v3449 = vpack.c.b16 %v3432, %v3431
        %v3450 = vpack.c.b16 %v3434, %v3433
        %3451 = vrot.lane.b32.xlu0 %v3435, 8
        %v3452 = vpop.permute.xlu0 %3451
        %3453 = vrot.lane.b32.xlu0 %v3436, 8
        %v3454 = vpop.permute.xlu0 %3453
        %3455 = vrot.lane.b32.xlu0 %v3437, 8
        %v3456 = vpop.permute.xlu0 %3455
        %3457 = vrot.lane.b32.xlu0 %v3438, 8
        %v3458 = vpop.permute.xlu0 %3457
        %3459 = vrot.lane.b32.xlu0 %v3439, 8
        %v3460 = vpop.permute.xlu0 %3459
        %3461 = vrot.lane.b32.xlu0 %v3440, 8
        %v3462 = vpop.permute.xlu0 %3461
        %3463 = vrot.lane.b32.xlu0 %v3441, 8
        %v3464 = vpop.permute.xlu0 %3463
        %3465 = vrot.lane.b32.xlu0 %v3442, 8
        %v3466 = vpop.permute.xlu0 %3465
        %3467 = vrot.lane.b32.xlu0 %v3443, 8
        %v3468 = vpop.permute.xlu0 %3467
        %3469 = vrot.lane.b32.xlu0 %v3444, 8
        %v3470 = vpop.permute.xlu0 %3469
        %3471 = vrot.lane.b32.xlu0 %v3445, 8
        %v3472 = vpop.permute.xlu0 %3471
        %3473 = vrot.lane.b32.xlu0 %v3446, 8
        %v3474 = vpop.permute.xlu0 %3473
        %3475 = vrot.lane.b32.xlu0 %v3447, 8
        %v3476 = vpop.permute.xlu0 %3475
        %3477 = vrot.lane.b32.xlu0 %v3448, 8
        %v3478 = vpop.permute.xlu0 %3477
        %3479 = vrot.lane.b32.xlu0 %v3449, 8
        %v3480 = vpop.permute.xlu0 %3479
        %3481 = vrot.lane.b32.xlu0 %v3450, 8
        %v3482 = vpop.permute.xlu0 %3481
        %v3483 = vunpack.c.l.b16 %v3178
        %v3484 = vunpack.c.l.b16 %v3181
        %v3485 = vunpack.c.l.b16 %v3185
        %v3486 = vunpack.c.l.b16 %v3188
        %v3487 = vunpack.c.l.b16 %v3192
        %v3488 = vunpack.c.l.b16 %v3195
        %v3489 = vunpack.c.l.b16 %v3199
        %v3490 = vunpack.c.l.b16 %v3202
        %v3491 = vunpack.c.l.b16 %v3206
        %v3492 = vunpack.c.l.b16 %v3209
        %v3493 = vunpack.c.l.b16 %v3213
        %v3494 = vunpack.c.l.b16 %v3216
        %v3495 = vunpack.c.l.b16 %v3220
        %v3496 = vunpack.c.l.b16 %v3223
        %v3497 = vunpack.c.l.b16 %v3227
        %v3498 = vunpack.c.l.b16 %v3230
        %v3499 = vunpack.c.l.b16 %v3234
        %v3500 = vunpack.c.l.b16 %v3237
        %v3501 = vunpack.c.l.b16 %v3241
        %v3502 = vunpack.c.l.b16 %v3244
        %v3503 = vunpack.c.l.b16 %v3248
        %v3504 = vunpack.c.l.b16 %v3251
        %v3505 = vunpack.c.l.b16 %v3255
        %v3506 = vunpack.c.l.b16 %v3258
        %v3507 = vunpack.c.l.b16 %v3262
        %v3508 = vunpack.c.l.b16 %v3265
        %v3509 = vunpack.c.l.b16 %v3269
        %v3510 = vunpack.c.l.b16 %v3272
        %v3511 = vunpack.c.l.b16 %v3276
        %v3512 = vunpack.c.l.b16 %v3279
        %v3513 = vunpack.c.l.b16 %v3283
        %v3514 = vunpack.c.l.b16 %v3286
        %v3515 = vpack.c.b16 %v3484, %v3483
        %v3516 = vpack.c.b16 %v3486, %v3485
        %v3517 = vpack.c.b16 %v3488, %v3487
        %v3518 = vpack.c.b16 %v3490, %v3489
        %v3519 = vpack.c.b16 %v3492, %v3491
        %v3520 = vpack.c.b16 %v3494, %v3493
        %v3521 = vpack.c.b16 %v3496, %v3495
        %v3522 = vpack.c.b16 %v3498, %v3497
        %v3523 = vpack.c.b16 %v3500, %v3499
        %v3524 = vpack.c.b16 %v3502, %v3501
        %v3525 = vpack.c.b16 %v3504, %v3503
        %v3526 = vpack.c.b16 %v3506, %v3505
        %v3527 = vpack.c.b16 %v3508, %v3507
        %v3528 = vpack.c.b16 %v3510, %v3509
        %v3529 = vpack.c.b16 %v3512, %v3511
        %v3530 = vpack.c.b16 %v3514, %v3513
        %3531 = vrot.lane.b32.xlu0 %v3515, 16
        %v3532 = vpop.permute.xlu0 %3531
        %3533 = vrot.lane.b32.xlu0 %v3516, 16
        %v3534 = vpop.permute.xlu0 %3533
        %3535 = vrot.lane.b32.xlu0 %v3517, 16
        %v3536 = vpop.permute.xlu0 %3535
        %3537 = vrot.lane.b32.xlu0 %v3518, 16
        %v3538 = vpop.permute.xlu0 %3537
        %3539 = vrot.lane.b32.xlu0 %v3519, 16
        %v3540 = vpop.permute.xlu0 %3539
        %3541 = vrot.lane.b32.xlu0 %v3520, 16
        %v3542 = vpop.permute.xlu0 %3541
        %3543 = vrot.lane.b32.xlu0 %v3521, 16
        %v3544 = vpop.permute.xlu0 %3543
        %3545 = vrot.lane.b32.xlu0 %v3522, 16
        %v3546 = vpop.permute.xlu0 %3545
        %3547 = vrot.lane.b32.xlu0 %v3523, 16
        %v3548 = vpop.permute.xlu0 %3547
        %3549 = vrot.lane.b32.xlu0 %v3524, 16
        %v3550 = vpop.permute.xlu0 %3549
        %3551 = vrot.lane.b32.xlu0 %v3525, 16
        %v3552 = vpop.permute.xlu0 %3551
        %3553 = vrot.lane.b32.xlu0 %v3526, 16
        %v3554 = vpop.permute.xlu0 %3553
        %3555 = vrot.lane.b32.xlu0 %v3527, 16
        %v3556 = vpop.permute.xlu0 %3555
        %3557 = vrot.lane.b32.xlu0 %v3528, 16
        %v3558 = vpop.permute.xlu0 %3557
        %3559 = vrot.lane.b32.xlu0 %v3529, 16
        %v3560 = vpop.permute.xlu0 %3559
        %3561 = vrot.lane.b32.xlu0 %v3530, 16
        %v3562 = vpop.permute.xlu0 %3561
        %v3563 = vunpack.c.l.b16 %v2737
        %v3564 = vunpack.c.l.b16 %v2738
        %v3565 = vpack.c.b16 %v3564, %v3563
        %3566 = vrot.lane.b32.xlu0 %v3388, 24
        %v3567 = vpop.permute.xlu0 %3566
        %3568 = vrot.lane.b32.xlu0 %v3389, 24
        %v3569 = vpop.permute.xlu0 %3568
        %3570 = vrot.lane.b32.xlu0 %v3390, 24
        %v3571 = vpop.permute.xlu0 %3570
        %3572 = vrot.lane.b32.xlu0 %v3391, 24
        %v3573 = vpop.permute.xlu0 %3572
        %3574 = vrot.lane.b32.xlu0 %v3392, 24
        %v3575 = vpop.permute.xlu0 %3574
        %3576 = vrot.lane.b32.xlu0 %v3393, 24
        %v3577 = vpop.permute.xlu0 %3576
        %3578 = vrot.lane.b32.xlu0 %v3394, 24
        %v3579 = vpop.permute.xlu0 %3578
        %3580 = vrot.lane.b32.xlu0 %v3395, 24
        %v3581 = vpop.permute.xlu0 %3580
        %3582 = vrot.lane.b32.xlu0 %v3396, 24
        %v3583 = vpop.permute.xlu0 %3582
        %3584 = vrot.lane.b32.xlu0 %v3397, 24
        %v3585 = vpop.permute.xlu0 %3584
        %3586 = vrot.lane.b32.xlu0 %v3398, 24
        %v3587 = vpop.permute.xlu0 %3586
        %3588 = vrot.lane.b32.xlu0 %v3399, 24
        %v3589 = vpop.permute.xlu0 %3588
        %3590 = vrot.lane.b32.xlu0 %v3400, 24
        %v3591 = vpop.permute.xlu0 %3590
        %3592 = vrot.lane.b32.xlu0 %v3401, 24
        %v3593 = vpop.permute.xlu0 %3592
        %3594 = vrot.lane.b32.xlu0 %v3402, 24
        %v3595 = vpop.permute.xlu0 %3594
        %3596 = vrot.lane.b32.xlu0 %v3565, 24
        %v3597 = vpop.permute.xlu0 %3596
        %v3598 = vunpack.c.l.b16 %v3300
        %v3599 = vunpack.c.l.b16 %v3310
        %v3600 = vpack.c.b16 %v3599, %v3598
        %3601 = vrot.lane.b32.xlu0 %v3436, 32
        %v3602 = vpop.permute.xlu0 %3601
        %3603 = vrot.lane.b32.xlu0 %v3437, 32
        %v3604 = vpop.permute.xlu0 %3603
        %3605 = vrot.lane.b32.xlu0 %v3438, 32
        %v3606 = vpop.permute.xlu0 %3605
        %3607 = vrot.lane.b32.xlu0 %v3439, 32
        %v3608 = vpop.permute.xlu0 %3607
        %3609 = vrot.lane.b32.xlu0 %v3440, 32
        %v3610 = vpop.permute.xlu0 %3609
        %3611 = vrot.lane.b32.xlu0 %v3441, 32
        %v3612 = vpop.permute.xlu0 %3611
        %3613 = vrot.lane.b32.xlu0 %v3442, 32
        %v3614 = vpop.permute.xlu0 %3613
        %3615 = vrot.lane.b32.xlu0 %v3443, 32
        %v3616 = vpop.permute.xlu0 %3615
        %3617 = vrot.lane.b32.xlu0 %v3444, 32
        %v3618 = vpop.permute.xlu0 %3617
        %3619 = vrot.lane.b32.xlu0 %v3445, 32
        %v3620 = vpop.permute.xlu0 %3619
        %3621 = vrot.lane.b32.xlu0 %v3446, 32
        %v3622 = vpop.permute.xlu0 %3621
        %3623 = vrot.lane.b32.xlu0 %v3447, 32
        %v3624 = vpop.permute.xlu0 %3623
        %3625 = vrot.lane.b32.xlu0 %v3448, 32
        %v3626 = vpop.permute.xlu0 %3625
        %3627 = vrot.lane.b32.xlu0 %v3449, 32
        %v3628 = vpop.permute.xlu0 %3627
        %3629 = vrot.lane.b32.xlu0 %v3450, 32
        %v3630 = vpop.permute.xlu0 %3629
        %3631 = vrot.lane.b32.xlu0 %v3600, 32
        %v3632 = vpop.permute.xlu0 %3631
        %v3633 = vunpack.c.l.b16 %v3317
        %v3634 = vunpack.c.l.b16 %v3320
        %v3635 = vpack.c.b16 %v3634, %v3633
        %3636 = vrot.lane.b32.xlu0 %v3516, 40
        %v3637 = vpop.permute.xlu0 %3636
        %3638 = vrot.lane.b32.xlu0 %v3517, 40
        %v3639 = vpop.permute.xlu0 %3638
        %3640 = vrot.lane.b32.xlu0 %v3518, 40
        %v3641 = vpop.permute.xlu0 %3640
        %3642 = vrot.lane.b32.xlu0 %v3519, 40
        %v3643 = vpop.permute.xlu0 %3642
        %3644 = vrot.lane.b32.xlu0 %v3520, 40
        %v3645 = vpop.permute.xlu0 %3644
        %3646 = vrot.lane.b32.xlu0 %v3521, 40
        %v3647 = vpop.permute.xlu0 %3646
        %3648 = vrot.lane.b32.xlu0 %v3522, 40
        %v3649 = vpop.permute.xlu0 %3648
        %3650 = vrot.lane.b32.xlu0 %v3523, 40
        %v3651 = vpop.permute.xlu0 %3650
        %3652 = vrot.lane.b32.xlu0 %v3524, 40
        %v3653 = vpop.permute.xlu0 %3652
        %3654 = vrot.lane.b32.xlu0 %v3525, 40
        %v3655 = vpop.permute.xlu0 %3654
        %3656 = vrot.lane.b32.xlu0 %v3526, 40
        %v3657 = vpop.permute.xlu0 %3656
        %3658 = vrot.lane.b32.xlu0 %v3527, 40
        %v3659 = vpop.permute.xlu0 %3658
        %3660 = vrot.lane.b32.xlu0 %v3528, 40
        %v3661 = vpop.permute.xlu0 %3660
        %3662 = vrot.lane.b32.xlu0 %v3529, 40
        %v3663 = vpop.permute.xlu0 %3662
        %3664 = vrot.lane.b32.xlu0 %v3530, 40
        %v3665 = vpop.permute.xlu0 %3664
        %3666 = vrot.lane.b32.xlu0 %v3635, 40
        %v3667 = vpop.permute.xlu0 %3666
        %v3668 = vunpack.c.l.b16 %v2740
        %v3669 = vunpack.c.l.b16 %v2741
        %v3670 = vpack.c.b16 %v3669, %v3668
        %3671 = vrot.lane.b32.xlu0 %v3389, 48
        %v3672 = vpop.permute.xlu0 %3671
        %3673 = vrot.lane.b32.xlu0 %v3390, 48
        %v3674 = vpop.permute.xlu0 %3673
        %3675 = vrot.lane.b32.xlu0 %v3391, 48
        %v3676 = vpop.permute.xlu0 %3675
        %3677 = vrot.lane.b32.xlu0 %v3392, 48
        %v3678 = vpop.permute.xlu0 %3677
        %3679 = vrot.lane.b32.xlu0 %v3393, 48
        %v3680 = vpop.permute.xlu0 %3679
        %3681 = vrot.lane.b32.xlu0 %v3394, 48
        %v3682 = vpop.permute.xlu0 %3681
        %3683 = vrot.lane.b32.xlu0 %v3395, 48
        %v3684 = vpop.permute.xlu0 %3683
        %3685 = vrot.lane.b32.xlu0 %v3396, 48
        %v3686 = vpop.permute.xlu0 %3685
        %3687 = vrot.lane.b32.xlu0 %v3397, 48
        %v3688 = vpop.permute.xlu0 %3687
        %3689 = vrot.lane.b32.xlu0 %v3398, 48
        %v3690 = vpop.permute.xlu0 %3689
        %3691 = vrot.lane.b32.xlu0 %v3399, 48
        %v3692 = vpop.permute.xlu0 %3691
        %3693 = vrot.lane.b32.xlu0 %v3400, 48
        %v3694 = vpop.permute.xlu0 %3693
        %3695 = vrot.lane.b32.xlu0 %v3401, 48
        %v3696 = vpop.permute.xlu0 %3695
        %3697 = vrot.lane.b32.xlu0 %v3402, 48
        %v3698 = vpop.permute.xlu0 %3697
        %3699 = vrot.lane.b32.xlu0 %v3565, 48
        %v3700 = vpop.permute.xlu0 %3699
        %3701 = vrot.lane.b32.xlu0 %v3670, 48
        %v3702 = vpop.permute.xlu0 %3701
        %v3703 = vunpack.c.l.b16 %v3334
        %v3704 = vunpack.c.l.b16 %v3344
        %v3705 = vpack.c.b16 %v3704, %v3703
        %3706 = vrot.lane.b32.xlu0 %v3437, 56
        %v3707 = vpop.permute.xlu0 %3706
        %3708 = vrot.lane.b32.xlu0 %v3438, 56
        %v3709 = vpop.permute.xlu0 %3708
        %3710 = vrot.lane.b32.xlu0 %v3439, 56
        %v3711 = vpop.permute.xlu0 %3710
        %3712 = vrot.lane.b32.xlu0 %v3440, 56
        %v3713 = vpop.permute.xlu0 %3712
        %3714 = vrot.lane.b32.xlu0 %v3441, 56
        %v3715 = vpop.permute.xlu0 %3714
        %3716 = vrot.lane.b32.xlu0 %v3442, 56
        %v3717 = vpop.permute.xlu0 %3716
        %3718 = vrot.lane.b32.xlu0 %v3443, 56
        %v3719 = vpop.permute.xlu0 %3718
        %3720 = vrot.lane.b32.xlu0 %v3444, 56
        %v3721 = vpop.permute.xlu0 %3720
        %3722 = vrot.lane.b32.xlu0 %v3445, 56
        %v3723 = vpop.permute.xlu0 %3722
        %3724 = vrot.lane.b32.xlu0 %v3446, 56
        %v3725 = vpop.permute.xlu0 %3724
        %3726 = vrot.lane.b32.xlu0 %v3447, 56
        %v3727 = vpop.permute.xlu0 %3726
        %3728 = vrot.lane.b32.xlu0 %v3448, 56
        %v3729 = vpop.permute.xlu0 %3728
        %3730 = vrot.lane.b32.xlu0 %v3449, 56
        %v3731 = vpop.permute.xlu0 %3730
        %3732 = vrot.lane.b32.xlu0 %v3450, 56
        %v3733 = vpop.permute.xlu0 %3732
        %3734 = vrot.lane.b32.xlu0 %v3600, 56
        %v3735 = vpop.permute.xlu0 %3734
        %3736 = vrot.lane.b32.xlu0 %v3705, 56
        %v3737 = vpop.permute.xlu0 %3736
        %v3738 = vunpack.c.l.b16 %v3351
        %v3739 = vunpack.c.l.b16 %v3354
        %v3740 = vpack.c.b16 %v3739, %v3738
        %3741 = vrot.lane.b32.xlu0 %v3517, 64
        %v3742 = vpop.permute.xlu0 %3741
        %3743 = vrot.lane.b32.xlu0 %v3518, 64
        %v3744 = vpop.permute.xlu0 %3743
        %3745 = vrot.lane.b32.xlu0 %v3519, 64
        %v3746 = vpop.permute.xlu0 %3745
        %3747 = vrot.lane.b32.xlu0 %v3520, 64
        %v3748 = vpop.permute.xlu0 %3747
        %3749 = vrot.lane.b32.xlu0 %v3521, 64
        %v3750 = vpop.permute.xlu0 %3749
        %3751 = vrot.lane.b32.xlu0 %v3522, 64
        %v3752 = vpop.permute.xlu0 %3751
        %3753 = vrot.lane.b32.xlu0 %v3523, 64
        %v3754 = vpop.permute.xlu0 %3753
        %3755 = vrot.lane.b32.xlu0 %v3524, 64
        %v3756 = vpop.permute.xlu0 %3755
        %3757 = vrot.lane.b32.xlu0 %v3525, 64
        %v3758 = vpop.permute.xlu0 %3757
        %3759 = vrot.lane.b32.xlu0 %v3526, 64
        %v3760 = vpop.permute.xlu0 %3759
        %3761 = vrot.lane.b32.xlu0 %v3527, 64
        %v3762 = vpop.permute.xlu0 %3761
        %3763 = vrot.lane.b32.xlu0 %v3528, 64
        %v3764 = vpop.permute.xlu0 %3763
        %3765 = vrot.lane.b32.xlu0 %v3529, 64
        %v3766 = vpop.permute.xlu0 %3765
        %3767 = vrot.lane.b32.xlu0 %v3530, 64
        %v3768 = vpop.permute.xlu0 %3767
        %3769 = vrot.lane.b32.xlu0 %v3635, 64
        %v3770 = vpop.permute.xlu0 %3769
        %3771 = vrot.lane.b32.xlu0 %v3740, 64
        %v3772 = vpop.permute.xlu0 %3771
        %v3775 = vsel %vm1537, %v3387, %v3452
        %v3778 = vsel %vm1537, %v3388, %v3454
        %v3781 = vsel %vm1537, %v3389, %v3456
        %v3784 = vsel %vm1537, %v3390, %v3458
        %v3787 = vsel %vm1537, %v3391, %v3460
        %v3790 = vsel %vm1537, %v3392, %v3462
        %v3793 = vsel %vm1537, %v3393, %v3464
        %v3796 = vsel %vm1537, %v3394, %v3466
        %v3799 = vsel %vm1537, %v3395, %v3468
        %v3802 = vsel %vm1537, %v3396, %v3470
        %v3805 = vsel %vm1537, %v3397, %v3472
        %v3808 = vsel %vm1537, %v3398, %v3474
        %v3811 = vsel %vm1537, %v3399, %v3476
        %v3814 = vsel %vm1537, %v3400, %v3478
        %v3817 = vsel %vm1537, %v3401, %v3480
        %v3820 = vsel %vm1537, %v3402, %v3482
        %v3822 = vsel %vm1603, %v3775, %v3532
        %v3824 = vsel %vm1603, %v3778, %v3534
        %v3826 = vsel %vm1603, %v3781, %v3536
        %v3828 = vsel %vm1603, %v3784, %v3538
        %v3830 = vsel %vm1603, %v3787, %v3540
        %v3832 = vsel %vm1603, %v3790, %v3542
        %v3834 = vsel %vm1603, %v3793, %v3544
        %v3836 = vsel %vm1603, %v3796, %v3546
        %v3838 = vsel %vm1603, %v3799, %v3548
        %v3840 = vsel %vm1603, %v3802, %v3550
        %v3842 = vsel %vm1603, %v3805, %v3552
        %v3844 = vsel %vm1603, %v3808, %v3554
        %v3846 = vsel %vm1603, %v3811, %v3556
        %v3848 = vsel %vm1603, %v3814, %v3558
        %v3850 = vsel %vm1603, %v3817, %v3560
        %v3852 = vsel %vm1603, %v3820, %v3562
        %v3854 = vsel %vm1669, %v3822, %v3567
        %v3856 = vsel %vm1669, %v3824, %v3569
        %v3858 = vsel %vm1669, %v3826, %v3571
        %v3860 = vsel %vm1669, %v3828, %v3573
        %v3862 = vsel %vm1669, %v3830, %v3575
        %v3864 = vsel %vm1669, %v3832, %v3577
        %v3866 = vsel %vm1669, %v3834, %v3579
        %v3868 = vsel %vm1669, %v3836, %v3581
        %v3870 = vsel %vm1669, %v3838, %v3583
        %v3872 = vsel %vm1669, %v3840, %v3585
        %v3874 = vsel %vm1669, %v3842, %v3587
        %v3876 = vsel %vm1669, %v3844, %v3589
        %v3878 = vsel %vm1669, %v3846, %v3591
        %v3880 = vsel %vm1669, %v3848, %v3593
        %v3882 = vsel %vm1669, %v3850, %v3595
        %v3884 = vsel %vm1669, %v3852, %v3597
        %v3886 = vsel %vm1735, %v3854, %v3602
        %v3888 = vsel %vm1735, %v3856, %v3604
        %v3890 = vsel %vm1735, %v3858, %v3606
        %v3892 = vsel %vm1735, %v3860, %v3608
        %v3894 = vsel %vm1735, %v3862, %v3610
        %v3896 = vsel %vm1735, %v3864, %v3612
        %v3898 = vsel %vm1735, %v3866, %v3614
        %v3900 = vsel %vm1735, %v3868, %v3616
        %v3902 = vsel %vm1735, %v3870, %v3618
        %v3904 = vsel %vm1735, %v3872, %v3620
        %v3906 = vsel %vm1735, %v3874, %v3622
        %v3908 = vsel %vm1735, %v3876, %v3624
        %v3910 = vsel %vm1735, %v3878, %v3626
        %v3912 = vsel %vm1735, %v3880, %v3628
        %v3914 = vsel %vm1735, %v3882, %v3630
        %v3916 = vsel %vm1735, %v3884, %v3632
        %vm3917 = vcmask 326656
        %v3919 = vsel %vm3917, %v3886, %v3637
        %v3921 = vsel %vm3917, %v3888, %v3639
        %v3923 = vsel %vm3917, %v3890, %v3641
        %v3925 = vsel %vm3917, %v3892, %v3643
        %v3927 = vsel %vm3917, %v3894, %v3645
        %v3929 = vsel %vm3917, %v3896, %v3647
        %v3931 = vsel %vm3917, %v3898, %v3649
        %v3933 = vsel %vm3917, %v3900, %v3651
        %v3935 = vsel %vm3917, %v3902, %v3653
        %v3937 = vsel %vm3917, %v3904, %v3655
        %v3939 = vsel %vm3917, %v3906, %v3657
        %v3941 = vsel %vm3917, %v3908, %v3659
        %v3943 = vsel %vm3917, %v3910, %v3661
        %v3945 = vsel %vm3917, %v3912, %v3663
        %v3947 = vsel %vm3917, %v3914, %v3665
        %v3949 = vsel %vm3917, %v3916, %v3667
        %vm3950 = vcmask 392192
        %v3952 = vsel %vm3950, %v3919, %v3672
        %v3954 = vsel %vm3950, %v3921, %v3674
        %v3956 = vsel %vm3950, %v3923, %v3676
        %v3958 = vsel %vm3950, %v3925, %v3678
        %v3960 = vsel %vm3950, %v3927, %v3680
        %v3962 = vsel %vm3950, %v3929, %v3682
        %v3964 = vsel %vm3950, %v3931, %v3684
        %v3966 = vsel %vm3950, %v3933, %v3686
        %v3968 = vsel %vm3950, %v3935, %v3688
        %v3970 = vsel %vm3950, %v3937, %v3690
        %v3972 = vsel %vm3950, %v3939, %v3692
        %v3974 = vsel %vm3950, %v3941, %v3694
        %v3976 = vsel %vm3950, %v3943, %v3696
        %v3978 = vsel %vm3950, %v3945, %v3698
        %v3980 = vsel %vm3950, %v3947, %v3700
        %v3982 = vsel %vm3950, %v3949, %v3702
        %vm3983 = vcmask 457728
        %v3985 = vsel %vm3983, %v3952, %v3707
        %v3987 = vsel %vm3983, %v3954, %v3709
        %v3989 = vsel %vm3983, %v3956, %v3711
        %v3991 = vsel %vm3983, %v3958, %v3713
        %v3993 = vsel %vm3983, %v3960, %v3715
        %v3995 = vsel %vm3983, %v3962, %v3717
        %v3997 = vsel %vm3983, %v3964, %v3719
        %v3999 = vsel %vm3983, %v3966, %v3721
        %v4001 = vsel %vm3983, %v3968, %v3723
        %v4003 = vsel %vm3983, %v3970, %v3725
        %v4005 = vsel %vm3983, %v3972, %v3727
        %v4007 = vsel %vm3983, %v3974, %v3729
        %v4009 = vsel %vm3983, %v3976, %v3731
        %v4011 = vsel %vm3983, %v3978, %v3733
        %v4013 = vsel %vm3983, %v3980, %v3735
        %v4015 = vsel %vm3983, %v3982, %v3737
        %vm4016 = vcmask 523264
        %v4018 = vsel %vm4016, %v3985, %v3742
        %v4020 = vsel %vm4016, %v3987, %v3744
        %v4022 = vsel %vm4016, %v3989, %v3746
        %v4024 = vsel %vm4016, %v3991, %v3748
        %v4026 = vsel %vm4016, %v3993, %v3750
        %v4028 = vsel %vm4016, %v3995, %v3752
        %v4030 = vsel %vm4016, %v3997, %v3754
        %v4032 = vsel %vm4016, %v3999, %v3756
        %v4034 = vsel %vm4016, %v4001, %v3758
        %v4036 = vsel %vm4016, %v4003, %v3760
        %v4038 = vsel %vm4016, %v4005, %v3762
        %v4040 = vsel %vm4016, %v4007, %v3764
        %v4042 = vsel %vm4016, %v4009, %v3766
        %v4044 = vsel %vm4016, %v4011, %v3768
        %v4046 = vsel %vm4016, %v4013, %v3770
        %v4048 = vsel %vm4016, %v4015, %v3772
        %v4049 = vld [vmem:[%s4] sm:$0xf]
        %v4050 = vld [vmem:[%s4 + $0x4] sm:$0xf]
        %v4051 = vld [vmem:[%s4 + $0x8] sm:$0xf]
        %v4052 = vld [vmem:[%s4 + $0xc] sm:$0xf]
        %v4053 = vld [vmem:[%s4 + $0x10] sm:$0xf]
        %v4054 = vld [vmem:[%s4 + $0x14] sm:$0xf]
        %v4055 = vld [vmem:[%s4 + $0x18] sm:$0xf]
        %v4056 = vld [vmem:[%s4 + $0x1c] sm:$0xf]
        %v4057 = vld [vmem:[%s4 + $0x20] sm:$0xf]
        %v4067 = vunpack.c.l.b16 %v4049
        %v4068 = vunpack.c.l.b16 %v4050
        %v4069 = vunpack.c.l.b16 %v4051
        %v4070 = vunpack.c.l.b16 %v4052
        %v4071 = vunpack.c.l.b16 %v4053
        %v4072 = vunpack.c.l.b16 %v4054
        %v4073 = vunpack.c.l.b16 %v4055
        %v4074 = vunpack.c.l.b16 %v4056
        %v4075 = vunpack.c.l.b16 %v4057
        %v4076 = vpack.c.b16 %v4068, %v4067
        %v4077 = vpack.c.b16 %v4070, %v4069
        %v4078 = vpack.c.b16 %v4072, %v4071
        %v4079 = vpack.c.b16 %v4074, %v4073
        %v4080 = vpack.c.b16 %v4075, %v4075
        %vm4085 = vcmask 588800
        %v4086 = vsel %vm4085, %v4018, 0
        %v4088 = vsel %vm4085, %v4020, 0
        %v4090 = vsel %vm4085, %v4022, 0
        %v4092 = vsel %vm4085, %v4024, 0
        %v4094 = vsel %vm4085, %v4026, 0
        %v4096 = vsel %vm4085, %v4028, 0
        %v4098 = vsel %vm4085, %v4030, 0
        %v4100 = vsel %vm4085, %v4032, 0
        %v4102 = vsel %vm4085, %v4034, 0
        %v4104 = vsel %vm4085, %v4036, 0
        %v4106 = vsel %vm4085, %v4038, 0
        %v4108 = vsel %vm4085, %v4040, 0
        %v4110 = vsel %vm4085, %v4042, 0
        %v4112 = vsel %vm4085, %v4044, 0
        %v4114 = vsel %vm4085, %v4046, 0
        %v4116 = vsel %vm4085, %v4048, 0
        %vm4118 = vcmask 1043456
        %v4120 = vsel %vm4118, %v4080, 0
        %4122 = vmatprep.subr.bf16.mxu0 0
        %4123 = vmatpush1.bf16.msra.mxu0 %v4076
        %4124 = vmatprep.subr.bf16.mxu0 0
        %4125 = vmatpush1.bf16.msra.mxu0 %v4077
        %4126 = vmatprep.subr.bf16.mxu0 0
        %4127 = vmatpush1.bf16.msra.mxu0 %v4078
        %4128 = vmatprep.subr.bf16.mxu0 0
        %4129 = vmatpush1.bf16.msra.mxu0 %v4079
        %4130 = vmatprep.subr.bf16.mxu0 0
        %4131 = vmatpush1.bf16.msra.mxu0 %v4120
        %4132 = vmatprep.subr.bf16.mxu0 0
        %4133 = vmatpush1.bf16.msra.mxu0 0
        %4134 = vmatprep.subr.bf16.mxu0 0
        %4135 = vmatpush1.bf16.msra.mxu0 0
        %4136 = vmatprep.subr.bf16.mxu0 0
        %4137 = vmatpush1.bf16.msra.mxu0 0
        %4138 = vmatprep.subr.bf16.mxu0 0
        %4139 = vmatpush1.bf16.msra.mxu0 0
        %4140 = vmatprep.subr.bf16.mxu0 0
        %4141 = vmatpush1.bf16.msra.mxu0 0
        %4142 = vmatprep.subr.bf16.mxu0 0
        %4143 = vmatpush1.bf16.msra.mxu0 0
        %4144 = vmatprep.subr.bf16.mxu0 0
        %4145 = vmatpush1.bf16.msra.mxu0 0
        %4146 = vmatprep.subr.bf16.mxu0 0
        %4147 = vmatpush1.bf16.msra.mxu0 0
        %4148 = vmatprep.subr.bf16.mxu0 0
        %4149 = vmatpush1.bf16.msra.mxu0 0
        %4150 = vmatprep.subr.bf16.mxu0 0
        %4151 = vmatpush1.bf16.msra.mxu0 0
        %4152 = vmatprep.subr.bf16.mxu0 0
        %4153 = vmatpush1.bf16.msra.mxu0 0
        %4154 = vmatprep.mubr.bf16.mxu0 0
        %4155 = vmatmul.mubr.bf16.gmra.mrb[0].mxu0 %v4086
        %v4156 = vpop.f32.mrb[0].mxu0
        %v4157 = vadd.f32 0.0, %v4156
        %v4158 = vpop.f32.mrb[0].mxu0
        %v4159 = vpop.f32.mrb[0].mxu0
        %v4160 = vadd.f32 0.0, %v4159
        %v4161 = vpop.f32.mrb[0].mxu0
        %4162 = vmatprep.mubr.bf16.mxu0 0
        %4163 = vmatmul.mubr.bf16.gmra.mrb[0].mxu0 %v4088
        %v4164 = vpop.f32.mrb[0].mxu0
        %v4165 = vadd.f32 0.0, %v4164
        %v4166 = vpop.f32.mrb[0].mxu0
        %v4167 = vpop.f32.mrb[0].mxu0
        %v4168 = vadd.f32 0.0, %v4167
        %v4169 = vpop.f32.mrb[0].mxu0
        %4170 = vmatprep.mubr.bf16.mxu0 0
        %4171 = vmatmul.mubr.bf16.gmra.mrb[0].mxu0 %v4090
        %v4172 = vpop.f32.mrb[0].mxu0
        %v4173 = vadd.f32 0.0, %v4172
        %v4174 = vpop.f32.mrb[0].mxu0
        %v4175 = vpop.f32.mrb[0].mxu0
        %v4176 = vadd.f32 0.0, %v4175
        %v4177 = vpop.f32.mrb[0].mxu0
        %4178 = vmatprep.mubr.bf16.mxu0 0
        %4179 = vmatmul.mubr.bf16.gmra.mrb[0].mxu0 %v4092
        %v4180 = vpop.f32.mrb[0].mxu0
        %v4181 = vadd.f32 0.0, %v4180
        %v4182 = vpop.f32.mrb[0].mxu0
        %v4183 = vpop.f32.mrb[0].mxu0
        %v4184 = vadd.f32 0.0, %v4183
        %v4185 = vpop.f32.mrb[0].mxu0
        %4186 = vmatprep.mubr.bf16.mxu0 0
        %4187 = vmatmul.mubr.bf16.gmra.mrb[0].mxu0 %v4094
        %v4188 = vpop.f32.mrb[0].mxu0
        %v4189 = vadd.f32 0.0, %v4188
        %v4190 = vpop.f32.mrb[0].mxu0
        %v4191 = vpop.f32.mrb[0].mxu0
        %v4192 = vadd.f32 0.0, %v4191
        %v4193 = vpop.f32.mrb[0].mxu0
        %4194 = vmatprep.mubr.bf16.mxu0 0
        %4195 = vmatmul.mubr.bf16.gmra.mrb[0].mxu0 %v4096
        %v4196 = vpop.f32.mrb[0].mxu0
        %v4197 = vadd.f32 0.0, %v4196
        %v4198 = vpop.f32.mrb[0].mxu0
        %v4199 = vpop.f32.mrb[0].mxu0
        %v4200 = vadd.f32 0.0, %v4199
        %v4201 = vpop.f32.mrb[0].mxu0
        %4202 = vmatprep.mubr.bf16.mxu0 0
        %4203 = vmatmul.mubr.bf16.gmra.mrb[0].mxu0 %v4098
        %v4204 = vpop.f32.mrb[0].mxu0
        %v4205 = vadd.f32 0.0, %v4204
        %v4206 = vpop.f32.mrb[0].mxu0
        %v4207 = vpop.f32.mrb[0].mxu0
        %v4208 = vadd.f32 0.0, %v4207
        %v4209 = vpop.f32.mrb[0].mxu0
        %4210 = vmatprep.mubr.bf16.mxu0 0
        %4211 = vmatmul.mubr.bf16.gmra.mrb[0].mxu0 %v4100
        %v4212 = vpop.f32.mrb[0].mxu0
        %v4213 = vadd.f32 0.0, %v4212
        %v4214 = vpop.f32.mrb[0].mxu0
        %v4215 = vpop.f32.mrb[0].mxu0
        %v4216 = vadd.f32 0.0, %v4215
        %v4217 = vpop.f32.mrb[0].mxu0
        %4218 = vmatprep.mubr.bf16.mxu0 0
        %4219 = vmatmul.mubr.bf16.gmra.mrb[0].mxu0 %v4102
        %v4220 = vpop.f32.mrb[0].mxu0
        %v4221 = vadd.f32 0.0, %v4220
        %v4222 = vpop.f32.mrb[0].mxu0
        %v4223 = vpop.f32.mrb[0].mxu0
        %v4224 = vadd.f32 0.0, %v4223
        %v4225 = vpop.f32.mrb[0].mxu0
        %4226 = vmatprep.mubr.bf16.mxu0 0
        %4227 = vmatmul.mubr.bf16.gmra.mrb[0].mxu0 %v4104
        %v4228 = vpop.f32.mrb[0].mxu0
        %v4229 = vadd.f32 0.0, %v4228
        %v4230 = vpop.f32.mrb[0].mxu0
        %v4231 = vpop.f32.mrb[0].mxu0
        %v4232 = vadd.f32 0.0, %v4231
        %v4233 = vpop.f32.mrb[0].mxu0
        %4234 = vmatprep.mubr.bf16.mxu0 0
        %4235 = vmatmul.mubr.bf16.gmra.mrb[0].mxu0 %v4106
        %v4236 = vpop.f32.mrb[0].mxu0
        %v4237 = vadd.f32 0.0, %v4236
        %v4238 = vpop.f32.mrb[0].mxu0
        %v4239 = vpop.f32.mrb[0].mxu0
        %v4240 = vadd.f32 0.0, %v4239
        %v4241 = vpop.f32.mrb[0].mxu0
        %4242 = vmatprep.mubr.bf16.mxu0 0
        %4243 = vmatmul.mubr.bf16.gmra.mrb[0].mxu0 %v4108
        %v4244 = vpop.f32.mrb[0].mxu0
        %v4245 = vadd.f32 0.0, %v4244
        %v4246 = vpop.f32.mrb[0].mxu0
        %v4247 = vpop.f32.mrb[0].mxu0
        %v4248 = vadd.f32 0.0, %v4247
        %v4249 = vpop.f32.mrb[0].mxu0
        %4250 = vmatprep.mubr.bf16.mxu0 0
        %4251 = vmatmul.mubr.bf16.gmra.mrb[0].mxu0 %v4110
        %v4252 = vpop.f32.mrb[0].mxu0
        %v4253 = vadd.f32 0.0, %v4252
        %v4254 = vpop.f32.mrb[0].mxu0
        %v4255 = vpop.f32.mrb[0].mxu0
        %v4256 = vadd.f32 0.0, %v4255
        %v4257 = vpop.f32.mrb[0].mxu0
        %4258 = vmatprep.mubr.bf16.mxu0 0
        %4259 = vmatmul.mubr.bf16.gmra.mrb[0].mxu0 %v4112
        %v4260 = vpop.f32.mrb[0].mxu0
        %v4261 = vadd.f32 0.0, %v4260
        %v4262 = vpop.f32.mrb[0].mxu0
        %v4263 = vpop.f32.mrb[0].mxu0
        %v4264 = vadd.f32 0.0, %v4263
        %v4265 = vpop.f32.mrb[0].mxu0
        %4266 = vmatprep.mubr.bf16.mxu0 0
        %4267 = vmatmul.mubr.bf16.gmra.mrb[0].mxu0 %v4114
        %v4268 = vpop.f32.mrb[0].mxu0
        %v4269 = vadd.f32 0.0, %v4268
        %v4270 = vpop.f32.mrb[0].mxu0
        %v4271 = vpop.f32.mrb[0].mxu0
        %v4272 = vadd.f32 0.0, %v4271
        %v4273 = vpop.f32.mrb[0].mxu0
        %4274 = vmatprep.mubr.bf16.mxu0 0
        %4275 = vmatmul.mubr.bf16.gmra.mrb[0].mxu0 %v4116
        %v4276 = vpop.f32.mrb[0].mxu0
        %v4277 = vadd.f32 0.0, %v4276
        %v4278 = vpop.f32.mrb[0].mxu0
        %v4279 = vpop.f32.mrb[0].mxu0
        %v4280 = vadd.f32 0.0, %v4279
        %v4281 = vpop.f32.mrb[0].mxu0
        %4282 = vdwg.mxu0
        %v4283 = vld [vmem:[%s5] sm:$0x1]
        %v4285 = vlaneseq
        %v4286 = vshrl.u32 %v4285, 7
        %v4287 = vsub.s32 0, %v4286
        %v4288 = vrot.slane %v4283, %v4287
        %v4290 = vmul.f32 %v4157, %v4288
        %v4291 = vmul.f32 %v4160, %v4288
        %v4292 = vmul.f32 %v4165, %v4288
        %v4293 = vmul.f32 %v4168, %v4288
        %v4294 = vmul.f32 %v4173, %v4288
        %v4295 = vmul.f32 %v4176, %v4288
        %v4296 = vmul.f32 %v4181, %v4288
        %v4297 = vmul.f32 %v4184, %v4288
        %v4298 = vmul.f32 %v4189, %v4288
        %v4299 = vmul.f32 %v4192, %v4288
        %v4300 = vmul.f32 %v4197, %v4288
        %v4301 = vmul.f32 %v4200, %v4288
        %v4302 = vmul.f32 %v4205, %v4288
        %v4303 = vmul.f32 %v4208, %v4288
        %v4304 = vmul.f32 %v4213, %v4288
        %v4305 = vmul.f32 %v4216, %v4288
        %v4306 = vmul.f32 %v4221, %v4288
        %v4307 = vmul.f32 %v4224, %v4288
        %v4308 = vmul.f32 %v4229, %v4288
        %v4309 = vmul.f32 %v4232, %v4288
        %v4310 = vmul.f32 %v4237, %v4288
        %v4311 = vmul.f32 %v4240, %v4288
        %v4312 = vmul.f32 %v4245, %v4288
        %v4313 = vmul.f32 %v4248, %v4288
        %v4314 = vmul.f32 %v4253, %v4288
        %v4315 = vmul.f32 %v4256, %v4288
        %v4316 = vmul.f32 %v4261, %v4288
        %v4317 = vmul.f32 %v4264, %v4288
        %v4318 = vmul.f32 %v4269, %v4288
        %v4319 = vmul.f32 %v4272, %v4288
        %v4320 = vmul.f32 %v4277, %v4288
        %v4321 = vmul.f32 %v4280, %v4288
        %v4322 = vld [vmem:[%s6] sm:$0x1]
        %v4324 = vlaneseq
        %v4325 = vshrl.u32 %v4324, 7
        %v4326 = vsub.s32 0, %v4325
        %v4327 = vrot.slane %v4322, %v4326
        %v4329 = vadd.f32 %v4290, %v4327
        %v4330 = vadd.f32 %v4291, %v4327
        %v4331 = vadd.f32 %v4292, %v4327
        %v4332 = vadd.f32 %v4293, %v4327
        %v4333 = vadd.f32 %v4294, %v4327
        %v4334 = vadd.f32 %v4295, %v4327
        %v4335 = vadd.f32 %v4296, %v4327
        %v4336 = vadd.f32 %v4297, %v4327
        %v4337 = vadd.f32 %v4298, %v4327
        %v4338 = vadd.f32 %v4299, %v4327
        %v4339 = vadd.f32 %v4300, %v4327
        %v4340 = vadd.f32 %v4301, %v4327
        %v4341 = vadd.f32 %v4302, %v4327
        %v4342 = vadd.f32 %v4303, %v4327
        %v4343 = vadd.f32 %v4304, %v4327
        %v4344 = vadd.f32 %v4305, %v4327
        %v4345 = vadd.f32 %v4306, %v4327
        %v4346 = vadd.f32 %v4307, %v4327
        %v4347 = vadd.f32 %v4308, %v4327
        %v4348 = vadd.f32 %v4309, %v4327
        %v4349 = vadd.f32 %v4310, %v4327
        %v4350 = vadd.f32 %v4311, %v4327
        %v4351 = vadd.f32 %v4312, %v4327
        %v4352 = vadd.f32 %v4313, %v4327
        %v4353 = vadd.f32 %v4314, %v4327
        %v4354 = vadd.f32 %v4315, %v4327
        %v4355 = vadd.f32 %v4316, %v4327
        %v4356 = vadd.f32 %v4317, %v4327
        %v4357 = vadd.f32 %v4318, %v4327
        %v4358 = vadd.f32 %v4319, %v4327
        %v4359 = vadd.f32 %v4320, %v4327
        %v4360 = vadd.f32 %v4321, %v4327
        %v4361 = vld [vmem:[%s7] sm:$0x3]
        %v4363 = vsel %vm1488, %v1151, 0
        %v4366 = vsel %vm1488, %v1152, 0
        %v4369 = vsel %vm1488, %v1153, 0
        %v4372 = vsel %vm1488, %v1154, 0
        %v4375 = vsel %vm1488, %v1155, 0
        %v4378 = vsel %vm1488, %v1156, 0
        %v4381 = vsel %vm1488, %v1157, 0
        %v4384 = vsel %vm1488, %v1158, 0
        %v4387 = vsel %vm1488, %v1159, 0
        %v4390 = vsel %vm1488, %v1160, 0
        %v4393 = vsel %vm1488, %v1161, 0
        %v4396 = vsel %vm1488, %v1162, 0
        %v4399 = vsel %vm1488, %v1163, 0
        %v4402 = vsel %vm1488, %v1164, 0
        %v4405 = vsel %vm1488, %v1165, 0
        %v4408 = vsel %vm1488, %v1315, 0
        %v4411 = vsel %vm1821, %v4361, 0
        %4413 = vmatprep.subr.bf16.mxu0 0
        %4414 = vmatpush1.bf16.msra.mxu0 %v4411
        %4415 = vmatprep.subr.bf16.mxu0 0
        %4416 = vmatpush1.bf16.msra.mxu0 0
        %4417 = vmatprep.subr.bf16.mxu0 0
        %4418 = vmatpush1.bf16.msra.mxu0 0
        %4419 = vmatprep.subr.bf16.mxu0 0
        %4420 = vmatpush1.bf16.msra.mxu0 0
        %4421 = vmatprep.subr.bf16.mxu0 0
        %4422 = vmatpush1.bf16.msra.mxu0 0
        %4423 = vmatprep.subr.bf16.mxu0 0
        %4424 = vmatpush1.bf16.msra.mxu0 0
        %4425 = vmatprep.subr.bf16.mxu0 0
        %4426 = vmatpush1.bf16.msra.mxu0 0
        %4427 = vmatprep.subr.bf16.mxu0 0
        %4428 = vmatpush1.bf16.msra.mxu0 0
        %4429 = vmatprep.subr.bf16.mxu0 0
        %4430 = vmatpush1.bf16.msra.mxu0 0
        %4431 = vmatprep.subr.bf16.mxu0 0
        %4432 = vmatpush1.bf16.msra.mxu0 0
        %4433 = vmatprep.subr.bf16.mxu0 0
        %4434 = vmatpush1.bf16.msra.mxu0 0
        %4435 = vmatprep.subr.bf16.mxu0 0
        %4436 = vmatpush1.bf16.msra.mxu0 0
        %4437 = vmatprep.subr.bf16.mxu0 0
        %4438 = vmatpush1.bf16.msra.mxu0 0
        %4439 = vmatprep.subr.bf16.mxu0 0
        %4440 = vmatpush1.bf16.msra.mxu0 0
        %4441 = vmatprep.subr.bf16.mxu0 0
        %4442 = vmatpush1.bf16.msra.mxu0 0
        %4443 = vmatprep.subr.bf16.mxu0 0
        %4444 = vmatpush1.bf16.msra.mxu0 0
        %4445 = vmatprep.mubr.bf16.mxu0 0
        %4446 = vmatmul.mubr.bf16.gmra.mrb[0].mxu0 %v4363
        %v4447 = vpop.f32.mrb[0].mxu0
        %v4448 = vadd.f32 0.0, %v4447
        %v4449 = vpop.f32.mrb[0].mxu0
        %v4450 = vpop.f32.mrb[0].mxu0
        %v4451 = vadd.f32 0.0, %v4450
        %v4452 = vpop.f32.mrb[0].mxu0
        %4453 = vmatprep.mubr.bf16.mxu0 0
        %4454 = vmatmul.mubr.bf16.gmra.mrb[0].mxu0 %v4366
        %v4455 = vpop.f32.mrb[0].mxu0
        %v4456 = vadd.f32 0.0, %v4455
        %v4457 = vpop.f32.mrb[0].mxu0
        %v4458 = vpop.f32.mrb[0].mxu0
        %v4459 = vadd.f32 0.0, %v4458
        %v4460 = vpop.f32.mrb[0].mxu0
        %4461 = vmatprep.mubr.bf16.mxu0 0
        %4462 = vmatmul.mubr.bf16.gmra.mrb[0].mxu0 %v4369
        %v4463 = vpop.f32.mrb[0].mxu0
        %v4464 = vadd.f32 0.0, %v4463
        %v4465 = vpop.f32.mrb[0].mxu0
        %v4466 = vpop.f32.mrb[0].mxu0
        %v4467 = vadd.f32 0.0, %v4466
        %v4468 = vpop.f32.mrb[0].mxu0
        %4469 = vmatprep.mubr.bf16.mxu0 0
        %4470 = vmatmul.mubr.bf16.gmra.mrb[0].mxu0 %v4372
        %v4471 = vpop.f32.mrb[0].mxu0
        %v4472 = vadd.f32 0.0, %v4471
        %v4473 = vpop.f32.mrb[0].mxu0
        %v4474 = vpop.f32.mrb[0].mxu0
        %v4475 = vadd.f32 0.0, %v4474
        %v4476 = vpop.f32.mrb[0].mxu0
        %4477 = vmatprep.mubr.bf16.mxu0 0
        %4478 = vmatmul.mubr.bf16.gmra.mrb[0].mxu0 %v4375
        %v4479 = vpop.f32.mrb[0].mxu0
        %v4480 = vadd.f32 0.0, %v4479
        %v4481 = vpop.f32.mrb[0].mxu0
        %v4482 = vpop.f32.mrb[0].mxu0
        %v4483 = vadd.f32 0.0, %v4482
        %v4484 = vpop.f32.mrb[0].mxu0
        %4485 = vmatprep.mubr.bf16.mxu0 0
        %4486 = vmatmul.mubr.bf16.gmra.mrb[0].mxu0 %v4378
        %v4487 = vpop.f32.mrb[0].mxu0
        %v4488 = vadd.f32 0.0, %v4487
        %v4489 = vpop.f32.mrb[0].mxu0
        %v4490 = vpop.f32.mrb[0].mxu0
        %v4491 = vadd.f32 0.0, %v4490
        %v4492 = vpop.f32.mrb[0].mxu0
        %4493 = vmatprep.mubr.bf16.mxu0 0
        %4494 = vmatmul.mubr.bf16.gmra.mrb[0].mxu0 %v4381
        %v4495 = vpop.f32.mrb[0].mxu0
        %v4496 = vadd.f32 0.0, %v4495
        %v4497 = vpop.f32.mrb[0].mxu0
        %v4498 = vpop.f32.mrb[0].mxu0
        %v4499 = vadd.f32 0.0, %v4498
        %v4500 = vpop.f32.mrb[0].mxu0
        %4501 = vmatprep.mubr.bf16.mxu0 0
        %4502 = vmatmul.mubr.bf16.gmra.mrb[0].mxu0 %v4384
        %v4503 = vpop.f32.mrb[0].mxu0
        %v4504 = vadd.f32 0.0, %v4503
        %v4505 = vpop.f32.mrb[0].mxu0
        %v4506 = vpop.f32.mrb[0].mxu0
        %v4507 = vadd.f32 0.0, %v4506
        %v4508 = vpop.f32.mrb[0].mxu0
        %4509 = vmatprep.mubr.bf16.mxu0 0
        %4510 = vmatmul.mubr.bf16.gmra.mrb[0].mxu0 %v4387
        %v4511 = vpop.f32.mrb[0].mxu0
        %v4512 = vadd.f32 0.0, %v4511
        %v4513 = vpop.f32.mrb[0].mxu0
        %v4514 = vpop.f32.mrb[0].mxu0
        %v4515 = vadd.f32 0.0, %v4514
        %v4516 = vpop.f32.mrb[0].mxu0
        %4517 = vmatprep.mubr.bf16.mxu0 0
        %4518 = vmatmul.mubr.bf16.gmra.mrb[0].mxu0 %v4390
        %v4519 = vpop.f32.mrb[0].mxu0
        %v4520 = vadd.f32 0.0, %v4519
        %v4521 = vpop.f32.mrb[0].mxu0
        %v4522 = vpop.f32.mrb[0].mxu0
        %v4523 = vadd.f32 0.0, %v4522
        %v4524 = vpop.f32.mrb[0].mxu0
        %4525 = vmatprep.mubr.bf16.mxu0 0
        %4526 = vmatmul.mubr.bf16.gmra.mrb[0].mxu0 %v4393
        %v4527 = vpop.f32.mrb[0].mxu0
        %v4528 = vadd.f32 0.0, %v4527
        %v4529 = vpop.f32.mrb[0].mxu0
        %v4530 = vpop.f32.mrb[0].mxu0
        %v4531 = vadd.f32 0.0, %v4530
        %v4532 = vpop.f32.mrb[0].mxu0
        %4533 = vmatprep.mubr.bf16.mxu0 0
        %4534 = vmatmul.mubr.bf16.gmra.mrb[0].mxu0 %v4396
        %v4535 = vpop.f32.mrb[0].mxu0
        %v4536 = vadd.f32 0.0, %v4535
        %v4537 = vpop.f32.mrb[0].mxu0
        %v4538 = vpop.f32.mrb[0].mxu0
        %v4539 = vadd.f32 0.0, %v4538
        %v4540 = vpop.f32.mrb[0].mxu0
        %4541 = vmatprep.mubr.bf16.mxu0 0
        %4542 = vmatmul.mubr.bf16.gmra.mrb[0].mxu0 %v4399
        %v4543 = vpop.f32.mrb[0].mxu0
        %v4544 = vadd.f32 0.0, %v4543
        %v4545 = vpop.f32.mrb[0].mxu0
        %v4546 = vpop.f32.mrb[0].mxu0
        %v4547 = vadd.f32 0.0, %v4546
        %v4548 = vpop.f32.mrb[0].mxu0
        %4549 = vmatprep.mubr.bf16.mxu0 0
        %4550 = vmatmul.mubr.bf16.gmra.mrb[0].mxu0 %v4402
        %v4551 = vpop.f32.mrb[0].mxu0
        %v4552 = vadd.f32 0.0, %v4551
        %v4553 = vpop.f32.mrb[0].mxu0
        %v4554 = vpop.f32.mrb[0].mxu0
        %v4555 = vadd.f32 0.0, %v4554
        %v4556 = vpop.f32.mrb[0].mxu0
        %4557 = vmatprep.mubr.bf16.mxu0 0
        %4558 = vmatmul.mubr.bf16.gmra.mrb[0].mxu0 %v4405
        %v4559 = vpop.f32.mrb[0].mxu0
        %v4560 = vadd.f32 0.0, %v4559
        %v4561 = vpop.f32.mrb[0].mxu0
        %v4562 = vpop.f32.mrb[0].mxu0
        %v4563 = vadd.f32 0.0, %v4562
        %v4564 = vpop.f32.mrb[0].mxu0
        %4565 = vmatprep.mubr.bf16.mxu0 0
        %4566 = vmatmul.mubr.bf16.gmra.mrb[0].mxu0 %v4408
        %v4567 = vpop.f32.mrb[0].mxu0
        %v4568 = vadd.f32 0.0, %v4567
        %v4569 = vpop.f32.mrb[0].mxu0
        %v4570 = vpop.f32.mrb[0].mxu0
        %v4571 = vadd.f32 0.0, %v4570
        %v4572 = vpop.f32.mrb[0].mxu0
        %4573 = vdwg.mxu0
        %v4574 = vld [vmem:[%s8] sm:$0x1]
        %v4576 = vlaneseq
        %v4577 = vshrl.u32 %v4576, 7
        %v4578 = vsub.s32 0, %v4577
        %v4579 = vrot.slane %v4574, %v4578
        %v4581 = vmul.f32 %v4448, %v4579
        %v4582 = vmul.f32 %v4451, %v4579
        %v4583 = vmul.f32 %v4456, %v4579
        %v4584 = vmul.f32 %v4459, %v4579
        %v4585 = vmul.f32 %v4464, %v4579
        %v4586 = vmul.f32 %v4467, %v4579
        %v4587 = vmul.f32 %v4472, %v4579
        %v4588 = vmul.f32 %v4475, %v4579
        %v4589 = vmul.f32 %v4480, %v4579
        %v4590 = vmul.f32 %v4483, %v4579
        %v4591 = vmul.f32 %v4488, %v4579
        %v4592 = vmul.f32 %v4491, %v4579
        %v4593 = vmul.f32 %v4496, %v4579
        %v4594 = vmul.f32 %v4499, %v4579
        %v4595 = vmul.f32 %v4504, %v4579
        %v4596 = vmul.f32 %v4507, %v4579
        %v4597 = vmul.f32 %v4512, %v4579
        %v4598 = vmul.f32 %v4515, %v4579
        %v4599 = vmul.f32 %v4520, %v4579
        %v4600 = vmul.f32 %v4523, %v4579
        %v4601 = vmul.f32 %v4528, %v4579
        %v4602 = vmul.f32 %v4531, %v4579
        %v4603 = vmul.f32 %v4536, %v4579
        %v4604 = vmul.f32 %v4539, %v4579
        %v4605 = vmul.f32 %v4544, %v4579
        %v4606 = vmul.f32 %v4547, %v4579
        %v4607 = vmul.f32 %v4552, %v4579
        %v4608 = vmul.f32 %v4555, %v4579
        %v4609 = vmul.f32 %v4560, %v4579
        %v4610 = vmul.f32 %v4563, %v4579
        %v4611 = vmul.f32 %v4568, %v4579
        %v4612 = vmul.f32 %v4571, %v4579
        %v4613 = vld [vmem:[%s9] sm:$0x1]
        %v4615 = vlaneseq
        %v4616 = vshrl.u32 %v4615, 7
        %v4617 = vsub.s32 0, %v4616
        %v4618 = vrot.slane %v4613, %v4617
        %v4620 = vadd.f32 %v4581, %v4618
        %v4621 = vadd.f32 %v4582, %v4618
        %v4622 = vadd.f32 %v4583, %v4618
        %v4623 = vadd.f32 %v4584, %v4618
        %v4624 = vadd.f32 %v4585, %v4618
        %v4625 = vadd.f32 %v4586, %v4618
        %v4626 = vadd.f32 %v4587, %v4618
        %v4627 = vadd.f32 %v4588, %v4618
        %v4628 = vadd.f32 %v4589, %v4618
        %v4629 = vadd.f32 %v4590, %v4618
        %v4630 = vadd.f32 %v4591, %v4618
        %v4631 = vadd.f32 %v4592, %v4618
        %v4632 = vadd.f32 %v4593, %v4618
        %v4633 = vadd.f32 %v4594, %v4618
        %v4634 = vadd.f32 %v4595, %v4618
        %v4635 = vadd.f32 %v4596, %v4618
        %v4636 = vadd.f32 %v4597, %v4618
        %v4637 = vadd.f32 %v4598, %v4618
        %v4638 = vadd.f32 %v4599, %v4618
        %v4639 = vadd.f32 %v4600, %v4618
        %v4640 = vadd.f32 %v4601, %v4618
        %v4641 = vadd.f32 %v4602, %v4618
        %v4642 = vadd.f32 %v4603, %v4618
        %v4643 = vadd.f32 %v4604, %v4618
        %v4644 = vadd.f32 %v4605, %v4618
        %v4645 = vadd.f32 %v4606, %v4618
        %v4646 = vadd.f32 %v4607, %v4618
        %v4647 = vadd.f32 %v4608, %v4618
        %v4648 = vadd.f32 %v4609, %v4618
        %v4649 = vadd.f32 %v4610, %v4618
        %v4650 = vadd.f32 %v4611, %v4618
        %v4651 = vadd.f32 %v4612, %v4618
        %v4652 = vadd.f32 %v4329, %v4620
        %v4653 = vadd.f32 %v4330, %v4621
        %v4654 = vadd.f32 %v4331, %v4622
        %v4655 = vadd.f32 %v4332, %v4623
        %v4656 = vadd.f32 %v4333, %v4624
        %v4657 = vadd.f32 %v4334, %v4625
        %v4658 = vadd.f32 %v4335, %v4626
        %v4659 = vadd.f32 %v4336, %v4627
        %v4660 = vadd.f32 %v4337, %v4628
        %v4661 = vadd.f32 %v4338, %v4629
        %v4662 = vadd.f32 %v4339, %v4630
        %v4663 = vadd.f32 %v4340, %v4631
        %v4664 = vadd.f32 %v4341, %v4632
        %v4665 = vadd.f32 %v4342, %v4633
        %v4666 = vadd.f32 %v4343, %v4634
        %v4667 = vadd.f32 %v4344, %v4635
        %v4668 = vadd.f32 %v4345, %v4636
        %v4669 = vadd.f32 %v4346, %v4637
        %v4670 = vadd.f32 %v4347, %v4638
        %v4671 = vadd.f32 %v4348, %v4639
        %v4672 = vadd.f32 %v4349, %v4640
        %v4673 = vadd.f32 %v4350, %v4641
        %v4674 = vadd.f32 %v4351, %v4642
        %v4675 = vadd.f32 %v4352, %v4643
        %v4676 = vadd.f32 %v4353, %v4644
        %v4677 = vadd.f32 %v4354, %v4645
        %v4678 = vadd.f32 %v4355, %v4646
        %v4679 = vadd.f32 %v4356, %v4647
        %v4680 = vadd.f32 %v4357, %v4648
        %v4681 = vadd.f32 %v4358, %v4649
        %v4682 = vadd.f32 %v4359, %v4650
        %v4683 = vadd.f32 %v4360, %v4651
        %v4684 = vmax.f32 %v4652, 0.0
        %v4685 = vmax.f32 %v4653, 0.0
        %v4686 = vmax.f32 %v4654, 0.0
        %v4687 = vmax.f32 %v4655, 0.0
        %v4688 = vmax.f32 %v4656, 0.0
        %v4689 = vmax.f32 %v4657, 0.0
        %v4690 = vmax.f32 %v4658, 0.0
        %v4691 = vmax.f32 %v4659, 0.0
        %v4692 = vmax.f32 %v4660, 0.0
        %v4693 = vmax.f32 %v4661, 0.0
        %v4694 = vmax.f32 %v4662, 0.0
        %v4695 = vmax.f32 %v4663, 0.0
        %v4696 = vmax.f32 %v4664, 0.0
        %v4697 = vmax.f32 %v4665, 0.0
        %v4698 = vmax.f32 %v4666, 0.0
        %v4699 = vmax.f32 %v4667, 0.0
        %v4700 = vmax.f32 %v4668, 0.0
        %v4701 = vmax.f32 %v4669, 0.0
        %v4702 = vmax.f32 %v4670, 0.0
        %v4703 = vmax.f32 %v4671, 0.0
        %v4704 = vmax.f32 %v4672, 0.0
        %v4705 = vmax.f32 %v4673, 0.0
        %v4706 = vmax.f32 %v4674, 0.0
        %v4707 = vmax.f32 %v4675, 0.0
        %v4708 = vmax.f32 %v4676, 0.0
        %v4709 = vmax.f32 %v4677, 0.0
        %v4710 = vmax.f32 %v4678, 0.0
        %v4711 = vmax.f32 %v4679, 0.0
        %v4712 = vmax.f32 %v4680, 0.0
        %v4713 = vmax.f32 %v4681, 0.0
        %v4714 = vmax.f32 %v4682, 0.0
        %v4715 = vmax.f32 %v4683, 0.0
        %v4716 = vpack.c.bf16 %v4685, %v4684
        %v4717 = vpack.c.bf16 %v4687, %v4686
        %v4718 = vpack.c.bf16 %v4689, %v4688
        %v4719 = vpack.c.bf16 %v4691, %v4690
        %v4720 = vpack.c.bf16 %v4693, %v4692
        %v4721 = vpack.c.bf16 %v4695, %v4694
        %v4722 = vpack.c.bf16 %v4697, %v4696
        %v4723 = vpack.c.bf16 %v4699, %v4698
        %v4724 = vpack.c.bf16 %v4701, %v4700
        %v4725 = vpack.c.bf16 %v4703, %v4702
        %v4726 = vpack.c.bf16 %v4705, %v4704
        %v4727 = vpack.c.bf16 %v4707, %v4706
        %v4728 = vpack.c.bf16 %v4709, %v4708
        %v4729 = vpack.c.bf16 %v4711, %v4710
        %v4730 = vpack.c.bf16 %v4713, %v4712
        %v4731 = vpack.c.bf16 %v4715, %v4714
        %v4748 = vunpack.c.l.b16 %v4716
        %v4749 = vunpack.c.h.b16 %v4716
        %v4750 = vunpack.c.l.b16 %v4717
        %v4751 = vunpack.c.h.b16 %v4717
        %v4752 = vunpack.c.l.b16 %v4718
        %v4753 = vunpack.c.h.b16 %v4718
        %v4754 = vunpack.c.l.b16 %v4719
        %v4755 = vunpack.c.h.b16 %v4719
        %v4756 = vunpack.c.l.b16 %v4720
        %v4757 = vunpack.c.h.b16 %v4720
        %v4758 = vunpack.c.l.b16 %v4721
        %v4759 = vunpack.c.h.b16 %v4721
        %v4760 = vunpack.c.l.b16 %v4722
        %v4761 = vunpack.c.h.b16 %v4722
        %v4762 = vunpack.c.l.b16 %v4723
        %v4763 = vunpack.c.h.b16 %v4723
        %v4764 = vunpack.c.l.b16 %v4724
        %v4765 = vunpack.c.h.b16 %v4724
        %v4766 = vunpack.c.l.b16 %v4725
        %v4767 = vunpack.c.h.b16 %v4725
        %v4768 = vunpack.c.l.b16 %v4726
        %v4769 = vunpack.c.h.b16 %v4726
        %v4770 = vunpack.c.l.b16 %v4727
        %v4771 = vunpack.c.h.b16 %v4727
        %v4772 = vunpack.c.l.b16 %v4728
        %v4773 = vunpack.c.h.b16 %v4728
        %v4774 = vunpack.c.l.b16 %v4729
        %v4775 = vunpack.c.h.b16 %v4729
        %v4776 = vunpack.c.l.b16 %v4730
        %v4777 = vunpack.c.h.b16 %v4730
        %v4778 = vunpack.c.l.b16 %v4731
        %v4779 = vunpack.c.h.b16 %v4731
        %v4780 = vpack.c.b16 %v4748, %v4748
        %v4781 = vpack.c.b16 %v4749, %v4749
        %v4782 = vpack.c.b16 %v4750, %v4750
        %v4783 = vpack.c.b16 %v4751, %v4751
        %v4784 = vpack.c.b16 %v4752, %v4752
        %v4785 = vpack.c.b16 %v4753, %v4753
        %v4786 = vpack.c.b16 %v4754, %v4754
        %v4787 = vpack.c.b16 %v4755, %v4755
        %v4788 = vpack.c.b16 %v4756, %v4756
        %v4789 = vpack.c.b16 %v4757, %v4757
        %v4790 = vpack.c.b16 %v4758, %v4758
        %v4791 = vpack.c.b16 %v4759, %v4759
        %v4792 = vpack.c.b16 %v4760, %v4760
        %v4793 = vpack.c.b16 %v4761, %v4761
        %v4794 = vpack.c.b16 %v4762, %v4762
        %v4795 = vpack.c.b16 %v4763, %v4763
        %v4796 = vpack.c.b16 %v4764, %v4764
        %v4797 = vpack.c.b16 %v4765, %v4765
        %v4798 = vpack.c.b16 %v4766, %v4766
        %v4799 = vpack.c.b16 %v4767, %v4767
        %v4800 = vpack.c.b16 %v4768, %v4768
        %v4801 = vpack.c.b16 %v4769, %v4769
        %v4802 = vpack.c.b16 %v4770, %v4770
        %v4803 = vpack.c.b16 %v4771, %v4771
        %v4804 = vpack.c.b16 %v4772, %v4772
        %v4805 = vpack.c.b16 %v4773, %v4773
        %v4806 = vpack.c.b16 %v4774, %v4774
        %v4807 = vpack.c.b16 %v4775, %v4775
        %v4808 = vpack.c.b16 %v4776, %v4776
        %v4809 = vpack.c.b16 %v4777, %v4777
        %v4810 = vpack.c.b16 %v4778, %v4778
        %v4811 = vpack.c.b16 %v4779, %v4779
        %4844 = vst.msk [vmem:[%s396] sm:$0xf] %vm2096, %v4780
        %4845 = vst.msk [vmem:[%s396 + $0x4] sm:$0xf] %vm2096, %v4781
        %4846 = vst.msk [vmem:[%s396 + $0x8] sm:$0xf] %vm2096, %v4782
        %4847 = vst.msk [vmem:[%s396 + $0xc] sm:$0xf] %vm2096, %v4783
        %4848 = vst.msk [vmem:[%s396 + $0x10] sm:$0xf] %vm2096, %v4784
        %4849 = vst.msk [vmem:[%s396 + $0x14] sm:$0xf] %vm2096, %v4785
        %4850 = vst.msk [vmem:[%s396 + $0x18] sm:$0xf] %vm2096, %v4786
        %4851 = vst.msk [vmem:[%s396 + $0x1c] sm:$0xf] %vm2096, %v4787
        %4852 = vst.msk [vmem:[%s396 + $0x20] sm:$0xf] %vm2096, %v4788
        %4853 = vst.msk [vmem:[%s396 + $0x24] sm:$0xf] %vm2096, %v4789
        %4854 = vst.msk [vmem:[%s396 + $0x28] sm:$0xf] %vm2096, %v4790
        %4855 = vst.msk [vmem:[%s396 + $0x2c] sm:$0xf] %vm2096, %v4791
        %4856 = vst.msk [vmem:[%s396 + $0x30] sm:$0xf] %vm2096, %v4792
        %4857 = vst.msk [vmem:[%s396 + $0x34] sm:$0xf] %vm2096, %v4793
        %4858 = vst.msk [vmem:[%s396 + $0x38] sm:$0xf] %vm2096, %v4794
        %4859 = vst.msk [vmem:[%s396 + $0x3c] sm:$0xf] %vm2096, %v4795
        %4860 = vst.msk [vmem:[%s396 + $0x40] sm:$0xf] %vm2096, %v4796
        %4861 = vst.msk [vmem:[%s396 + $0x44] sm:$0xf] %vm2096, %v4797
        %4862 = vst.msk [vmem:[%s396 + $0x48] sm:$0xf] %vm2096, %v4798
        %4863 = vst.msk [vmem:[%s396 + $0x4c] sm:$0xf] %vm2096, %v4799
        %4864 = vst.msk [vmem:[%s396 + $0x50] sm:$0xf] %vm2096, %v4800
        %4865 = vst.msk [vmem:[%s396 + $0x54] sm:$0xf] %vm2096, %v4801
        %4866 = vst.msk [vmem:[%s396 + $0x58] sm:$0xf] %vm2096, %v4802
        %4867 = vst.msk [vmem:[%s396 + $0x5c] sm:$0xf] %vm2096, %v4803
        %4868 = vst.msk [vmem:[%s396 + $0x60] sm:$0xf] %vm2096, %v4804
        %4869 = vst.msk [vmem:[%s396 + $0x64] sm:$0xf] %vm2096, %v4805
        %4870 = vst.msk [vmem:[%s396 + $0x68] sm:$0xf] %vm2096, %v4806
        %4871 = vst.msk [vmem:[%s396 + $0x6c] sm:$0xf] %vm2096, %v4807
        %4872 = vst.msk [vmem:[%s396 + $0x70] sm:$0xf] %vm2096, %v4808
        %4873 = vst.msk [vmem:[%s396 + $0x74] sm:$0xf] %vm2096, %v4809
        %4874 = vst.msk [vmem:[%s396 + $0x78] sm:$0xf] %vm2096, %v4810
        %4875 = vst.msk [vmem:[%s396 + $0x7c] sm:$0xf] %vm2096, %v4811
        %v4876 = vsel %vm1537, %v4684, 0.0
        %v4877 = vsel %vm1537, %v4685, 0.0
        %v4878 = vadd.f32 %v4876, %v4877
        %v4879 = vsel %vm1537, %v4686, 0.0
        %v4880 = vadd.f32 %v4878, %v4879
        %v4881 = vsel %vm1537, %v4687, 0.0
        %v4882 = vadd.f32 %v4880, %v4881
        %v4883 = vsel %vm1537, %v4688, 0.0
        %v4884 = vadd.f32 %v4882, %v4883
        %v4885 = vsel %vm1537, %v4689, 0.0
        %v4886 = vadd.f32 %v4884, %v4885
        %v4887 = vsel %vm1537, %v4690, 0.0
        %v4888 = vadd.f32 %v4886, %v4887
        %v4889 = vsel %vm1537, %v4691, 0.0
        %v4890 = vadd.f32 %v4888, %v4889
        %v4891 = vsel %vm1537, %v4692, 0.0
        %v4892 = vadd.f32 %v4890, %v4891
        %v4893 = vsel %vm1537, %v4693, 0.0
        %v4894 = vadd.f32 %v4892, %v4893
        %v4895 = vsel %vm1537, %v4694, 0.0
        %v4896 = vadd.f32 %v4894, %v4895
        %v4897 = vsel %vm1537, %v4695, 0.0
        %v4898 = vadd.f32 %v4896, %v4897
        %v4899 = vsel %vm1537, %v4696, 0.0
        %v4900 = vadd.f32 %v4898, %v4899
        %v4901 = vsel %vm1537, %v4697, 0.0
        %v4902 = vadd.f32 %v4900, %v4901
        %v4903 = vsel %vm1537, %v4698, 0.0
        %v4904 = vadd.f32 %v4902, %v4903
        %v4905 = vsel %vm1537, %v4699, 0.0
        %v4906 = vadd.f32 %v4904, %v4905
        %v4907 = vsel %vm1537, %v4700, 0.0
        %v4908 = vadd.f32 %v4906, %v4907
        %v4909 = vsel %vm1537, %v4701, 0.0
        %v4910 = vadd.f32 %v4908, %v4909
        %v4911 = vsel %vm1537, %v4702, 0.0
        %v4912 = vadd.f32 %v4910, %v4911
        %v4913 = vsel %vm1537, %v4703, 0.0
        %v4914 = vadd.f32 %v4912, %v4913
        %v4915 = vsel %vm1537, %v4704, 0.0
        %v4916 = vadd.f32 %v4914, %v4915
        %v4917 = vsel %vm1537, %v4705, 0.0
        %v4918 = vadd.f32 %v4916, %v4917
        %v4919 = vsel %vm1537, %v4706, 0.0
        %v4920 = vadd.f32 %v4918, %v4919
        %v4921 = vsel %vm1537, %v4707, 0.0
        %v4922 = vadd.f32 %v4920, %v4921
        %v4923 = vsel %vm1537, %v4708, 0.0
        %v4924 = vadd.f32 %v4922, %v4923
        %v4925 = vsel %vm1537, %v4709, 0.0
        %v4926 = vadd.f32 %v4924, %v4925
        %v4927 = vsel %vm1537, %v4710, 0.0
        %v4928 = vadd.f32 %v4926, %v4927
        %v4929 = vsel %vm1537, %v4711, 0.0
        %v4930 = vadd.f32 %v4928, %v4929
        %v4931 = vsel %vm1537, %v4712, 0.0
        %v4932 = vadd.f32 %v4930, %v4931
        %v4933 = vsel %vm1537, %v4713, 0.0
        %v4934 = vadd.f32 %v4932, %v4933
        %v4935 = vsel %vm1537, %v4714, 0.0
        %v4936 = vadd.f32 %v4934, %v4935
        %v4937 = vsel %vm1537, %v4715, 0.0
        %v4938 = vadd.f32 %v4936, %v4937
        %v4939 = vrot.slane %v4938, 4
        %v4940 = vadd.f32 %v4938, %v4939
        %v4941 = vrot.slane %v4940, 2
        %v4942 = vadd.f32 %v4940, %v4941
        %v4943 = vrot.slane %v4942, 1
        %v4944 = vadd.f32 %v4942, %v4943
        %4945 = vst.msk [vmem:[%s386] sm:$0x1] %vm2099, %v4944
        %p4946 = scmp.lt.s32.totalorder %s26, 1
        %s4947 = scalar_select %p4946, %s26, 1
        %s4948 = smul.addr %s4947, 32
        %s4949 = smul.addr %s4948, 4
        %s4950 = scalar_lea.vmem %s10, %s4949
        %s4951 = sand.u32 %s275, 1
        %s4952 = scalar_lea.sflag [#allocation4], %s4951
        %s4953 = sand.u32 %s275, 1
        %s4954 = scalar_lea.vmem [#allocation3], %s4953
        // Predicated region
        $region61: #{tpu_custom_call.1} parent=59 // pred_check
          %p4955 = pneg %p259
        $region62: #{tpu_custom_call.1} parent=59 // pred_check_branch
          %4957 = sbr.rel (%p4955) target = $region64
        $region63: #{tpu_custom_call.1} parent=59 // pred_region
          _
        $region64: #{tpu_custom_call.1} parent=59 // pred_fallthru
          _
        // Predicated region
        $region65: #{tpu_custom_call.1} parent=59 // pred_check
          %p4958 = pneg %p285
        $region66: #{tpu_custom_call.1} parent=59 // pred_check_branch
          %4960 = sbr.rel (%p4958) target = $region68
        $region67: #{tpu_custom_call.1} parent=59 // pred_region
          %s4962 = ssub.s32 16, 16
          %4963 = vsyncadd %s4952, %s4962
          %s4964 = smul.addr %s26, 16
          %s4965 = scalar_lea.hbm %s11, %s4964
          %s4967 = sshll.u32 %s4954, 4
          %s4968 = int_to_ptr.vmem [resolvable:$true] %s4967
          %4970 = dma.vmem_to_hbm [thread:$0]  %s4968, 16, %s4965, %s4952
        $region68: #{tpu_custom_call.1} parent=59 // pred_fallthru
          _
      $region60: #{tpu_custom_call.1} parent=5 // pred_fallthru
        _
      %p4971 = scmp.le.s32.totalorder 2, %s21
      // Predicated region
      $region69: #{tpu_custom_call.1} parent=5 // pred_check
        %p4972 = pneg %p4971
      $region70: #{tpu_custom_call.1} parent=5 // pred_check_branch
        %4974 = sbr.rel (%p4972) target = $region72
      $region71: #{tpu_custom_call.1} parent=5 // pred_region
        %s4975 = ssub.s32 %s21, 2
        // Predicated region
        $region73: #{tpu_custom_call.1} parent=71 // pred_check
          %p4976 = pneg %p265
        $region74: #{tpu_custom_call.1} parent=71 // pred_check_branch
          %4978 = sbr.rel (%p4976) target = $region76
        $region75: #{tpu_custom_call.1} parent=71 // pred_region
          %p4979 = scmp.lt.s32.totalorder %s27, 1
          %s4980 = scalar_select %p4979, %s27, 1
          %s4981 = smul.addr %s4980, 32
          %s4982 = smul.addr %s4981, 4
          %s4983 = scalar_lea.vmem %s10, %s4982
        $region76: #{tpu_custom_call.1} parent=71 // pred_fallthru
          _
        // Predicated region
        $region77: #{tpu_custom_call.1} parent=71 // pred_check
          %p4984 = pneg %p291
        $region78: #{tpu_custom_call.1} parent=71 // pred_check_branch
          %4986 = sbr.rel (%p4984) target = $region80
        $region79: #{tpu_custom_call.1} parent=71 // pred_region
          %s4987 = sand.u32 %s276, 1
          %s4988 = scalar_lea.sflag [#allocation4], %s4987
          %s4989 = sand.u32 %s276, 1
          %s4990 = scalar_lea.vmem [#allocation3], %s4989
          %4991 = dma.done %s4988, 16
        $region80: #{tpu_custom_call.1} parent=71 // pred_fallthru
          _
      $region72: #{tpu_custom_call.1} parent=5 // pred_fallthru
        _
    $region6: #{tpu_custom_call.1} parent=1 // loop_footer
      %s25 = sadd.s32 1, %s21
    $region7: #{tpu_custom_call.1} parent=1 // loop_footer_branch
      %20 = sbr.rel target = $region3
    $region8: #{tpu_custom_call.1} parent=1 // loop_exit
      _
    %4992 = vsyncpa [#allocation4], 1
    %s4993 = scalar_lea.sflag [#allocation4], 1
    %4994 = vsyncpa %s4993, 1

</llo_original>
